<compile_context>
chip_gen: v5e
topology: v5e:2x2
jax: 0.10.0
libtpu: 0.0.40
codegen_flags: <defaults>
</compile_context>

<pallas_src>
import numpy as np

import jax
import jax.numpy as jnp
from jax.experimental import pallas as pl
from jax.experimental.pallas import tpu as pltpu


# --------------------------------------------------------------------------- #
# Host-side, one-time weight packing.
# Activation convention inside the kernel: a (B, C, H, W) tensor is seen as a
# (B, C*H*W) matrix flattened in NCHW order, so every layer is
#     y2d = x2d @ T + bias_row            T: (Cin*H*W, Cout*Ho*Wo)
# and layers chain with no transposes.
# --------------------------------------------------------------------------- #

def _round_up(x, m):
    return (x + m - 1) // m * m


def _conv2d_as_matmul(weight, bias, H, W, stride, padding):
    """PyTorch Conv2d weight (Cout, Cin, kh, kw) -> (T, bias_row, (Ho, Wo))."""
    weight = np.asarray(weight, np.float32)
    Cout, Cin, kh, kw = weight.shape
    Ho = (H + 2 * padding - kh) // stride + 1
    Wo = (W + 2 * padding - kw) // stride + 1
    T = np.zeros((Cin, H, W, Cout, Ho, Wo), np.float32)
    for dh in range(kh):
        for dw in range(kw):
            w_tap = weight[:, :, dh, dw].T                      # (Cin, Cout)
            for oh in range(Ho):
                ih = oh * stride + dh - padding
                if not 0 <= ih < H:
                    continue
                for ow in range(Wo):
                    iw = ow * stride + dw - padding
                    if not 0 <= iw < W:
                        continue
                    T[:, ih, iw, :, oh, ow] += w_tap
    bias_row = np.repeat(np.asarray(bias, np.float32), Ho * Wo)[None, :]
    return T.reshape(Cin * H * W, Cout * Ho * Wo), bias_row, (Ho, Wo)


def _conv_transpose2d_as_matmul(weight, bias, H, W, stride, padding, output_padding):
    """PyTorch ConvTranspose2d weight (Cin, Cout, kh, kw) -> (T, bias_row, (Ho, Wo))."""
    weight = np.asarray(weight, np.float32)
    Cin, Cout, kh, kw = weight.shape
    Ho = (H - 1) * stride - 2 * padding + kh + output_padding
    Wo = (W - 1) * stride - 2 * padding + kw + output_padding
    T = np.zeros((Cin, H, W, Cout, Ho, Wo), np.float32)
    for dh in range(kh):
        for dw in range(kw):
            w_tap = weight[:, :, dh, dw]                        # (Cin, Cout)
            for ih in range(H):
                oh = ih * stride + dh - padding
                if not 0 <= oh < Ho:
                    continue
                for iw in range(W):
                    ow = iw * stride + dw - padding
                    if not 0 <= ow < Wo:
                        continue
                    T[:, ih, iw, :, oh, ow] += w_tap
    bias_row = np.repeat(np.asarray(bias, np.float32), Ho * Wo)[None, :]
    return T.reshape(Cin * H * W, Cout * Ho * Wo), bias_row, (Ho, Wo)


def _conv1_stencil_pack(weight, bias, H, W, stride, padding):
    """Cin==1 conv -> (REP 0/1 replication matrix, per-tap rows, bias_row).

    Layer 1 becomes   h1 = relu( sum_t (g_t @ REP) * rows[t] + bias_row )
    with g_t the (B, Ho*Wo) stride-2 tap plane extracted in the wrapper.
    Weight bytes: REP (Ho*Wo, Cout*Ho*Wo) bf16 + rows (9, Cout*Ho*Wo) f32
    (~170 KiB) instead of a dense 512 KiB T1.
    """
    weight = np.asarray(weight, np.float32)
    Cout, Cin, kh, kw = weight.shape
    assert Cin == 1, "stencil packing assumes a single input channel"
    Ho = (H + 2 * padding - kh) // stride + 1
    Wo = (W + 2 * padding - kw) // stride + 1
    P = Ho * Wo
    rep = np.tile(np.eye(P, dtype=np.float32), (1, Cout))        # (P, Cout*P)
    rows = np.zeros((kh * kw, Cout * P), np.float32)
    for dh in range(kh):
        for dw in range(kw):
            rows[dh * kw + dw] = np.repeat(weight[:, 0, dh, dw], P)
    bias_row = np.repeat(np.asarray(bias, np.float32), P)[None, :]
    return rep, rows, bias_row, (Ho, Wo)


def pack_params(params, H=16, W=16, mxu_dtype=jnp.bfloat16):
    """Pre-pack all four layers (done once).  MXU operands are bf16 on every
    TPU generation (v5e/v6e/v7x); accumulation/epilogue stay f32."""
    rep, rows1, b1, (H1, W1) = _conv1_stencil_pack(
        params["enc1_w"], params["enc1_b"], H, W, 2, 1)
    t2, b2, (H2, W2) = _conv2d_as_matmul(
        params["enc2_w"], params["enc2_b"], H1, W1, 2, 1)
    t3, b3, (H3, W3) = _conv_transpose2d_as_matmul(
        params["dec1_w"], params["dec1_b"], H2, W2, 2, 1, 1)
    t4, b4, (H4, W4) = _conv_transpose2d_as_matmul(
        params["dec2_w"], params["dec2_b"], H3, W3, 2, 1, 1)
    assert (H4, W4) == (H, W)
    return {
        "rep":   jnp.asarray(rep, mxu_dtype),      # (64, 1024)  exact 0/1
        "rows1": jnp.asarray(rows1, jnp.float32),  # (9, 1024)
        "b1":    jnp.asarray(b1, jnp.float32),     # (1, 1024)
        "t2":    jnp.asarray(t2, mxu_dtype),       # (1024, 128)
        "b2":    jnp.asarray(b2, jnp.float32),     # (1, 128)
        "t3":    jnp.asarray(t3, mxu_dtype),       # (128, 1024)
        "b3":    jnp.asarray(b3, jnp.float32),     # (1, 1024)
        "t4":    jnp.asarray(t4, mxu_dtype),       # (1024, 256)  TODO(synk): stencil-ize (needs in-kernel col2im)
        "b4":    jnp.asarray(b4, jnp.float32),     # (1, 256)
    }


# --------------------------------------------------------------------------- #
# Wrapper-side layout plumbing for layer 1: extract the 9 stride-2 tap planes
# (zero-padded) from the (B, 1, 16, 16) input.  Pure XLA on ~2 KB of data.
# --------------------------------------------------------------------------- #

def _extract_patches(x, kh=3, kw=3, stride=2, padding=1):
    """(B, 1, H, W) -> (kh*kw, B, Ho*Wo) tap planes, tap index t = dh*kw + dw."""
    B, C, H, W = x.shape
    Ho = (H + 2 * padding - kh) // stride + 1
    Wo = (W + 2 * padding - kw) // stride + 1
    xp = jnp.pad(x[:, 0], ((0, 0), (padding, padding), (padding, padding)))
    planes = []
    for dh in range(kh):
        for dw in range(kw):
            plane = xp[:, dh:dh + (Ho - 1) * stride + 1:stride,
                          dw:dw + (Wo - 1) * stride + 1:stride]   # (B, Ho, Wo)
            planes.append(plane.reshape(B, Ho * Wo))
    return jnp.stack(planes, axis=0)                              # (9, B, Ho*Wo)


# ------------------------------ fused kernel ------------------------------- #

def _fused_autoencoder_kernel(patches_ref, rep_ref, rows1_ref, b1_ref,
                              w2_ref, b2_ref, w3_ref, b3_ref, w4_ref, b4_ref,
                              o_ref):
    mxu = rep_ref.dtype                     # bf16 MXU operands, f32 accumulate
    n_taps = patches_ref.shape[0]           # 9
    tb = patches_ref.shape[1]               # batch tile rows
    n1 = rows1_ref.shape[1]                 # 1024

    # ---- layer 1: Conv2d(1 -> 16, 3x3, s2, p1) as a 9-tap stencil ----------
    # h1[b, c*64+p] = sum_t patches[t, b, p] * w1[c, tap t] + bias1[c]
    rep = rep_ref[...]                                    # (64, 1024) 0/1
    rows1 = rows1_ref[...]                                # (9, 1024)  f32
    acc = jnp.zeros((tb, n1), jnp.float32)
    for t in range(n_taps):                               # static unroll
        g = patches_ref[t]                                # (tb, 64) f32
        g_rep = jnp.dot(g.astype(mxu), rep,
                        preferred_element_type=jnp.float32)   # replicate to lanes
        acc = acc + g_rep * rows1[t:t + 1, :]
    h = jnp.maximum(acc + b1_ref[...], 0.0)               # ReLU

    # ---- layers 2-4: dense "conv as matmul", bf16 MXU, f32 epilogue --------
    def dense(hh, w_ref, b_ref):
        y = jnp.dot(hh.astype(mxu), w_ref[...],
                    preferred_element_type=jnp.float32)
        return y + b_ref[...]

    h = jnp.maximum(dense(h, w2_ref, b2_ref), 0.0)        # Conv2d(16 -> 8) + ReLU
    h = jnp.maximum(dense(h, w3_ref, b3_ref), 0.0)        # ConvT(8 -> 16)  + ReLU
    y = dense(h, w4_ref, b4_ref)                          # ConvT(16 -> 1)
    # Exact sigmoid (EUP exp + exact reciprocal); output stays f32.
    o_ref[...] = (1.0 / (1.0 + jnp.exp(-y))).astype(o_ref.dtype)


# ------------------------------ host wrapper ------------------------------- #

def autoencoder_forward(x, packed, *, max_tile_b=128):
    """x: (B, 1, H, W) NCHW float32 -> (B, 1, H, W) float32 in [0, 1]."""
    B, C, H, W = x.shape
    assert C == 1
    patches = _extract_patches(x)                         # (9, B, 64)

    n1 = packed["rows1"].shape[1]
    n_out = packed["t4"].shape[1]                         # Cout_final * H * W

    # Batch tiling: up to 128 rows per block (MXU M-occupancy); weights stay
    # resident across tiles (constant index_map), only activations stream.
    tile_b = min(max_tile_b, _round_up(B, 8))
    Bp = _round_up(B, tile_b)
    if Bp != B:
        patches = jnp.pad(patches, ((0, 0), (0, Bp - B), (0, 0)))
    grid = (Bp // tile_b,)

    n_taps, _, n_patch = patches.shape

    weight_ops = (packed["rep"], packed["rows1"], packed["b1"],
                  packed["t2"], packed["b2"],
                  packed["t3"], packed["b3"],
                  packed["t4"], packed["b4"])

    in_specs = [pl.BlockSpec((n_taps, tile_b, n_patch), lambda i: (0, i, 0))]
    for _op in weight_ops:                                # all weights are 2-D
        in_specs.append(pl.BlockSpec(_op.shape, lambda i: (0, 0)))
    out_specs = pl.BlockSpec((tile_b, n_out), lambda i: (i, 0))

    # Advisory cost estimate so XLA schedules around this latency-bound call.
    k2, n2 = packed["t2"].shape
    k3, n3 = packed["t3"].shape
    k4, n4 = packed["t4"].shape
    flops = int(2 * Bp * (n_taps * n_patch * n1 + k2 * n2 + k3 * n3 + k4 * n4)
                + 2 * Bp * n_taps * n1)
    bytes_accessed = int(
        patches.size * 4
        + sum(int(o.size) * o.dtype.itemsize for o in weight_ops)
        + Bp * n_out * 4)
    cost = pl.CostEstimate(flops=flops,
                           transcendentals=int(Bp * n_out),
                           bytes_accessed=bytes_accessed)

    out2d = pl.pallas_call(
        _fused_autoencoder_kernel,
        out_shape=jax.ShapeDtypeStruct((Bp, n_out), jnp.float32),
        grid=grid,
        in_specs=in_specs,
        out_specs=out_specs,
        compiler_params=pltpu.CompilerParams(
            dimension_semantics=("parallel",),          # v7x: shard tiles on 2 TCs
            vmem_limit_bytes=32 * 1024 * 1024),
        cost_estimate=cost,
    )(patches, *weight_ops)

    return out2d[:B].reshape(B, 1, H, W)


# ------------------------------- parameters -------------------------------- #

def init_params(key):
    def uniform(k, shape, fan_in):
        bound = 1.0 / jnp.sqrt(fan_in)
        return jax.random.uniform(k, shape, jnp.float32, -bound, bound)

    ks = jax.random.split(key, 8)
    return {
        # encoder: Conv2d(1,16,3,s2,p1), Conv2d(16,8,3,s2,p1)
        "enc1_w": uniform(ks[0], (16, 1, 3, 3), 1 * 9),
        "enc1_b": uniform(ks[1], (16,), 1 * 9),
        "enc2_w": uniform(ks[2], (8, 16, 3, 3), 16 * 9),
        "enc2_b": uniform(ks[3], (8,), 16 * 9),
        # decoder: ConvTranspose2d(8,16,3,s2,p1,op1), ConvTranspose2d(16,1,3,s2,p1,op1)
        "dec1_w": uniform(ks[4], (8, 16, 3, 3), 16 * 9),
        "dec1_b": uniform(ks[5], (16,), 16 * 9),
        "dec2_w": uniform(ks[6], (16, 1, 3, 3), 1 * 9),
        "dec2_b": uniform(ks[7], (1,), 1 * 9),
    }


# ----------------------- plain-JAX reference (check) ----------------------- #

def _ref_conv2d(x, w, b, stride, padding):
    y = jax.lax.conv_general_dilated(
        x, w, window_strides=(stride, stride),
        padding=((padding, padding), (padding, padding)),
        dimension_numbers=("NCHW", "OIHW", "NCHW"),
        precision=jax.lax.Precision.HIGHEST)
    return y + b.reshape(1, -1, 1, 1)


def _ref_conv_transpose2d(x, w, b, stride, padding, output_padding):
    k = w.shape[-1]
    w_flip = jnp.flip(w, axis=(2, 3)).transpose(1, 0, 2, 3)     # (Cout, Cin, k, k)
    lo, hi = k - 1 - padding, k - 1 - padding + output_padding
    y = jax.lax.conv_general_dilated(
        x, w_flip, window_strides=(1, 1), padding=((lo, hi), (lo, hi)),
        lhs_dilation=(stride, stride),
        dimension_numbers=("NCHW", "OIHW", "NCHW"),
        precision=jax.lax.Precision.HIGHEST)
    return y + b.reshape(1, -1, 1, 1)


def autoencoder_reference(x, p):
    x = jax.nn.relu(_ref_conv2d(x, p["enc1_w"], p["enc1_b"], 2, 1))
    x = jax.nn.relu(_ref_conv2d(x, p["enc2_w"], p["enc2_b"], 2, 1))
    x = jax.nn.relu(_ref_conv_transpose2d(x, p["dec1_w"], p["dec1_b"], 2, 1, 1))
    x = jax.nn.sigmoid(_ref_conv_transpose2d(x, p["dec2_w"], p["dec2_b"], 2, 1, 1))
    return x


# ----------------------------------- main ----------------------------------- #

if __name__ == "__main__":
    key = jax.random.PRNGKey(0)
    k_x, k_p = jax.random.split(key)
    x = jax.random.normal(k_x, (2, 1, 16, 16), jnp.float32)     # NCHW, like PyTorch
    params = init_params(k_p)
    packed = pack_params(params)                                # one-time packing

    fwd = jax.jit(autoencoder_forward)
    out = jax.block_until_ready(fwd(x, packed))

    assert out.shape == (2, 1, 16, 16), out.shape
    assert out.dtype == jnp.float32

    # Semantic check vs a plain-JAX (lax.conv) implementation of the PyTorch
    # module; tolerance covers the bf16 MXU operands (layer 1 is now exact in
    # the weights, only the activation cast is bf16).
    ref = jax.block_until_ready(jax.jit(autoencoder_reference)(x, params))
    max_err = float(jnp.max(jnp.abs(out - ref)))
    assert max_err < 5e-2, max_err

    print("KERNEL_OK")
</pallas_src>

<mosaic_0001>
module attributes {stable_mosaic.version = 11 : i64} {
  func.func @_fused_autoencoder_kernel(%arg0: i32, %arg1: memref<9x8x64xf32, #tpu.memory_space<vmem>>, %arg2: memref<64x1024xbf16, #tpu.memory_space<vmem>>, %arg3: memref<9x1024xf32, #tpu.memory_space<vmem>>, %arg4: memref<1x1024xf32, #tpu.memory_space<vmem>>, %arg5: memref<1024x128xbf16, #tpu.memory_space<vmem>>, %arg6: memref<1x128xf32, #tpu.memory_space<vmem>>, %arg7: memref<128x1024xbf16, #tpu.memory_space<vmem>>, %arg8: memref<1x1024xf32, #tpu.memory_space<vmem>>, %arg9: memref<1024x256xbf16, #tpu.memory_space<vmem>>, %arg10: memref<1x256xf32, #tpu.memory_space<vmem>>, %arg11: memref<8x256xf32, #tpu.memory_space<vmem>>) attributes {dimension_semantics = [#tpu.dimension_semantics<parallel>], iteration_bounds = array<i64: 1>, scalar_prefetch = 0 : i64, scratch_operands = 0 : i64, tpu.core_type = #tpu.core_type<tc>, window_params = [{transform_indices = @transform_0, window_bounds = array<i64: 9, 8, 64>}, {pipeline_mode = #tpu.pipeline_mode<synchronous>, transform_indices = @transform_1, window_bounds = array<i64: 64, 1024>}, {pipeline_mode = #tpu.pipeline_mode<synchronous>, transform_indices = @transform_2, window_bounds = array<i64: 9, 1024>}, {pipeline_mode = #tpu.pipeline_mode<synchronous>, transform_indices = @transform_3, window_bounds = array<i64: 1, 1024>}, {pipeline_mode = #tpu.pipeline_mode<synchronous>, transform_indices = @transform_4, window_bounds = array<i64: 1024, 128>}, {pipeline_mode = #tpu.pipeline_mode<synchronous>, transform_indices = @transform_5, window_bounds = array<i64: 1, 128>}, {pipeline_mode = #tpu.pipeline_mode<synchronous>, transform_indices = @transform_6, window_bounds = array<i64: 128, 1024>}, {pipeline_mode = #tpu.pipeline_mode<synchronous>, transform_indices = @transform_7, window_bounds = array<i64: 1, 1024>}, {pipeline_mode = #tpu.pipeline_mode<synchronous>, transform_indices = @transform_8, window_bounds = array<i64: 1024, 256>}, {pipeline_mode = #tpu.pipeline_mode<synchronous>, transform_indices = @transform_9, window_bounds = array<i64: 1, 256>}, {transform_indices = @transform_10, window_bounds = array<i64: 8, 256>}]} {
    %c0 = arith.constant 0 : index
    %c0_0 = arith.constant 0 : index
    %0 = vector.load %arg2[%c0, %c0_0] : memref<64x1024xbf16, #tpu.memory_space<vmem>>, vector<64x1024xbf16>
    %c0_1 = arith.constant 0 : index
    %c0_2 = arith.constant 0 : index
    %1 = vector.load %arg3[%c0_1, %c0_2] : memref<9x1024xf32, #tpu.memory_space<vmem>>, vector<9x1024xf32>
    %cst = arith.constant 0.000000e+00 : f32
    %2 = vector.broadcast %cst : f32 to vector<8x1024xf32>
    %c0_3 = arith.constant 0 : index
    %c0_4 = arith.constant 0 : index
    %c0_5 = arith.constant 0 : index
    %3 = vector.load %arg1[%c0_3, %c0_4, %c0_5] : memref<9x8x64xf32, #tpu.memory_space<vmem>>, vector<1x8x64xf32>
    %4 = vector.shape_cast %3 : vector<1x8x64xf32> to vector<8x64xf32>
    %5 = arith.truncf %4 : vector<8x64xf32> to vector<8x64xbf16>
    %cst_6 = arith.constant dense<0.000000e+00> : vector<8x1024xf32>
    %6 = tpu.matmul %5, %0, %cst_6 {dimension_numbers = #tpu.dot_dimension_numbers<[1], [0], [0], [1], [0, 0, 1, 1], [], []>} : vector<8x64xbf16>, vector<64x1024xbf16>, vector<8x1024xf32> -> vector<8x1024xf32>
    %7 = vector.extract_strided_slice %1 {offsets = [0, 0], sizes = [1, 1024], strides = [1, 1]} : vector<9x1024xf32> to vector<1x1024xf32>
    %8 = vector.broadcast %7 : vector<1x1024xf32> to vector<8x1024xf32>
    %9 = arith.mulf %6, %8 : vector<8x1024xf32>
    %10 = arith.addf %2, %9 : vector<8x1024xf32>
    %c1 = arith.constant 1 : index
    %c0_7 = arith.constant 0 : index
    %c0_8 = arith.constant 0 : index
    %11 = vector.load %arg1[%c1, %c0_7, %c0_8] : memref<9x8x64xf32, #tpu.memory_space<vmem>>, vector<1x8x64xf32>
    %12 = vector.shape_cast %11 : vector<1x8x64xf32> to vector<8x64xf32>
    %13 = arith.truncf %12 : vector<8x64xf32> to vector<8x64xbf16>
    %cst_9 = arith.constant dense<0.000000e+00> : vector<8x1024xf32>
    %14 = tpu.matmul %13, %0, %cst_9 {dimension_numbers = #tpu.dot_dimension_numbers<[1], [0], [0], [1], [0, 0, 1, 1], [], []>} : vector<8x64xbf16>, vector<64x1024xbf16>, vector<8x1024xf32> -> vector<8x1024xf32>
    %15 = vector.extract_strided_slice %1 {offsets = [1, 0], sizes = [1, 1024], strides = [1, 1]} : vector<9x1024xf32> to vector<1x1024xf32>
    %16 = vector.broadcast %15 : vector<1x1024xf32> to vector<8x1024xf32>
    %17 = arith.mulf %14, %16 : vector<8x1024xf32>
    %18 = arith.addf %10, %17 : vector<8x1024xf32>
    %c2 = arith.constant 2 : index
    %c0_10 = arith.constant 0 : index
    %c0_11 = arith.constant 0 : index
    %19 = vector.load %arg1[%c2, %c0_10, %c0_11] : memref<9x8x64xf32, #tpu.memory_space<vmem>>, vector<1x8x64xf32>
    %20 = vector.shape_cast %19 : vector<1x8x64xf32> to vector<8x64xf32>
    %21 = arith.truncf %20 : vector<8x64xf32> to vector<8x64xbf16>
    %cst_12 = arith.constant dense<0.000000e+00> : vector<8x1024xf32>
    %22 = tpu.matmul %21, %0, %cst_12 {dimension_numbers = #tpu.dot_dimension_numbers<[1], [0], [0], [1], [0, 0, 1, 1], [], []>} : vector<8x64xbf16>, vector<64x1024xbf16>, vector<8x1024xf32> -> vector<8x1024xf32>
    %23 = vector.extract_strided_slice %1 {offsets = [2, 0], sizes = [1, 1024], strides = [1, 1]} : vector<9x1024xf32> to vector<1x1024xf32>
    %24 = vector.broadcast %23 : vector<1x1024xf32> to vector<8x1024xf32>
    %25 = arith.mulf %22, %24 : vector<8x1024xf32>
    %26 = arith.addf %18, %25 : vector<8x1024xf32>
    %c3 = arith.constant 3 : index
    %c0_13 = arith.constant 0 : index
    %c0_14 = arith.constant 0 : index
    %27 = vector.load %arg1[%c3, %c0_13, %c0_14] : memref<9x8x64xf32, #tpu.memory_space<vmem>>, vector<1x8x64xf32>
    %28 = vector.shape_cast %27 : vector<1x8x64xf32> to vector<8x64xf32>
    %29 = arith.truncf %28 : vector<8x64xf32> to vector<8x64xbf16>
    %cst_15 = arith.constant dense<0.000000e+00> : vector<8x1024xf32>
    %30 = tpu.matmul %29, %0, %cst_15 {dimension_numbers = #tpu.dot_dimension_numbers<[1], [0], [0], [1], [0, 0, 1, 1], [], []>} : vector<8x64xbf16>, vector<64x1024xbf16>, vector<8x1024xf32> -> vector<8x1024xf32>
    %31 = vector.extract_strided_slice %1 {offsets = [3, 0], sizes = [1, 1024], strides = [1, 1]} : vector<9x1024xf32> to vector<1x1024xf32>
    %32 = vector.broadcast %31 : vector<1x1024xf32> to vector<8x1024xf32>
    %33 = arith.mulf %30, %32 : vector<8x1024xf32>
    %34 = arith.addf %26, %33 : vector<8x1024xf32>
    %c4 = arith.constant 4 : index
    %c0_16 = arith.constant 0 : index
    %c0_17 = arith.constant 0 : index
    %35 = vector.load %arg1[%c4, %c0_16, %c0_17] : memref<9x8x64xf32, #tpu.memory_space<vmem>>, vector<1x8x64xf32>
    %36 = vector.shape_cast %35 : vector<1x8x64xf32> to vector<8x64xf32>
    %37 = arith.truncf %36 : vector<8x64xf32> to vector<8x64xbf16>
    %cst_18 = arith.constant dense<0.000000e+00> : vector<8x1024xf32>
    %38 = tpu.matmul %37, %0, %cst_18 {dimension_numbers = #tpu.dot_dimension_numbers<[1], [0], [0], [1], [0, 0, 1, 1], [], []>} : vector<8x64xbf16>, vector<64x1024xbf16>, vector<8x1024xf32> -> vector<8x1024xf32>
    %39 = vector.extract_strided_slice %1 {offsets = [4, 0], sizes = [1, 1024], strides = [1, 1]} : vector<9x1024xf32> to vector<1x1024xf32>
    %40 = vector.broadcast %39 : vector<1x1024xf32> to vector<8x1024xf32>
    %41 = arith.mulf %38, %40 : vector<8x1024xf32>
    %42 = arith.addf %34, %41 : vector<8x1024xf32>
    %c5 = arith.constant 5 : index
    %c0_19 = arith.constant 0 : index
    %c0_20 = arith.constant 0 : index
    %43 = vector.load %arg1[%c5, %c0_19, %c0_20] : memref<9x8x64xf32, #tpu.memory_space<vmem>>, vector<1x8x64xf32>
    %44 = vector.shape_cast %43 : vector<1x8x64xf32> to vector<8x64xf32>
    %45 = arith.truncf %44 : vector<8x64xf32> to vector<8x64xbf16>
    %cst_21 = arith.constant dense<0.000000e+00> : vector<8x1024xf32>
    %46 = tpu.matmul %45, %0, %cst_21 {dimension_numbers = #tpu.dot_dimension_numbers<[1], [0], [0], [1], [0, 0, 1, 1], [], []>} : vector<8x64xbf16>, vector<64x1024xbf16>, vector<8x1024xf32> -> vector<8x1024xf32>
    %47 = vector.extract_strided_slice %1 {offsets = [5, 0], sizes = [1, 1024], strides = [1, 1]} : vector<9x1024xf32> to vector<1x1024xf32>
    %48 = vector.broadcast %47 : vector<1x1024xf32> to vector<8x1024xf32>
    %49 = arith.mulf %46, %48 : vector<8x1024xf32>
    %50 = arith.addf %42, %49 : vector<8x1024xf32>
    %c6 = arith.constant 6 : index
    %c0_22 = arith.constant 0 : index
    %c0_23 = arith.constant 0 : index
    %51 = vector.load %arg1[%c6, %c0_22, %c0_23] : memref<9x8x64xf32, #tpu.memory_space<vmem>>, vector<1x8x64xf32>
    %52 = vector.shape_cast %51 : vector<1x8x64xf32> to vector<8x64xf32>
    %53 = arith.truncf %52 : vector<8x64xf32> to vector<8x64xbf16>
    %cst_24 = arith.constant dense<0.000000e+00> : vector<8x1024xf32>
    %54 = tpu.matmul %53, %0, %cst_24 {dimension_numbers = #tpu.dot_dimension_numbers<[1], [0], [0], [1], [0, 0, 1, 1], [], []>} : vector<8x64xbf16>, vector<64x1024xbf16>, vector<8x1024xf32> -> vector<8x1024xf32>
    %55 = vector.extract_strided_slice %1 {offsets = [6, 0], sizes = [1, 1024], strides = [1, 1]} : vector<9x1024xf32> to vector<1x1024xf32>
    %56 = vector.broadcast %55 : vector<1x1024xf32> to vector<8x1024xf32>
    %57 = arith.mulf %54, %56 : vector<8x1024xf32>
    %58 = arith.addf %50, %57 : vector<8x1024xf32>
    %c7 = arith.constant 7 : index
    %c0_25 = arith.constant 0 : index
    %c0_26 = arith.constant 0 : index
    %59 = vector.load %arg1[%c7, %c0_25, %c0_26] : memref<9x8x64xf32, #tpu.memory_space<vmem>>, vector<1x8x64xf32>
    %60 = vector.shape_cast %59 : vector<1x8x64xf32> to vector<8x64xf32>
    %61 = arith.truncf %60 : vector<8x64xf32> to vector<8x64xbf16>
    %cst_27 = arith.constant dense<0.000000e+00> : vector<8x1024xf32>
    %62 = tpu.matmul %61, %0, %cst_27 {dimension_numbers = #tpu.dot_dimension_numbers<[1], [0], [0], [1], [0, 0, 1, 1], [], []>} : vector<8x64xbf16>, vector<64x1024xbf16>, vector<8x1024xf32> -> vector<8x1024xf32>
    %63 = vector.extract_strided_slice %1 {offsets = [7, 0], sizes = [1, 1024], strides = [1, 1]} : vector<9x1024xf32> to vector<1x1024xf32>
    %64 = vector.broadcast %63 : vector<1x1024xf32> to vector<8x1024xf32>
    %65 = arith.mulf %62, %64 : vector<8x1024xf32>
    %66 = arith.addf %58, %65 : vector<8x1024xf32>
    %c8 = arith.constant 8 : index
    %c0_28 = arith.constant 0 : index
    %c0_29 = arith.constant 0 : index
    %67 = vector.load %arg1[%c8, %c0_28, %c0_29] : memref<9x8x64xf32, #tpu.memory_space<vmem>>, vector<1x8x64xf32>
    %68 = vector.shape_cast %67 : vector<1x8x64xf32> to vector<8x64xf32>
    %69 = arith.truncf %68 : vector<8x64xf32> to vector<8x64xbf16>
    %cst_30 = arith.constant dense<0.000000e+00> : vector<8x1024xf32>
    %70 = tpu.matmul %69, %0, %cst_30 {dimension_numbers = #tpu.dot_dimension_numbers<[1], [0], [0], [1], [0, 0, 1, 1], [], []>} : vector<8x64xbf16>, vector<64x1024xbf16>, vector<8x1024xf32> -> vector<8x1024xf32>
    %71 = vector.extract_strided_slice %1 {offsets = [8, 0], sizes = [1, 1024], strides = [1, 1]} : vector<9x1024xf32> to vector<1x1024xf32>
    %72 = vector.broadcast %71 : vector<1x1024xf32> to vector<8x1024xf32>
    %73 = arith.mulf %70, %72 : vector<8x1024xf32>
    %74 = arith.addf %66, %73 : vector<8x1024xf32>
    %c0_31 = arith.constant 0 : index
    %c0_32 = arith.constant 0 : index
    %75 = vector.load %arg4[%c0_31, %c0_32] : memref<1x1024xf32, #tpu.memory_space<vmem>>, vector<1x1024xf32>
    %76 = vector.broadcast %75 : vector<1x1024xf32> to vector<8x1024xf32>
    %77 = arith.addf %74, %76 : vector<8x1024xf32>
    %cst_33 = arith.constant 0.000000e+00 : f32
    %78 = vector.broadcast %cst_33 : f32 to vector<8x1024xf32>
    %79 = arith.maximumf %77, %78 : vector<8x1024xf32>
    %80 = arith.truncf %79 : vector<8x1024xf32> to vector<8x1024xbf16>
    %c0_34 = arith.constant 0 : index
    %c0_35 = arith.constant 0 : index
    %81 = vector.load %arg5[%c0_34, %c0_35] : memref<1024x128xbf16, #tpu.memory_space<vmem>>, vector<1024x128xbf16>
    %cst_36 = arith.constant dense<0.000000e+00> : vector<8x128xf32>
    %82 = tpu.matmul %80, %81, %cst_36 {dimension_numbers = #tpu.dot_dimension_numbers<[1], [0], [0], [1], [0, 0, 1, 1], [], []>} : vector<8x1024xbf16>, vector<1024x128xbf16>, vector<8x128xf32> -> vector<8x128xf32>
    %c0_37 = arith.constant 0 : index
    %c0_38 = arith.constant 0 : index
    %83 = vector.load %arg6[%c0_37, %c0_38] : memref<1x128xf32, #tpu.memory_space<vmem>>, vector<1x128xf32>
    %84 = vector.broadcast %83 : vector<1x128xf32> to vector<8x128xf32>
    %85 = arith.addf %82, %84 : vector<8x128xf32>
    %cst_39 = arith.constant 0.000000e+00 : f32
    %86 = vector.broadcast %cst_39 : f32 to vector<8x128xf32>
    %87 = arith.maximumf %85, %86 : vector<8x128xf32>
    %88 = arith.truncf %87 : vector<8x128xf32> to vector<8x128xbf16>
    %c0_40 = arith.constant 0 : index
    %c0_41 = arith.constant 0 : index
    %89 = vector.load %arg7[%c0_40, %c0_41] : memref<128x1024xbf16, #tpu.memory_space<vmem>>, vector<128x1024xbf16>
    %cst_42 = arith.constant dense<0.000000e+00> : vector<8x1024xf32>
    %90 = tpu.matmul %88, %89, %cst_42 {dimension_numbers = #tpu.dot_dimension_numbers<[1], [0], [0], [1], [0, 0, 1, 1], [], []>} : vector<8x128xbf16>, vector<128x1024xbf16>, vector<8x1024xf32> -> vector<8x1024xf32>
    %c0_43 = arith.constant 0 : index
    %c0_44 = arith.constant 0 : index
    %91 = vector.load %arg8[%c0_43, %c0_44] : memref<1x1024xf32, #tpu.memory_space<vmem>>, vector<1x1024xf32>
    %92 = vector.broadcast %91 : vector<1x1024xf32> to vector<8x1024xf32>
    %93 = arith.addf %90, %92 : vector<8x1024xf32>
    %cst_45 = arith.constant 0.000000e+00 : f32
    %94 = vector.broadcast %cst_45 : f32 to vector<8x1024xf32>
    %95 = arith.maximumf %93, %94 : vector<8x1024xf32>
    %96 = arith.truncf %95 : vector<8x1024xf32> to vector<8x1024xbf16>
    %c0_46 = arith.constant 0 : index
    %c0_47 = arith.constant 0 : index
    %97 = vector.load %arg9[%c0_46, %c0_47] : memref<1024x256xbf16, #tpu.memory_space<vmem>>, vector<1024x256xbf16>
    %cst_48 = arith.constant dense<0.000000e+00> : vector<8x256xf32>
    %98 = tpu.matmul %96, %97, %cst_48 {dimension_numbers = #tpu.dot_dimension_numbers<[1], [0], [0], [1], [0, 0, 1, 1], [], []>} : vector<8x1024xbf16>, vector<1024x256xbf16>, vector<8x256xf32> -> vector<8x256xf32>
    %c0_49 = arith.constant 0 : index
    %c0_50 = arith.constant 0 : index
    %99 = vector.load %arg10[%c0_49, %c0_50] : memref<1x256xf32, #tpu.memory_space<vmem>>, vector<1x256xf32>
    %100 = vector.broadcast %99 : vector<1x256xf32> to vector<8x256xf32>
    %101 = arith.addf %98, %100 : vector<8x256xf32>
    %cst_51 = arith.constant 0.000000e+00 : f32
    %102 = vector.broadcast %cst_51 : f32 to vector<8x256xf32>
    %103 = arith.subf %102, %101 : vector<8x256xf32>
    %104 = math.exp %103 : vector<8x256xf32>
    %cst_52 = arith.constant 1.000000e+00 : f32
    %105 = vector.broadcast %cst_52 : f32 to vector<8x256xf32>
    %106 = arith.addf %105, %104 : vector<8x256xf32>
    %cst_53 = arith.constant 1.000000e+00 : f32
    %107 = vector.broadcast %cst_53 : f32 to vector<8x256xf32>
    %108 = arith.divf %107, %106 : vector<8x256xf32>
    %c0_54 = arith.constant 0 : index
    %c0_55 = arith.constant 0 : index
    %109 = vector.load %arg11[%c0_54, %c0_55] : memref<8x256xf32, #tpu.memory_space<vmem>>, vector<8x256xf32>
    tpu.vector_store %arg11[%c0_54, %c0_55], %108 {strides = array<i32>} : memref<8x256xf32, #tpu.memory_space<vmem>>, vector<8x256xf32>,
    return
  }
  func.func @transform_0(%arg0: i32) -> (i32, i32, i32) {
    %c0_i32 = arith.constant 0 : i32
    %c0_i32_0 = arith.constant 0 : i32
    %c0_i32_1 = arith.constant 0 : i32
    return %c0_i32, %arg0, %c0_i32_0 : i32, i32, i32
  }
  func.func @transform_1(%arg0: i32) -> (i32, i32) {
    %c0_i32 = arith.constant 0 : i32
    %c0_i32_0 = arith.constant 0 : i32
    %c0_i32_1 = arith.constant 0 : i32
    return %c0_i32, %c0_i32_0 : i32, i32
  }
  func.func @transform_2(%arg0: i32) -> (i32, i32) {
    %c0_i32 = arith.constant 0 : i32
    %c0_i32_0 = arith.constant 0 : i32
    %c0_i32_1 = arith.constant 0 : i32
    return %c0_i32, %c0_i32_0 : i32, i32
  }
  func.func @transform_3(%arg0: i32) -> (i32, i32) {
    %c0_i32 = arith.constant 0 : i32
    %c0_i32_0 = arith.constant 0 : i32
    %c0_i32_1 = arith.constant 0 : i32
    return %c0_i32, %c0_i32_0 : i32, i32
  }
  func.func @transform_4(%arg0: i32) -> (i32, i32) {
    %c0_i32 = arith.constant 0 : i32
    %c0_i32_0 = arith.constant 0 : i32
    %c0_i32_1 = arith.constant 0 : i32
    return %c0_i32, %c0_i32_0 : i32, i32
  }
  func.func @transform_5(%arg0: i32) -> (i32, i32) {
    %c0_i32 = arith.constant 0 : i32
    %c0_i32_0 = arith.constant 0 : i32
    %c0_i32_1 = arith.constant 0 : i32
    return %c0_i32, %c0_i32_0 : i32, i32
  }
  func.func @transform_6(%arg0: i32) -> (i32, i32) {
    %c0_i32 = arith.constant 0 : i32
    %c0_i32_0 = arith.constant 0 : i32
    %c0_i32_1 = arith.constant 0 : i32
    return %c0_i32, %c0_i32_0 : i32, i32
  }
  func.func @transform_7(%arg0: i32) -> (i32, i32) {
    %c0_i32 = arith.constant 0 : i32
    %c0_i32_0 = arith.constant 0 : i32
    %c0_i32_1 = arith.constant 0 : i32
    return %c0_i32, %c0_i32_0 : i32, i32
  }
  func.func @transform_8(%arg0: i32) -> (i32, i32) {
    %c0_i32 = arith.constant 0 : i32
    %c0_i32_0 = arith.constant 0 : i32
    %c0_i32_1 = arith.constant 0 : i32
    return %c0_i32, %c0_i32_0 : i32, i32
  }
  func.func @transform_9(%arg0: i32) -> (i32, i32) {
    %c0_i32 = arith.constant 0 : i32
    %c0_i32_0 = arith.constant 0 : i32
    %c0_i32_1 = arith.constant 0 : i32
    return %c0_i32, %c0_i32_0 : i32, i32
  }
  func.func @transform_10(%arg0: i32) -> (i32, i32) {
    %c0_i32 = arith.constant 0 : i32
    %c0_i32_0 = arith.constant 0 : i32
    return %arg0, %c0_i32 : i32, i32
  }
}

</mosaic_0001>

<llo_original>
// kernel: autoencoder_forward.1
$region0: #{autoencoder_forward.1}
  #allocation0 [shape = 'u32[]', space=smem, size = 0x4, offset = 0x4, fixed_abs, tag = 'smem constant byte address 0x4 - core index']
  #allocation1 [shape = 'u32[72,128]{1,0:T(1,128)}', space=vmem, size = 0x9000, scoped, tag = 'internal scratch']
  %s0 = inlined_call_operand.vmem [shape: f32[9,8,64], index: 0, kind: input, shape index: {}]
  %s1 = inlined_call_operand.hbm [shape: bf16[64,1024], index: 1, kind: input, shape index: {}]
  %s2 = inlined_call_operand.vmem [shape: f32[9,1024], index: 2, kind: input, shape index: {}]
  %s3 = inlined_call_operand.vmem [shape: f32[1,1024], index: 3, kind: input, shape index: {}]
  %s4 = inlined_call_operand.vmem [shape: bf16[1024,128], index: 4, kind: input, shape index: {}]
  %s5 = inlined_call_operand.vmem [shape: f32[1,128], index: 5, kind: input, shape index: {}]
  %s6 = inlined_call_operand.hbm [shape: bf16[128,1024], index: 6, kind: input, shape index: {}]
  %s7 = inlined_call_operand.vmem [shape: f32[1,1024], index: 7, kind: input, shape index: {}]
  %s8 = inlined_call_operand.hbm [shape: bf16[1024,256], index: 8, kind: input, shape index: {}]
  %s9 = inlined_call_operand.vmem [shape: f32[1,256], index: 9, kind: input, shape index: {}]
  %s10 = inlined_call_operand.vmem [shape: f32[8,256], index: 10, kind: output, shape index: {}]
  %s11 = sld [smem:[#allocation0]]
  $region62: #{autoencoder_forward.1} parent=0
    _
  %s13 = ssub.s32 1, %s11
  %s14 = scalar_select 0, %s13, %s11
  $region1: #{autoencoder_forward.1} parent=0
    #allocation2 [shape = 'u8[131072]{0}', space=vmem, size = 0x20000, scoped, tag = 'input window, operand 1, single buffered']
    #allocation3 [shape = 's32[1]{0}', space=sflag, size = 0x4, scoped, tag = 'scoped memory for autoencoder_forward.1']
    #allocation4 [shape = 'u8[262144]{0}', space=vmem, size = 0x40000, scoped, tag = 'input window, operand 6, single buffered']
    #allocation5 [shape = 's32[1]{0}', space=sflag, size = 0x4, scoped, tag = 'scoped memory for autoencoder_forward.1']
    #allocation6 [shape = 'u8[524288]{0}', space=vmem, size = 0x80000, scoped, tag = 'input window, operand 8, single buffered']
    %15 = vsyncpa [#allocation3], 0
    %16 = vsyncpa [#allocation5], 0
    // Predicated region
    $region2: #{autoencoder_forward.1} parent=1 // pred_check
      _
    $region3: #{autoencoder_forward.1} parent=1 // pred_check_branch
      %18 = sbr.rel (0) target = $region5
    $region4: #{autoencoder_forward.1} parent=1 // pred_region
      _
    $region5: #{autoencoder_forward.1} parent=1 // pred_fallthru
      _
    // Predicated region
    $region6: #{autoencoder_forward.1} parent=1 // pred_check
      _
    $region7: #{autoencoder_forward.1} parent=1 // pred_check_branch
      %20 = sbr.rel (0) target = $region9
    $region8: #{autoencoder_forward.1} parent=1 // pred_region
      %22 = vsyncadd [#allocation3], 0
      %s23 = sshll.u32 %s1, 4
      %s24 = int_to_ptr.hbm [resolvable:$true] %s23
      %s25 = sshll.u32 [#allocation2], 4
      %s26 = int_to_ptr.vmem [resolvable:$true] %s25
      %31 = dma.hbm_to_vmem [thread:$0]  %s24, 4096, %s26, [#allocation3], 512, 512, 32
    $region9: #{autoencoder_forward.1} parent=1 // pred_fallthru
      _
    // Predicated region
    $region10: #{autoencoder_forward.1} parent=1 // pred_check
      _
    $region11: #{autoencoder_forward.1} parent=1 // pred_check_branch
      %33 = sbr.rel (0) target = $region13
    $region12: #{autoencoder_forward.1} parent=1 // pred_region
      _
    $region13: #{autoencoder_forward.1} parent=1 // pred_fallthru
      _
    // Predicated region
    $region14: #{autoencoder_forward.1} parent=1 // pred_check
      _
    $region15: #{autoencoder_forward.1} parent=1 // pred_check_branch
      %35 = sbr.rel (0) target = $region17
    $region16: #{autoencoder_forward.1} parent=1 // pred_region
      _
    $region17: #{autoencoder_forward.1} parent=1 // pred_fallthru
      _
    // Predicated region
    $region18: #{autoencoder_forward.1} parent=1 // pred_check
      _
    $region19: #{autoencoder_forward.1} parent=1 // pred_check_branch
      %37 = sbr.rel (0) target = $region21
    $region20: #{autoencoder_forward.1} parent=1 // pred_region
      _
    $region21: #{autoencoder_forward.1} parent=1 // pred_fallthru
      _
    // Predicated region
    $region22: #{autoencoder_forward.1} parent=1 // pred_check
      _
    $region23: #{autoencoder_forward.1} parent=1 // pred_check_branch
      %39 = sbr.rel (0) target = $region25
    $region24: #{autoencoder_forward.1} parent=1 // pred_region
      _
    $region25: #{autoencoder_forward.1} parent=1 // pred_fallthru
      _
    // Predicated region
    $region26: #{autoencoder_forward.1} parent=1 // pred_check
      _
    $region27: #{autoencoder_forward.1} parent=1 // pred_check_branch
      %41 = sbr.rel (0) target = $region29
    $region28: #{autoencoder_forward.1} parent=1 // pred_region
      %43 = vsyncadd [#allocation5], 0
      %s44 = sshll.u32 %s6, 4
      %s45 = int_to_ptr.hbm [resolvable:$true] %s44
      %s46 = sshll.u32 [#allocation4], 4
      %s47 = int_to_ptr.vmem [resolvable:$true] %s46
      %52 = dma.hbm_to_vmem [thread:$0]  %s45, 8192, %s47, [#allocation5], 512, 512, 32
    $region29: #{autoencoder_forward.1} parent=1 // pred_fallthru
      _
    // Predicated region
    $region30: #{autoencoder_forward.1} parent=1 // pred_check
      _
    $region31: #{autoencoder_forward.1} parent=1 // pred_check_branch
      %54 = sbr.rel (0) target = $region33
    $region32: #{autoencoder_forward.1} parent=1 // pred_region
      _
    $region33: #{autoencoder_forward.1} parent=1 // pred_fallthru
      _
    // Predicated region
    $region34: #{autoencoder_forward.1} parent=1 // pred_check
      _
    $region35: #{autoencoder_forward.1} parent=1 // pred_check_branch
      %56 = sbr.rel (0) target = $region37
    $region36: #{autoencoder_forward.1} parent=1 // pred_region
      %58 = vsyncadd [#allocation5], 0
      %s59 = sshll.u32 %s8, 4
      %s60 = int_to_ptr.hbm [resolvable:$true] %s59
      %s61 = sshll.u32 [#allocation6], 4
      %s62 = int_to_ptr.vmem [resolvable:$true] %s61
      %67 = dma.hbm_to_vmem [thread:$0]  %s60, 16384, %s62, [#allocation5], 128, 128, 8
    $region37: #{autoencoder_forward.1} parent=1 // pred_fallthru
      _
    // Predicated region
    $region38: #{autoencoder_forward.1} parent=1 // pred_check
      _
    $region39: #{autoencoder_forward.1} parent=1 // pred_check_branch
      %69 = sbr.rel (0) target = $region41
    $region40: #{autoencoder_forward.1} parent=1 // pred_region
      _
    $region41: #{autoencoder_forward.1} parent=1 // pred_fallthru
      _
    // Predicated region
    $region42: #{autoencoder_forward.1} parent=1 // pred_check
      _
    $region43: #{autoencoder_forward.1} parent=1 // pred_check_branch
      %71 = sbr.rel (0) target = $region45
    $region44: #{autoencoder_forward.1} parent=1 // pred_region
      %73 = dma.done [#allocation3], 4096
    $region45: #{autoencoder_forward.1} parent=1 // pred_fallthru
      _
    // Predicated region
    $region46: #{autoencoder_forward.1} parent=1 // pred_check
      _
    $region47: #{autoencoder_forward.1} parent=1 // pred_check_branch
      %75 = sbr.rel (0) target = $region49
    $region48: #{autoencoder_forward.1} parent=1 // pred_region
      %77 = dma.done [#allocation5], 8192
    $region49: #{autoencoder_forward.1} parent=1 // pred_fallthru
      _
    // Predicated region
    $region50: #{autoencoder_forward.1} parent=1 // pred_check
      _
    $region51: #{autoencoder_forward.1} parent=1 // pred_check_branch
      %79 = sbr.rel (0) target = $region53
    $region52: #{autoencoder_forward.1} parent=1 // pred_region
      %81 = dma.done [#allocation5], 16384
    $region53: #{autoencoder_forward.1} parent=1 // pred_fallthru
      _
    %v83 = vld [vmem:[#allocation2] sm:$0xff]
    %v84 = vld [vmem:[#allocation2 + $0x8] sm:$0xff]
    %v85 = vld [vmem:[#allocation2 + $0x10] sm:$0xff]
    %v86 = vld [vmem:[#allocation2 + $0x18] sm:$0xff]
    %v87 = vld [vmem:[#allocation2 + $0x20] sm:$0xff]
    %v88 = vld [vmem:[#allocation2 + $0x28] sm:$0xff]
    %v89 = vld [vmem:[#allocation2 + $0x30] sm:$0xff]
    %v90 = vld [vmem:[#allocation2 + $0x38] sm:$0xff]
    %v91 = vld [vmem:[#allocation2 + $0x40] sm:$0xff]
    %v92 = vld [vmem:[#allocation2 + $0x48] sm:$0xff]
    %v93 = vld [vmem:[#allocation2 + $0x50] sm:$0xff]
    %v94 = vld [vmem:[#allocation2 + $0x58] sm:$0xff]
    %v95 = vld [vmem:[#allocation2 + $0x60] sm:$0xff]
    %v96 = vld [vmem:[#allocation2 + $0x68] sm:$0xff]
    %v97 = vld [vmem:[#allocation2 + $0x70] sm:$0xff]
    %v98 = vld [vmem:[#allocation2 + $0x78] sm:$0xff]
    %v99 = vld [vmem:[#allocation2 + $0x80] sm:$0xff]
    %v100 = vld [vmem:[#allocation2 + $0x88] sm:$0xff]
    %v101 = vld [vmem:[#allocation2 + $0x90] sm:$0xff]
    %v102 = vld [vmem:[#allocation2 + $0x98] sm:$0xff]
    %v103 = vld [vmem:[#allocation2 + $0xa0] sm:$0xff]
    %v104 = vld [vmem:[#allocation2 + $0xa8] sm:$0xff]
    %v105 = vld [vmem:[#allocation2 + $0xb0] sm:$0xff]
    %v106 = vld [vmem:[#allocation2 + $0xb8] sm:$0xff]
    %v107 = vld [vmem:[#allocation2 + $0xc0] sm:$0xff]
    %v108 = vld [vmem:[#allocation2 + $0xc8] sm:$0xff]
    %v109 = vld [vmem:[#allocation2 + $0xd0] sm:$0xff]
    %v110 = vld [vmem:[#allocation2 + $0xd8] sm:$0xff]
    %v111 = vld [vmem:[#allocation2 + $0xe0] sm:$0xff]
    %v112 = vld [vmem:[#allocation2 + $0xe8] sm:$0xff]
    %v113 = vld [vmem:[#allocation2 + $0xf0] sm:$0xff]
    %v114 = vld [vmem:[#allocation2 + $0xf8] sm:$0xff]
    %v115 = vld [vmem:[%s2] sm:$0xff]
    %v116 = vld [vmem:[%s2 + $0x8] sm:$0xff]
    %v117 = vld [vmem:[%s2 + $0x10] sm:$0xff]
    %v118 = vld [vmem:[%s2 + $0x18] sm:$0xff]
    %v119 = vld [vmem:[%s2 + $0x20] sm:$0xff]
    %v120 = vld [vmem:[%s2 + $0x28] sm:$0xff]
    %v121 = vld [vmem:[%s2 + $0x30] sm:$0xff]
    %v122 = vld [vmem:[%s2 + $0x38] sm:$0xff]
    %v123 = vld [vmem:[%s2 + $0x40] sm:$0x1]
    %v124 = vld [vmem:[%s2 + $0x48] sm:$0x1]
    %v125 = vld [vmem:[%s2 + $0x50] sm:$0x1]
    %v126 = vld [vmem:[%s2 + $0x58] sm:$0x1]
    %v127 = vld [vmem:[%s2 + $0x60] sm:$0x1]
    %v128 = vld [vmem:[%s2 + $0x68] sm:$0x1]
    %v129 = vld [vmem:[%s2 + $0x70] sm:$0x1]
    %v130 = vld [vmem:[%s2 + $0x78] sm:$0x1]
    %v131 = vld [vmem:[%s0] sm:$0xff]
    %v132 = vpack.c.bf16 %v131, %v131
    %v165 = vunpack.c.l.b16 %v83
    %v166 = vunpack.c.h.b16 %v83
    %v167 = vunpack.c.l.b16 %v84
    %v168 = vunpack.c.h.b16 %v84
    %v169 = vunpack.c.l.b16 %v85
    %v170 = vunpack.c.h.b16 %v85
    %v171 = vunpack.c.l.b16 %v86
    %v172 = vunpack.c.h.b16 %v86
    %v173 = vunpack.c.l.b16 %v87
    %v174 = vunpack.c.h.b16 %v87
    %v175 = vunpack.c.l.b16 %v88
    %v176 = vunpack.c.h.b16 %v88
    %v177 = vunpack.c.l.b16 %v89
    %v178 = vunpack.c.h.b16 %v89
    %v179 = vunpack.c.l.b16 %v90
    %v180 = vunpack.c.h.b16 %v90
    %v181 = vunpack.c.l.b16 %v91
    %v182 = vunpack.c.h.b16 %v91
    %v183 = vunpack.c.l.b16 %v92
    %v184 = vunpack.c.h.b16 %v92
    %v185 = vunpack.c.l.b16 %v93
    %v186 = vunpack.c.h.b16 %v93
    %v187 = vunpack.c.l.b16 %v94
    %v188 = vunpack.c.h.b16 %v94
    %v189 = vunpack.c.l.b16 %v95
    %v190 = vunpack.c.h.b16 %v95
    %v191 = vunpack.c.l.b16 %v96
    %v192 = vunpack.c.h.b16 %v96
    %v193 = vunpack.c.l.b16 %v97
    %v194 = vunpack.c.h.b16 %v97
    %v195 = vunpack.c.l.b16 %v98
    %v196 = vunpack.c.h.b16 %v98
    %v197 = vunpack.c.l.b16 %v99
    %v198 = vunpack.c.h.b16 %v99
    %v199 = vunpack.c.l.b16 %v100
    %v200 = vunpack.c.h.b16 %v100
    %v201 = vunpack.c.l.b16 %v101
    %v202 = vunpack.c.h.b16 %v101
    %v203 = vunpack.c.l.b16 %v102
    %v204 = vunpack.c.h.b16 %v102
    %v205 = vunpack.c.l.b16 %v103
    %v206 = vunpack.c.h.b16 %v103
    %v207 = vunpack.c.l.b16 %v104
    %v208 = vunpack.c.h.b16 %v104
    %v209 = vunpack.c.l.b16 %v105
    %v210 = vunpack.c.h.b16 %v105
    %v211 = vunpack.c.l.b16 %v106
    %v212 = vunpack.c.h.b16 %v106
    %v213 = vunpack.c.l.b16 %v107
    %v214 = vunpack.c.h.b16 %v107
    %v215 = vunpack.c.l.b16 %v108
    %v216 = vunpack.c.h.b16 %v108
    %v217 = vunpack.c.l.b16 %v109
    %v218 = vunpack.c.h.b16 %v109
    %v219 = vunpack.c.l.b16 %v110
    %v220 = vunpack.c.h.b16 %v110
    %v221 = vunpack.c.l.b16 %v111
    %v222 = vunpack.c.h.b16 %v111
    %v223 = vunpack.c.l.b16 %v112
    %v224 = vunpack.c.h.b16 %v112
    %v225 = vunpack.c.l.b16 %v113
    %v226 = vunpack.c.h.b16 %v113
    %v227 = vunpack.c.l.b16 %v114
    %v228 = vunpack.c.h.b16 %v114
    %v229 = vpack.c.b16 %v173, %v165
    %v230 = vpack.c.b16 %v174, %v166
    %v231 = vpack.c.b16 %v175, %v167
    %v232 = vpack.c.b16 %v176, %v168
    %v233 = vpack.c.b16 %v177, %v169
    %v234 = vpack.c.b16 %v178, %v170
    %v235 = vpack.c.b16 %v179, %v171
    %v236 = vpack.c.b16 %v180, %v172
    %v237 = vpack.c.b16 %v189, %v181
    %v238 = vpack.c.b16 %v190, %v182
    %v239 = vpack.c.b16 %v191, %v183
    %v240 = vpack.c.b16 %v192, %v184
    %v241 = vpack.c.b16 %v193, %v185
    %v242 = vpack.c.b16 %v194, %v186
    %v243 = vpack.c.b16 %v195, %v187
    %v244 = vpack.c.b16 %v196, %v188
    %v245 = vpack.c.b16 %v205, %v197
    %v246 = vpack.c.b16 %v206, %v198
    %v247 = vpack.c.b16 %v207, %v199
    %v248 = vpack.c.b16 %v208, %v200
    %v249 = vpack.c.b16 %v209, %v201
    %v250 = vpack.c.b16 %v210, %v202
    %v251 = vpack.c.b16 %v211, %v203
    %v252 = vpack.c.b16 %v212, %v204
    %v253 = vpack.c.b16 %v221, %v213
    %v254 = vpack.c.b16 %v222, %v214
    %v255 = vpack.c.b16 %v223, %v215
    %v256 = vpack.c.b16 %v224, %v216
    %v257 = vpack.c.b16 %v225, %v217
    %v258 = vpack.c.b16 %v226, %v218
    %v259 = vpack.c.b16 %v227, %v219
    %v260 = vpack.c.b16 %v228, %v220
    %vm293 = vcmask 523264
    %v295 = vsel %vm293, %v132, 0
    %297 = vmatpush.bf16.msra.mxu0 0
    %298 = vmatpush.bf16.msra.mxu0 0
    %299 = vmatpush.bf16.msra.mxu0 0
    %300 = vmatpush.bf16.msra.mxu0 0
    %301 = vmatpush.bf16.msra.mxu0 %v253
    %302 = vmatpush.bf16.msra.mxu0 %v245
    %303 = vmatpush.bf16.msra.mxu0 %v237
    %304 = vmatpush.bf16.msra.mxu0 %v229
    %305 = vmatmul.bf16.gmra.mxu0 %v295
    %v306 = vpop.f32.mrf.mxu0
    %v307 = vadd.f32 0.0, %v306
    %v308 = vpop.f32.mrf.mxu0
    %309 = vdwg.mxu0
    %310 = vmatpush.bf16.msra.mxu0 0
    %311 = vmatpush.bf16.msra.mxu0 0
    %312 = vmatpush.bf16.msra.mxu0 0
    %313 = vmatpush.bf16.msra.mxu0 0
    %314 = vmatpush.bf16.msra.mxu0 %v254
    %315 = vmatpush.bf16.msra.mxu0 %v246
    %316 = vmatpush.bf16.msra.mxu0 %v238
    %317 = vmatpush.bf16.msra.mxu0 %v230
    %318 = vmatmul.bf16.gmra.mxu0 %v295
    %v319 = vpop.f32.mrf.mxu0
    %v320 = vadd.f32 0.0, %v319
    %v321 = vpop.f32.mrf.mxu0
    %322 = vdwg.mxu0
    %323 = vmatpush.bf16.msra.mxu0 0
    %324 = vmatpush.bf16.msra.mxu0 0
    %325 = vmatpush.bf16.msra.mxu0 0
    %326 = vmatpush.bf16.msra.mxu0 0
    %327 = vmatpush.bf16.msra.mxu0 %v255
    %328 = vmatpush.bf16.msra.mxu0 %v247
    %329 = vmatpush.bf16.msra.mxu0 %v239
    %330 = vmatpush.bf16.msra.mxu0 %v231
    %331 = vmatmul.bf16.gmra.mxu0 %v295
    %v332 = vpop.f32.mrf.mxu0
    %v333 = vadd.f32 0.0, %v332
    %v334 = vpop.f32.mrf.mxu0
    %335 = vdwg.mxu0
    %336 = vmatpush.bf16.msra.mxu0 0
    %337 = vmatpush.bf16.msra.mxu0 0
    %338 = vmatpush.bf16.msra.mxu0 0
    %339 = vmatpush.bf16.msra.mxu0 0
    %340 = vmatpush.bf16.msra.mxu0 %v256
    %341 = vmatpush.bf16.msra.mxu0 %v248
    %342 = vmatpush.bf16.msra.mxu0 %v240
    %343 = vmatpush.bf16.msra.mxu0 %v232
    %344 = vmatmul.bf16.gmra.mxu0 %v295
    %v345 = vpop.f32.mrf.mxu0
    %v346 = vadd.f32 0.0, %v345
    %v347 = vpop.f32.mrf.mxu0
    %348 = vdwg.mxu0
    %349 = vmatpush.bf16.msra.mxu0 0
    %350 = vmatpush.bf16.msra.mxu0 0
    %351 = vmatpush.bf16.msra.mxu0 0
    %352 = vmatpush.bf16.msra.mxu0 0
    %353 = vmatpush.bf16.msra.mxu0 %v257
    %354 = vmatpush.bf16.msra.mxu0 %v249
    %355 = vmatpush.bf16.msra.mxu0 %v241
    %356 = vmatpush.bf16.msra.mxu0 %v233
    %357 = vmatmul.bf16.gmra.mxu0 %v295
    %v358 = vpop.f32.mrf.mxu0
    %v359 = vadd.f32 0.0, %v358
    %v360 = vpop.f32.mrf.mxu0
    %361 = vdwg.mxu0
    %362 = vmatpush.bf16.msra.mxu0 0
    %363 = vmatpush.bf16.msra.mxu0 0
    %364 = vmatpush.bf16.msra.mxu0 0
    %365 = vmatpush.bf16.msra.mxu0 0
    %366 = vmatpush.bf16.msra.mxu0 %v258
    %367 = vmatpush.bf16.msra.mxu0 %v250
    %368 = vmatpush.bf16.msra.mxu0 %v242
    %369 = vmatpush.bf16.msra.mxu0 %v234
    %370 = vmatmul.bf16.gmra.mxu0 %v295
    %v371 = vpop.f32.mrf.mxu0
    %v372 = vadd.f32 0.0, %v371
    %v373 = vpop.f32.mrf.mxu0
    %374 = vdwg.mxu0
    %375 = vmatpush.bf16.msra.mxu0 0
    %376 = vmatpush.bf16.msra.mxu0 0
    %377 = vmatpush.bf16.msra.mxu0 0
    %378 = vmatpush.bf16.msra.mxu0 0
    %379 = vmatpush.bf16.msra.mxu0 %v259
    %380 = vmatpush.bf16.msra.mxu0 %v251
    %381 = vmatpush.bf16.msra.mxu0 %v243
    %382 = vmatpush.bf16.msra.mxu0 %v235
    %383 = vmatmul.bf16.gmra.mxu0 %v295
    %v384 = vpop.f32.mrf.mxu0
    %v385 = vadd.f32 0.0, %v384
    %v386 = vpop.f32.mrf.mxu0
    %387 = vdwg.mxu0
    %388 = vmatpush.bf16.msra.mxu0 0
    %389 = vmatpush.bf16.msra.mxu0 0
    %390 = vmatpush.bf16.msra.mxu0 0
    %391 = vmatpush.bf16.msra.mxu0 0
    %392 = vmatpush.bf16.msra.mxu0 %v260
    %393 = vmatpush.bf16.msra.mxu0 %v252
    %394 = vmatpush.bf16.msra.mxu0 %v244
    %395 = vmatpush.bf16.msra.mxu0 %v236
    %396 = vmatmul.bf16.gmra.mxu0 %v295
    %v397 = vpop.f32.mrf.mxu0
    %v398 = vadd.f32 0.0, %v397
    %v399 = vpop.f32.mrf.mxu0
    %400 = vdwg.mxu0
    %v401 = vperm.slane %v115, 0
    %v402 = vperm.slane %v116, 0
    %v403 = vperm.slane %v117, 0
    %v404 = vperm.slane %v118, 0
    %v405 = vperm.slane %v119, 0
    %v406 = vperm.slane %v120, 0
    %v407 = vperm.slane %v121, 0
    %v408 = vperm.slane %v122, 0
    %v409 = vmul.f32 %v307, %v401
    %v410 = vmul.f32 %v320, %v402
    %v411 = vmul.f32 %v333, %v403
    %v412 = vmul.f32 %v346, %v404
    %v413 = vmul.f32 %v359, %v405
    %v414 = vmul.f32 %v372, %v406
    %v415 = vmul.f32 %v385, %v407
    %v416 = vmul.f32 %v398, %v408
    %v417 = vadd.f32 %v409, 0.0
    %v418 = vadd.f32 %v410, 0.0
    %v419 = vadd.f32 %v411, 0.0
    %v420 = vadd.f32 %v412, 0.0
    %v421 = vadd.f32 %v413, 0.0
    %v422 = vadd.f32 %v414, 0.0
    %v423 = vadd.f32 %v415, 0.0
    %v424 = vadd.f32 %v416, 0.0
    %s425 = scalar_lea.vmem %s0, 8
    %v426 = vld [vmem:[%s425] sm:$0xff]
    %v427 = vpack.c.bf16 %v426, %v426
    %v429 = vsel %vm293, %v427, 0
    %431 = vmatpush.bf16.msra.mxu0 0
    %432 = vmatpush.bf16.msra.mxu0 0
    %433 = vmatpush.bf16.msra.mxu0 0
    %434 = vmatpush.bf16.msra.mxu0 0
    %435 = vmatpush.bf16.msra.mxu0 %v253
    %436 = vmatpush.bf16.msra.mxu0 %v245
    %437 = vmatpush.bf16.msra.mxu0 %v237
    %438 = vmatpush.bf16.msra.mxu0 %v229
    %439 = vmatmul.bf16.gmra.mxu0 %v429
    %v440 = vpop.f32.mrf.mxu0
    %v441 = vadd.f32 0.0, %v440
    %v442 = vpop.f32.mrf.mxu0
    %443 = vdwg.mxu0
    %444 = vmatpush.bf16.msra.mxu0 0
    %445 = vmatpush.bf16.msra.mxu0 0
    %446 = vmatpush.bf16.msra.mxu0 0
    %447 = vmatpush.bf16.msra.mxu0 0
    %448 = vmatpush.bf16.msra.mxu0 %v254
    %449 = vmatpush.bf16.msra.mxu0 %v246
    %450 = vmatpush.bf16.msra.mxu0 %v238
    %451 = vmatpush.bf16.msra.mxu0 %v230
    %452 = vmatmul.bf16.gmra.mxu0 %v429
    %v453 = vpop.f32.mrf.mxu0
    %v454 = vadd.f32 0.0, %v453
    %v455 = vpop.f32.mrf.mxu0
    %456 = vdwg.mxu0
    %457 = vmatpush.bf16.msra.mxu0 0
    %458 = vmatpush.bf16.msra.mxu0 0
    %459 = vmatpush.bf16.msra.mxu0 0
    %460 = vmatpush.bf16.msra.mxu0 0
    %461 = vmatpush.bf16.msra.mxu0 %v255
    %462 = vmatpush.bf16.msra.mxu0 %v247
    %463 = vmatpush.bf16.msra.mxu0 %v239
    %464 = vmatpush.bf16.msra.mxu0 %v231
    %465 = vmatmul.bf16.gmra.mxu0 %v429
    %v466 = vpop.f32.mrf.mxu0
    %v467 = vadd.f32 0.0, %v466
    %v468 = vpop.f32.mrf.mxu0
    %469 = vdwg.mxu0
    %470 = vmatpush.bf16.msra.mxu0 0
    %471 = vmatpush.bf16.msra.mxu0 0
    %472 = vmatpush.bf16.msra.mxu0 0
    %473 = vmatpush.bf16.msra.mxu0 0
    %474 = vmatpush.bf16.msra.mxu0 %v256
    %475 = vmatpush.bf16.msra.mxu0 %v248
    %476 = vmatpush.bf16.msra.mxu0 %v240
    %477 = vmatpush.bf16.msra.mxu0 %v232
    %478 = vmatmul.bf16.gmra.mxu0 %v429
    %v479 = vpop.f32.mrf.mxu0
    %v480 = vadd.f32 0.0, %v479
    %v481 = vpop.f32.mrf.mxu0
    %482 = vdwg.mxu0
    %483 = vmatpush.bf16.msra.mxu0 0
    %484 = vmatpush.bf16.msra.mxu0 0
    %485 = vmatpush.bf16.msra.mxu0 0
    %486 = vmatpush.bf16.msra.mxu0 0
    %487 = vmatpush.bf16.msra.mxu0 %v257
    %488 = vmatpush.bf16.msra.mxu0 %v249
    %489 = vmatpush.bf16.msra.mxu0 %v241
    %490 = vmatpush.bf16.msra.mxu0 %v233
    %491 = vmatmul.bf16.gmra.mxu0 %v429
    %v492 = vpop.f32.mrf.mxu0
    %v493 = vadd.f32 0.0, %v492
    %v494 = vpop.f32.mrf.mxu0
    %495 = vdwg.mxu0
    %496 = vmatpush.bf16.msra.mxu0 0
    %497 = vmatpush.bf16.msra.mxu0 0
    %498 = vmatpush.bf16.msra.mxu0 0
    %499 = vmatpush.bf16.msra.mxu0 0
    %500 = vmatpush.bf16.msra.mxu0 %v258
    %501 = vmatpush.bf16.msra.mxu0 %v250
    %502 = vmatpush.bf16.msra.mxu0 %v242
    %503 = vmatpush.bf16.msra.mxu0 %v234
    %504 = vmatmul.bf16.gmra.mxu0 %v429
    %v505 = vpop.f32.mrf.mxu0
    %v506 = vadd.f32 0.0, %v505
    %v507 = vpop.f32.mrf.mxu0
    %508 = vdwg.mxu0
    %509 = vmatpush.bf16.msra.mxu0 0
    %510 = vmatpush.bf16.msra.mxu0 0
    %511 = vmatpush.bf16.msra.mxu0 0
    %512 = vmatpush.bf16.msra.mxu0 0
    %513 = vmatpush.bf16.msra.mxu0 %v259
    %514 = vmatpush.bf16.msra.mxu0 %v251
    %515 = vmatpush.bf16.msra.mxu0 %v243
    %516 = vmatpush.bf16.msra.mxu0 %v235
    %517 = vmatmul.bf16.gmra.mxu0 %v429
    %v518 = vpop.f32.mrf.mxu0
    %v519 = vadd.f32 0.0, %v518
    %v520 = vpop.f32.mrf.mxu0
    %521 = vdwg.mxu0
    %522 = vmatpush.bf16.msra.mxu0 0
    %523 = vmatpush.bf16.msra.mxu0 0
    %524 = vmatpush.bf16.msra.mxu0 0
    %525 = vmatpush.bf16.msra.mxu0 0
    %526 = vmatpush.bf16.msra.mxu0 %v260
    %527 = vmatpush.bf16.msra.mxu0 %v252
    %528 = vmatpush.bf16.msra.mxu0 %v244
    %529 = vmatpush.bf16.msra.mxu0 %v236
    %530 = vmatmul.bf16.gmra.mxu0 %v429
    %v531 = vpop.f32.mrf.mxu0
    %v532 = vadd.f32 0.0, %v531
    %v533 = vpop.f32.mrf.mxu0
    %534 = vdwg.mxu0
    %v535 = vperm.slane %v115, 1
    %v536 = vperm.slane %v116, 1
    %v537 = vperm.slane %v117, 1
    %v538 = vperm.slane %v118, 1
    %v539 = vperm.slane %v119, 1
    %v540 = vperm.slane %v120, 1
    %v541 = vperm.slane %v121, 1
    %v542 = vperm.slane %v122, 1
    %v543 = vmul.f32 %v441, %v535
    %v544 = vmul.f32 %v454, %v536
    %v545 = vmul.f32 %v467, %v537
    %v546 = vmul.f32 %v480, %v538
    %v547 = vmul.f32 %v493, %v539
    %v548 = vmul.f32 %v506, %v540
    %v549 = vmul.f32 %v519, %v541
    %v550 = vmul.f32 %v532, %v542
    %v551 = vadd.f32 %v417, %v543
    %v552 = vadd.f32 %v418, %v544
    %v553 = vadd.f32 %v419, %v545
    %v554 = vadd.f32 %v420, %v546
    %v555 = vadd.f32 %v421, %v547
    %v556 = vadd.f32 %v422, %v548
    %v557 = vadd.f32 %v423, %v549
    %v558 = vadd.f32 %v424, %v550
    %s559 = scalar_lea.vmem %s0, 16
    %v560 = vld [vmem:[%s559] sm:$0xff]
    %v561 = vpack.c.bf16 %v560, %v560
    %v563 = vsel %vm293, %v561, 0
    %565 = vmatpush.bf16.msra.mxu0 0
    %566 = vmatpush.bf16.msra.mxu0 0
    %567 = vmatpush.bf16.msra.mxu0 0
    %568 = vmatpush.bf16.msra.mxu0 0
    %569 = vmatpush.bf16.msra.mxu0 %v253
    %570 = vmatpush.bf16.msra.mxu0 %v245
    %571 = vmatpush.bf16.msra.mxu0 %v237
    %572 = vmatpush.bf16.msra.mxu0 %v229
    %573 = vmatmul.bf16.gmra.mxu0 %v563
    %v574 = vpop.f32.mrf.mxu0
    %v575 = vadd.f32 0.0, %v574
    %v576 = vpop.f32.mrf.mxu0
    %577 = vdwg.mxu0
    %578 = vmatpush.bf16.msra.mxu0 0
    %579 = vmatpush.bf16.msra.mxu0 0
    %580 = vmatpush.bf16.msra.mxu0 0
    %581 = vmatpush.bf16.msra.mxu0 0
    %582 = vmatpush.bf16.msra.mxu0 %v254
    %583 = vmatpush.bf16.msra.mxu0 %v246
    %584 = vmatpush.bf16.msra.mxu0 %v238
    %585 = vmatpush.bf16.msra.mxu0 %v230
    %586 = vmatmul.bf16.gmra.mxu0 %v563
    %v587 = vpop.f32.mrf.mxu0
    %v588 = vadd.f32 0.0, %v587
    %v589 = vpop.f32.mrf.mxu0
    %590 = vdwg.mxu0
    %591 = vmatpush.bf16.msra.mxu0 0
    %592 = vmatpush.bf16.msra.mxu0 0
    %593 = vmatpush.bf16.msra.mxu0 0
    %594 = vmatpush.bf16.msra.mxu0 0
    %595 = vmatpush.bf16.msra.mxu0 %v255
    %596 = vmatpush.bf16.msra.mxu0 %v247
    %597 = vmatpush.bf16.msra.mxu0 %v239
    %598 = vmatpush.bf16.msra.mxu0 %v231
    %599 = vmatmul.bf16.gmra.mxu0 %v563
    %v600 = vpop.f32.mrf.mxu0
    %v601 = vadd.f32 0.0, %v600
    %v602 = vpop.f32.mrf.mxu0
    %603 = vdwg.mxu0
    %604 = vmatpush.bf16.msra.mxu0 0
    %605 = vmatpush.bf16.msra.mxu0 0
    %606 = vmatpush.bf16.msra.mxu0 0
    %607 = vmatpush.bf16.msra.mxu0 0
    %608 = vmatpush.bf16.msra.mxu0 %v256
    %609 = vmatpush.bf16.msra.mxu0 %v248
    %610 = vmatpush.bf16.msra.mxu0 %v240
    %611 = vmatpush.bf16.msra.mxu0 %v232
    %612 = vmatmul.bf16.gmra.mxu0 %v563
    %v613 = vpop.f32.mrf.mxu0
    %v614 = vadd.f32 0.0, %v613
    %v615 = vpop.f32.mrf.mxu0
    %616 = vdwg.mxu0
    %617 = vmatpush.bf16.msra.mxu0 0
    %618 = vmatpush.bf16.msra.mxu0 0
    %619 = vmatpush.bf16.msra.mxu0 0
    %620 = vmatpush.bf16.msra.mxu0 0
    %621 = vmatpush.bf16.msra.mxu0 %v257
    %622 = vmatpush.bf16.msra.mxu0 %v249
    %623 = vmatpush.bf16.msra.mxu0 %v241
    %624 = vmatpush.bf16.msra.mxu0 %v233
    %625 = vmatmul.bf16.gmra.mxu0 %v563
    %v626 = vpop.f32.mrf.mxu0
    %v627 = vadd.f32 0.0, %v626
    %v628 = vpop.f32.mrf.mxu0
    %629 = vdwg.mxu0
    %630 = vmatpush.bf16.msra.mxu0 0
    %631 = vmatpush.bf16.msra.mxu0 0
    %632 = vmatpush.bf16.msra.mxu0 0
    %633 = vmatpush.bf16.msra.mxu0 0
    %634 = vmatpush.bf16.msra.mxu0 %v258
    %635 = vmatpush.bf16.msra.mxu0 %v250
    %636 = vmatpush.bf16.msra.mxu0 %v242
    %637 = vmatpush.bf16.msra.mxu0 %v234
    %638 = vmatmul.bf16.gmra.mxu0 %v563
    %v639 = vpop.f32.mrf.mxu0
    %v640 = vadd.f32 0.0, %v639
    %v641 = vpop.f32.mrf.mxu0
    %642 = vdwg.mxu0
    %643 = vmatpush.bf16.msra.mxu0 0
    %644 = vmatpush.bf16.msra.mxu0 0
    %645 = vmatpush.bf16.msra.mxu0 0
    %646 = vmatpush.bf16.msra.mxu0 0
    %647 = vmatpush.bf16.msra.mxu0 %v259
    %648 = vmatpush.bf16.msra.mxu0 %v251
    %649 = vmatpush.bf16.msra.mxu0 %v243
    %650 = vmatpush.bf16.msra.mxu0 %v235
    %651 = vmatmul.bf16.gmra.mxu0 %v563
    %v652 = vpop.f32.mrf.mxu0
    %v653 = vadd.f32 0.0, %v652
    %v654 = vpop.f32.mrf.mxu0
    %655 = vdwg.mxu0
    %656 = vmatpush.bf16.msra.mxu0 0
    %657 = vmatpush.bf16.msra.mxu0 0
    %658 = vmatpush.bf16.msra.mxu0 0
    %659 = vmatpush.bf16.msra.mxu0 0
    %660 = vmatpush.bf16.msra.mxu0 %v260
    %661 = vmatpush.bf16.msra.mxu0 %v252
    %662 = vmatpush.bf16.msra.mxu0 %v244
    %663 = vmatpush.bf16.msra.mxu0 %v236
    %664 = vmatmul.bf16.gmra.mxu0 %v563
    %v665 = vpop.f32.mrf.mxu0
    %v666 = vadd.f32 0.0, %v665
    %v667 = vpop.f32.mrf.mxu0
    %668 = vdwg.mxu0
    %v669 = vperm.slane %v115, 2
    %v670 = vperm.slane %v116, 2
    %v671 = vperm.slane %v117, 2
    %v672 = vperm.slane %v118, 2
    %v673 = vperm.slane %v119, 2
    %v674 = vperm.slane %v120, 2
    %v675 = vperm.slane %v121, 2
    %v676 = vperm.slane %v122, 2
    %v677 = vmul.f32 %v575, %v669
    %v678 = vmul.f32 %v588, %v670
    %v679 = vmul.f32 %v601, %v671
    %v680 = vmul.f32 %v614, %v672
    %v681 = vmul.f32 %v627, %v673
    %v682 = vmul.f32 %v640, %v674
    %v683 = vmul.f32 %v653, %v675
    %v684 = vmul.f32 %v666, %v676
    %v685 = vadd.f32 %v551, %v677
    %v686 = vadd.f32 %v552, %v678
    %v687 = vadd.f32 %v553, %v679
    %v688 = vadd.f32 %v554, %v680
    %v689 = vadd.f32 %v555, %v681
    %v690 = vadd.f32 %v556, %v682
    %v691 = vadd.f32 %v557, %v683
    %v692 = vadd.f32 %v558, %v684
    %s693 = scalar_lea.vmem %s0, 24
    %v694 = vld [vmem:[%s693] sm:$0xff]
    %v695 = vpack.c.bf16 %v694, %v694
    %v697 = vsel %vm293, %v695, 0
    %699 = vmatpush.bf16.msra.mxu0 0
    %700 = vmatpush.bf16.msra.mxu0 0
    %701 = vmatpush.bf16.msra.mxu0 0
    %702 = vmatpush.bf16.msra.mxu0 0
    %703 = vmatpush.bf16.msra.mxu0 %v253
    %704 = vmatpush.bf16.msra.mxu0 %v245
    %705 = vmatpush.bf16.msra.mxu0 %v237
    %706 = vmatpush.bf16.msra.mxu0 %v229
    %707 = vmatmul.bf16.gmra.mxu0 %v697
    %v708 = vpop.f32.mrf.mxu0
    %v709 = vadd.f32 0.0, %v708
    %v710 = vpop.f32.mrf.mxu0
    %711 = vdwg.mxu0
    %712 = vmatpush.bf16.msra.mxu0 0
    %713 = vmatpush.bf16.msra.mxu0 0
    %714 = vmatpush.bf16.msra.mxu0 0
    %715 = vmatpush.bf16.msra.mxu0 0
    %716 = vmatpush.bf16.msra.mxu0 %v254
    %717 = vmatpush.bf16.msra.mxu0 %v246
    %718 = vmatpush.bf16.msra.mxu0 %v238
    %719 = vmatpush.bf16.msra.mxu0 %v230
    %720 = vmatmul.bf16.gmra.mxu0 %v697
    %v721 = vpop.f32.mrf.mxu0
    %v722 = vadd.f32 0.0, %v721
    %v723 = vpop.f32.mrf.mxu0
    %724 = vdwg.mxu0
    %725 = vmatpush.bf16.msra.mxu0 0
    %726 = vmatpush.bf16.msra.mxu0 0
    %727 = vmatpush.bf16.msra.mxu0 0
    %728 = vmatpush.bf16.msra.mxu0 0
    %729 = vmatpush.bf16.msra.mxu0 %v255
    %730 = vmatpush.bf16.msra.mxu0 %v247
    %731 = vmatpush.bf16.msra.mxu0 %v239
    %732 = vmatpush.bf16.msra.mxu0 %v231
    %733 = vmatmul.bf16.gmra.mxu0 %v697
    %v734 = vpop.f32.mrf.mxu0
    %v735 = vadd.f32 0.0, %v734
    %v736 = vpop.f32.mrf.mxu0
    %737 = vdwg.mxu0
    %738 = vmatpush.bf16.msra.mxu0 0
    %739 = vmatpush.bf16.msra.mxu0 0
    %740 = vmatpush.bf16.msra.mxu0 0
    %741 = vmatpush.bf16.msra.mxu0 0
    %742 = vmatpush.bf16.msra.mxu0 %v256
    %743 = vmatpush.bf16.msra.mxu0 %v248
    %744 = vmatpush.bf16.msra.mxu0 %v240
    %745 = vmatpush.bf16.msra.mxu0 %v232
    %746 = vmatmul.bf16.gmra.mxu0 %v697
    %v747 = vpop.f32.mrf.mxu0
    %v748 = vadd.f32 0.0, %v747
    %v749 = vpop.f32.mrf.mxu0
    %750 = vdwg.mxu0
    %751 = vmatpush.bf16.msra.mxu0 0
    %752 = vmatpush.bf16.msra.mxu0 0
    %753 = vmatpush.bf16.msra.mxu0 0
    %754 = vmatpush.bf16.msra.mxu0 0
    %755 = vmatpush.bf16.msra.mxu0 %v257
    %756 = vmatpush.bf16.msra.mxu0 %v249
    %757 = vmatpush.bf16.msra.mxu0 %v241
    %758 = vmatpush.bf16.msra.mxu0 %v233
    %759 = vmatmul.bf16.gmra.mxu0 %v697
    %v760 = vpop.f32.mrf.mxu0
    %v761 = vadd.f32 0.0, %v760
    %v762 = vpop.f32.mrf.mxu0
    %763 = vdwg.mxu0
    %764 = vmatpush.bf16.msra.mxu0 0
    %765 = vmatpush.bf16.msra.mxu0 0
    %766 = vmatpush.bf16.msra.mxu0 0
    %767 = vmatpush.bf16.msra.mxu0 0
    %768 = vmatpush.bf16.msra.mxu0 %v258
    %769 = vmatpush.bf16.msra.mxu0 %v250
    %770 = vmatpush.bf16.msra.mxu0 %v242
    %771 = vmatpush.bf16.msra.mxu0 %v234
    %772 = vmatmul.bf16.gmra.mxu0 %v697
    %v773 = vpop.f32.mrf.mxu0
    %v774 = vadd.f32 0.0, %v773
    %v775 = vpop.f32.mrf.mxu0
    %776 = vdwg.mxu0
    %777 = vmatpush.bf16.msra.mxu0 0
    %778 = vmatpush.bf16.msra.mxu0 0
    %779 = vmatpush.bf16.msra.mxu0 0
    %780 = vmatpush.bf16.msra.mxu0 0
    %781 = vmatpush.bf16.msra.mxu0 %v259
    %782 = vmatpush.bf16.msra.mxu0 %v251
    %783 = vmatpush.bf16.msra.mxu0 %v243
    %784 = vmatpush.bf16.msra.mxu0 %v235
    %785 = vmatmul.bf16.gmra.mxu0 %v697
    %v786 = vpop.f32.mrf.mxu0
    %v787 = vadd.f32 0.0, %v786
    %v788 = vpop.f32.mrf.mxu0
    %789 = vdwg.mxu0
    %790 = vmatpush.bf16.msra.mxu0 0
    %791 = vmatpush.bf16.msra.mxu0 0
    %792 = vmatpush.bf16.msra.mxu0 0
    %793 = vmatpush.bf16.msra.mxu0 0
    %794 = vmatpush.bf16.msra.mxu0 %v260
    %795 = vmatpush.bf16.msra.mxu0 %v252
    %796 = vmatpush.bf16.msra.mxu0 %v244
    %797 = vmatpush.bf16.msra.mxu0 %v236
    %798 = vmatmul.bf16.gmra.mxu0 %v697
    %v799 = vpop.f32.mrf.mxu0
    %v800 = vadd.f32 0.0, %v799
    %v801 = vpop.f32.mrf.mxu0
    %802 = vdwg.mxu0
    %v803 = vperm.slane %v115, 3
    %v804 = vperm.slane %v116, 3
    %v805 = vperm.slane %v117, 3
    %v806 = vperm.slane %v118, 3
    %v807 = vperm.slane %v119, 3
    %v808 = vperm.slane %v120, 3
    %v809 = vperm.slane %v121, 3
    %v810 = vperm.slane %v122, 3
    %v811 = vmul.f32 %v709, %v803
    %v812 = vmul.f32 %v722, %v804
    %v813 = vmul.f32 %v735, %v805
    %v814 = vmul.f32 %v748, %v806
    %v815 = vmul.f32 %v761, %v807
    %v816 = vmul.f32 %v774, %v808
    %v817 = vmul.f32 %v787, %v809
    %v818 = vmul.f32 %v800, %v810
    %v819 = vadd.f32 %v685, %v811
    %v820 = vadd.f32 %v686, %v812
    %v821 = vadd.f32 %v687, %v813
    %v822 = vadd.f32 %v688, %v814
    %v823 = vadd.f32 %v689, %v815
    %v824 = vadd.f32 %v690, %v816
    %v825 = vadd.f32 %v691, %v817
    %v826 = vadd.f32 %v692, %v818
    %s827 = scalar_lea.vmem %s0, 32
    %v828 = vld [vmem:[%s827] sm:$0xff]
    %v829 = vpack.c.bf16 %v828, %v828
    %v831 = vsel %vm293, %v829, 0
    %833 = vmatpush.bf16.msra.mxu0 0
    %834 = vmatpush.bf16.msra.mxu0 0
    %835 = vmatpush.bf16.msra.mxu0 0
    %836 = vmatpush.bf16.msra.mxu0 0
    %837 = vmatpush.bf16.msra.mxu0 %v253
    %838 = vmatpush.bf16.msra.mxu0 %v245
    %839 = vmatpush.bf16.msra.mxu0 %v237
    %840 = vmatpush.bf16.msra.mxu0 %v229
    %841 = vmatmul.bf16.gmra.mxu0 %v831
    %v842 = vpop.f32.mrf.mxu0
    %v843 = vadd.f32 0.0, %v842
    %v844 = vpop.f32.mrf.mxu0
    %845 = vdwg.mxu0
    %846 = vmatpush.bf16.msra.mxu0 0
    %847 = vmatpush.bf16.msra.mxu0 0
    %848 = vmatpush.bf16.msra.mxu0 0
    %849 = vmatpush.bf16.msra.mxu0 0
    %850 = vmatpush.bf16.msra.mxu0 %v254
    %851 = vmatpush.bf16.msra.mxu0 %v246
    %852 = vmatpush.bf16.msra.mxu0 %v238
    %853 = vmatpush.bf16.msra.mxu0 %v230
    %854 = vmatmul.bf16.gmra.mxu0 %v831
    %v855 = vpop.f32.mrf.mxu0
    %v856 = vadd.f32 0.0, %v855
    %v857 = vpop.f32.mrf.mxu0
    %858 = vdwg.mxu0
    %859 = vmatpush.bf16.msra.mxu0 0
    %860 = vmatpush.bf16.msra.mxu0 0
    %861 = vmatpush.bf16.msra.mxu0 0
    %862 = vmatpush.bf16.msra.mxu0 0
    %863 = vmatpush.bf16.msra.mxu0 %v255
    %864 = vmatpush.bf16.msra.mxu0 %v247
    %865 = vmatpush.bf16.msra.mxu0 %v239
    %866 = vmatpush.bf16.msra.mxu0 %v231
    %867 = vmatmul.bf16.gmra.mxu0 %v831
    %v868 = vpop.f32.mrf.mxu0
    %v869 = vadd.f32 0.0, %v868
    %v870 = vpop.f32.mrf.mxu0
    %871 = vdwg.mxu0
    %872 = vmatpush.bf16.msra.mxu0 0
    %873 = vmatpush.bf16.msra.mxu0 0
    %874 = vmatpush.bf16.msra.mxu0 0
    %875 = vmatpush.bf16.msra.mxu0 0
    %876 = vmatpush.bf16.msra.mxu0 %v256
    %877 = vmatpush.bf16.msra.mxu0 %v248
    %878 = vmatpush.bf16.msra.mxu0 %v240
    %879 = vmatpush.bf16.msra.mxu0 %v232
    %880 = vmatmul.bf16.gmra.mxu0 %v831
    %v881 = vpop.f32.mrf.mxu0
    %v882 = vadd.f32 0.0, %v881
    %v883 = vpop.f32.mrf.mxu0
    %884 = vdwg.mxu0
    %885 = vmatpush.bf16.msra.mxu0 0
    %886 = vmatpush.bf16.msra.mxu0 0
    %887 = vmatpush.bf16.msra.mxu0 0
    %888 = vmatpush.bf16.msra.mxu0 0
    %889 = vmatpush.bf16.msra.mxu0 %v257
    %890 = vmatpush.bf16.msra.mxu0 %v249
    %891 = vmatpush.bf16.msra.mxu0 %v241
    %892 = vmatpush.bf16.msra.mxu0 %v233
    %893 = vmatmul.bf16.gmra.mxu0 %v831
    %v894 = vpop.f32.mrf.mxu0
    %v895 = vadd.f32 0.0, %v894
    %v896 = vpop.f32.mrf.mxu0
    %897 = vdwg.mxu0
    %898 = vmatpush.bf16.msra.mxu0 0
    %899 = vmatpush.bf16.msra.mxu0 0
    %900 = vmatpush.bf16.msra.mxu0 0
    %901 = vmatpush.bf16.msra.mxu0 0
    %902 = vmatpush.bf16.msra.mxu0 %v258
    %903 = vmatpush.bf16.msra.mxu0 %v250
    %904 = vmatpush.bf16.msra.mxu0 %v242
    %905 = vmatpush.bf16.msra.mxu0 %v234
    %906 = vmatmul.bf16.gmra.mxu0 %v831
    %v907 = vpop.f32.mrf.mxu0
    %v908 = vadd.f32 0.0, %v907
    %v909 = vpop.f32.mrf.mxu0
    %910 = vdwg.mxu0
    %911 = vmatpush.bf16.msra.mxu0 0
    %912 = vmatpush.bf16.msra.mxu0 0
    %913 = vmatpush.bf16.msra.mxu0 0
    %914 = vmatpush.bf16.msra.mxu0 0
    %915 = vmatpush.bf16.msra.mxu0 %v259
    %916 = vmatpush.bf16.msra.mxu0 %v251
    %917 = vmatpush.bf16.msra.mxu0 %v243
    %918 = vmatpush.bf16.msra.mxu0 %v235
    %919 = vmatmul.bf16.gmra.mxu0 %v831
    %v920 = vpop.f32.mrf.mxu0
    %v921 = vadd.f32 0.0, %v920
    %v922 = vpop.f32.mrf.mxu0
    %923 = vdwg.mxu0
    %924 = vmatpush.bf16.msra.mxu0 0
    %925 = vmatpush.bf16.msra.mxu0 0
    %926 = vmatpush.bf16.msra.mxu0 0
    %927 = vmatpush.bf16.msra.mxu0 0
    %928 = vmatpush.bf16.msra.mxu0 %v260
    %929 = vmatpush.bf16.msra.mxu0 %v252
    %930 = vmatpush.bf16.msra.mxu0 %v244
    %931 = vmatpush.bf16.msra.mxu0 %v236
    %932 = vmatmul.bf16.gmra.mxu0 %v831
    %v933 = vpop.f32.mrf.mxu0
    %v934 = vadd.f32 0.0, %v933
    %v935 = vpop.f32.mrf.mxu0
    %936 = vdwg.mxu0
    %v937 = vperm.slane %v115, 4
    %v938 = vperm.slane %v116, 4
    %v939 = vperm.slane %v117, 4
    %v940 = vperm.slane %v118, 4
    %v941 = vperm.slane %v119, 4
    %v942 = vperm.slane %v120, 4
    %v943 = vperm.slane %v121, 4
    %v944 = vperm.slane %v122, 4
    %v945 = vmul.f32 %v843, %v937
    %v946 = vmul.f32 %v856, %v938
    %v947 = vmul.f32 %v869, %v939
    %v948 = vmul.f32 %v882, %v940
    %v949 = vmul.f32 %v895, %v941
    %v950 = vmul.f32 %v908, %v942
    %v951 = vmul.f32 %v921, %v943
    %v952 = vmul.f32 %v934, %v944
    %v953 = vadd.f32 %v819, %v945
    %v954 = vadd.f32 %v820, %v946
    %v955 = vadd.f32 %v821, %v947
    %v956 = vadd.f32 %v822, %v948
    %v957 = vadd.f32 %v823, %v949
    %v958 = vadd.f32 %v824, %v950
    %v959 = vadd.f32 %v825, %v951
    %v960 = vadd.f32 %v826, %v952
    %s961 = scalar_lea.vmem %s0, 40
    %v962 = vld [vmem:[%s961] sm:$0xff]
    %v963 = vpack.c.bf16 %v962, %v962
    %v965 = vsel %vm293, %v963, 0
    %967 = vmatpush.bf16.msra.mxu0 0
    %968 = vmatpush.bf16.msra.mxu0 0
    %969 = vmatpush.bf16.msra.mxu0 0
    %970 = vmatpush.bf16.msra.mxu0 0
    %971 = vmatpush.bf16.msra.mxu0 %v253
    %972 = vmatpush.bf16.msra.mxu0 %v245
    %973 = vmatpush.bf16.msra.mxu0 %v237
    %974 = vmatpush.bf16.msra.mxu0 %v229
    %975 = vmatmul.bf16.gmra.mxu0 %v965
    %v976 = vpop.f32.mrf.mxu0
    %v977 = vadd.f32 0.0, %v976
    %v978 = vpop.f32.mrf.mxu0
    %979 = vdwg.mxu0
    %980 = vmatpush.bf16.msra.mxu0 0
    %981 = vmatpush.bf16.msra.mxu0 0
    %982 = vmatpush.bf16.msra.mxu0 0
    %983 = vmatpush.bf16.msra.mxu0 0
    %984 = vmatpush.bf16.msra.mxu0 %v254
    %985 = vmatpush.bf16.msra.mxu0 %v246
    %986 = vmatpush.bf16.msra.mxu0 %v238
    %987 = vmatpush.bf16.msra.mxu0 %v230
    %988 = vmatmul.bf16.gmra.mxu0 %v965
    %v989 = vpop.f32.mrf.mxu0
    %v990 = vadd.f32 0.0, %v989
    %v991 = vpop.f32.mrf.mxu0
    %992 = vdwg.mxu0
    %993 = vmatpush.bf16.msra.mxu0 0
    %994 = vmatpush.bf16.msra.mxu0 0
    %995 = vmatpush.bf16.msra.mxu0 0
    %996 = vmatpush.bf16.msra.mxu0 0
    %997 = vmatpush.bf16.msra.mxu0 %v255
    %998 = vmatpush.bf16.msra.mxu0 %v247
    %999 = vmatpush.bf16.msra.mxu0 %v239
    %1000 = vmatpush.bf16.msra.mxu0 %v231
    %1001 = vmatmul.bf16.gmra.mxu0 %v965
    %v1002 = vpop.f32.mrf.mxu0
    %v1003 = vadd.f32 0.0, %v1002
    %v1004 = vpop.f32.mrf.mxu0
    %1005 = vdwg.mxu0
    %1006 = vmatpush.bf16.msra.mxu0 0
    %1007 = vmatpush.bf16.msra.mxu0 0
    %1008 = vmatpush.bf16.msra.mxu0 0
    %1009 = vmatpush.bf16.msra.mxu0 0
    %1010 = vmatpush.bf16.msra.mxu0 %v256
    %1011 = vmatpush.bf16.msra.mxu0 %v248
    %1012 = vmatpush.bf16.msra.mxu0 %v240
    %1013 = vmatpush.bf16.msra.mxu0 %v232
    %1014 = vmatmul.bf16.gmra.mxu0 %v965
    %v1015 = vpop.f32.mrf.mxu0
    %v1016 = vadd.f32 0.0, %v1015
    %v1017 = vpop.f32.mrf.mxu0
    %1018 = vdwg.mxu0
    %1019 = vmatpush.bf16.msra.mxu0 0
    %1020 = vmatpush.bf16.msra.mxu0 0
    %1021 = vmatpush.bf16.msra.mxu0 0
    %1022 = vmatpush.bf16.msra.mxu0 0
    %1023 = vmatpush.bf16.msra.mxu0 %v257
    %1024 = vmatpush.bf16.msra.mxu0 %v249
    %1025 = vmatpush.bf16.msra.mxu0 %v241
    %1026 = vmatpush.bf16.msra.mxu0 %v233
    %1027 = vmatmul.bf16.gmra.mxu0 %v965
    %v1028 = vpop.f32.mrf.mxu0
    %v1029 = vadd.f32 0.0, %v1028
    %v1030 = vpop.f32.mrf.mxu0
    %1031 = vdwg.mxu0
    %1032 = vmatpush.bf16.msra.mxu0 0
    %1033 = vmatpush.bf16.msra.mxu0 0
    %1034 = vmatpush.bf16.msra.mxu0 0
    %1035 = vmatpush.bf16.msra.mxu0 0
    %1036 = vmatpush.bf16.msra.mxu0 %v258
    %1037 = vmatpush.bf16.msra.mxu0 %v250
    %1038 = vmatpush.bf16.msra.mxu0 %v242
    %1039 = vmatpush.bf16.msra.mxu0 %v234
    %1040 = vmatmul.bf16.gmra.mxu0 %v965
    %v1041 = vpop.f32.mrf.mxu0
    %v1042 = vadd.f32 0.0, %v1041
    %v1043 = vpop.f32.mrf.mxu0
    %1044 = vdwg.mxu0
    %1045 = vmatpush.bf16.msra.mxu0 0
    %1046 = vmatpush.bf16.msra.mxu0 0
    %1047 = vmatpush.bf16.msra.mxu0 0
    %1048 = vmatpush.bf16.msra.mxu0 0
    %1049 = vmatpush.bf16.msra.mxu0 %v259
    %1050 = vmatpush.bf16.msra.mxu0 %v251
    %1051 = vmatpush.bf16.msra.mxu0 %v243
    %1052 = vmatpush.bf16.msra.mxu0 %v235
    %1053 = vmatmul.bf16.gmra.mxu0 %v965
    %v1054 = vpop.f32.mrf.mxu0
    %v1055 = vadd.f32 0.0, %v1054
    %v1056 = vpop.f32.mrf.mxu0
    %1057 = vdwg.mxu0
    %1058 = vmatpush.bf16.msra.mxu0 0
    %1059 = vmatpush.bf16.msra.mxu0 0
    %1060 = vmatpush.bf16.msra.mxu0 0
    %1061 = vmatpush.bf16.msra.mxu0 0
    %1062 = vmatpush.bf16.msra.mxu0 %v260
    %1063 = vmatpush.bf16.msra.mxu0 %v252
    %1064 = vmatpush.bf16.msra.mxu0 %v244
    %1065 = vmatpush.bf16.msra.mxu0 %v236
    %1066 = vmatmul.bf16.gmra.mxu0 %v965
    %v1067 = vpop.f32.mrf.mxu0
    %v1068 = vadd.f32 0.0, %v1067
    %v1069 = vpop.f32.mrf.mxu0
    %1070 = vdwg.mxu0
    %v1071 = vperm.slane %v115, 5
    %v1072 = vperm.slane %v116, 5
    %v1073 = vperm.slane %v117, 5
    %v1074 = vperm.slane %v118, 5
    %v1075 = vperm.slane %v119, 5
    %v1076 = vperm.slane %v120, 5
    %v1077 = vperm.slane %v121, 5
    %v1078 = vperm.slane %v122, 5
    %v1079 = vmul.f32 %v977, %v1071
    %v1080 = vmul.f32 %v990, %v1072
    %v1081 = vmul.f32 %v1003, %v1073
    %v1082 = vmul.f32 %v1016, %v1074
    %v1083 = vmul.f32 %v1029, %v1075
    %v1084 = vmul.f32 %v1042, %v1076
    %v1085 = vmul.f32 %v1055, %v1077
    %v1086 = vmul.f32 %v1068, %v1078
    %v1087 = vadd.f32 %v953, %v1079
    %v1088 = vadd.f32 %v954, %v1080
    %v1089 = vadd.f32 %v955, %v1081
    %v1090 = vadd.f32 %v956, %v1082
    %v1091 = vadd.f32 %v957, %v1083
    %v1092 = vadd.f32 %v958, %v1084
    %v1093 = vadd.f32 %v959, %v1085
    %v1094 = vadd.f32 %v960, %v1086
    %s1095 = scalar_lea.vmem %s0, 48
    %v1096 = vld [vmem:[%s1095] sm:$0xff]
    %v1097 = vpack.c.bf16 %v1096, %v1096
    %v1099 = vsel %vm293, %v1097, 0
    %1101 = vmatpush.bf16.msra.mxu0 0
    %1102 = vmatpush.bf16.msra.mxu0 0
    %1103 = vmatpush.bf16.msra.mxu0 0
    %1104 = vmatpush.bf16.msra.mxu0 0
    %1105 = vmatpush.bf16.msra.mxu0 %v253
    %1106 = vmatpush.bf16.msra.mxu0 %v245
    %1107 = vmatpush.bf16.msra.mxu0 %v237
    %1108 = vmatpush.bf16.msra.mxu0 %v229
    %1109 = vmatmul.bf16.gmra.mxu0 %v1099
    %v1110 = vpop.f32.mrf.mxu0
    %v1111 = vadd.f32 0.0, %v1110
    %v1112 = vpop.f32.mrf.mxu0
    %1113 = vdwg.mxu0
    %1114 = vmatpush.bf16.msra.mxu0 0
    %1115 = vmatpush.bf16.msra.mxu0 0
    %1116 = vmatpush.bf16.msra.mxu0 0
    %1117 = vmatpush.bf16.msra.mxu0 0
    %1118 = vmatpush.bf16.msra.mxu0 %v254
    %1119 = vmatpush.bf16.msra.mxu0 %v246
    %1120 = vmatpush.bf16.msra.mxu0 %v238
    %1121 = vmatpush.bf16.msra.mxu0 %v230
    %1122 = vmatmul.bf16.gmra.mxu0 %v1099
    %v1123 = vpop.f32.mrf.mxu0
    %v1124 = vadd.f32 0.0, %v1123
    %v1125 = vpop.f32.mrf.mxu0
    %1126 = vdwg.mxu0
    %1127 = vmatpush.bf16.msra.mxu0 0
    %1128 = vmatpush.bf16.msra.mxu0 0
    %1129 = vmatpush.bf16.msra.mxu0 0
    %1130 = vmatpush.bf16.msra.mxu0 0
    %1131 = vmatpush.bf16.msra.mxu0 %v255
    %1132 = vmatpush.bf16.msra.mxu0 %v247
    %1133 = vmatpush.bf16.msra.mxu0 %v239
    %1134 = vmatpush.bf16.msra.mxu0 %v231
    %1135 = vmatmul.bf16.gmra.mxu0 %v1099
    %v1136 = vpop.f32.mrf.mxu0
    %v1137 = vadd.f32 0.0, %v1136
    %v1138 = vpop.f32.mrf.mxu0
    %1139 = vdwg.mxu0
    %1140 = vmatpush.bf16.msra.mxu0 0
    %1141 = vmatpush.bf16.msra.mxu0 0
    %1142 = vmatpush.bf16.msra.mxu0 0
    %1143 = vmatpush.bf16.msra.mxu0 0
    %1144 = vmatpush.bf16.msra.mxu0 %v256
    %1145 = vmatpush.bf16.msra.mxu0 %v248
    %1146 = vmatpush.bf16.msra.mxu0 %v240
    %1147 = vmatpush.bf16.msra.mxu0 %v232
    %1148 = vmatmul.bf16.gmra.mxu0 %v1099
    %v1149 = vpop.f32.mrf.mxu0
    %v1150 = vadd.f32 0.0, %v1149
    %v1151 = vpop.f32.mrf.mxu0
    %1152 = vdwg.mxu0
    %1153 = vmatpush.bf16.msra.mxu0 0
    %1154 = vmatpush.bf16.msra.mxu0 0
    %1155 = vmatpush.bf16.msra.mxu0 0
    %1156 = vmatpush.bf16.msra.mxu0 0
    %1157 = vmatpush.bf16.msra.mxu0 %v257
    %1158 = vmatpush.bf16.msra.mxu0 %v249
    %1159 = vmatpush.bf16.msra.mxu0 %v241
    %1160 = vmatpush.bf16.msra.mxu0 %v233
    %1161 = vmatmul.bf16.gmra.mxu0 %v1099
    %v1162 = vpop.f32.mrf.mxu0
    %v1163 = vadd.f32 0.0, %v1162
    %v1164 = vpop.f32.mrf.mxu0
    %1165 = vdwg.mxu0
    %1166 = vmatpush.bf16.msra.mxu0 0
    %1167 = vmatpush.bf16.msra.mxu0 0
    %1168 = vmatpush.bf16.msra.mxu0 0
    %1169 = vmatpush.bf16.msra.mxu0 0
    %1170 = vmatpush.bf16.msra.mxu0 %v258
    %1171 = vmatpush.bf16.msra.mxu0 %v250
    %1172 = vmatpush.bf16.msra.mxu0 %v242
    %1173 = vmatpush.bf16.msra.mxu0 %v234
    %1174 = vmatmul.bf16.gmra.mxu0 %v1099
    %v1175 = vpop.f32.mrf.mxu0
    %v1176 = vadd.f32 0.0, %v1175
    %v1177 = vpop.f32.mrf.mxu0
    %1178 = vdwg.mxu0
    %1179 = vmatpush.bf16.msra.mxu0 0
    %1180 = vmatpush.bf16.msra.mxu0 0
    %1181 = vmatpush.bf16.msra.mxu0 0
    %1182 = vmatpush.bf16.msra.mxu0 0
    %1183 = vmatpush.bf16.msra.mxu0 %v259
    %1184 = vmatpush.bf16.msra.mxu0 %v251
    %1185 = vmatpush.bf16.msra.mxu0 %v243
    %1186 = vmatpush.bf16.msra.mxu0 %v235
    %1187 = vmatmul.bf16.gmra.mxu0 %v1099
    %v1188 = vpop.f32.mrf.mxu0
    %v1189 = vadd.f32 0.0, %v1188
    %v1190 = vpop.f32.mrf.mxu0
    %1191 = vdwg.mxu0
    %1192 = vmatpush.bf16.msra.mxu0 0
    %1193 = vmatpush.bf16.msra.mxu0 0
    %1194 = vmatpush.bf16.msra.mxu0 0
    %1195 = vmatpush.bf16.msra.mxu0 0
    %1196 = vmatpush.bf16.msra.mxu0 %v260
    %1197 = vmatpush.bf16.msra.mxu0 %v252
    %1198 = vmatpush.bf16.msra.mxu0 %v244
    %1199 = vmatpush.bf16.msra.mxu0 %v236
    %1200 = vmatmul.bf16.gmra.mxu0 %v1099
    %v1201 = vpop.f32.mrf.mxu0
    %v1202 = vadd.f32 0.0, %v1201
    %v1203 = vpop.f32.mrf.mxu0
    %1204 = vdwg.mxu0
    %v1205 = vperm.slane %v115, 6
    %v1206 = vperm.slane %v116, 6
    %v1207 = vperm.slane %v117, 6
    %v1208 = vperm.slane %v118, 6
    %v1209 = vperm.slane %v119, 6
    %v1210 = vperm.slane %v120, 6
    %v1211 = vperm.slane %v121, 6
    %v1212 = vperm.slane %v122, 6
    %v1213 = vmul.f32 %v1111, %v1205
    %v1214 = vmul.f32 %v1124, %v1206
    %v1215 = vmul.f32 %v1137, %v1207
    %v1216 = vmul.f32 %v1150, %v1208
    %v1217 = vmul.f32 %v1163, %v1209
    %v1218 = vmul.f32 %v1176, %v1210
    %v1219 = vmul.f32 %v1189, %v1211
    %v1220 = vmul.f32 %v1202, %v1212
    %v1221 = vadd.f32 %v1087, %v1213
    %v1222 = vadd.f32 %v1088, %v1214
    %v1223 = vadd.f32 %v1089, %v1215
    %v1224 = vadd.f32 %v1090, %v1216
    %v1225 = vadd.f32 %v1091, %v1217
    %v1226 = vadd.f32 %v1092, %v1218
    %v1227 = vadd.f32 %v1093, %v1219
    %v1228 = vadd.f32 %v1094, %v1220
    %s1229 = scalar_lea.vmem %s0, 56
    %v1230 = vld [vmem:[%s1229] sm:$0xff]
    %v1231 = vpack.c.bf16 %v1230, %v1230
    %v1233 = vsel %vm293, %v1231, 0
    %1235 = vmatpush.bf16.msra.mxu0 0
    %1236 = vmatpush.bf16.msra.mxu0 0
    %1237 = vmatpush.bf16.msra.mxu0 0
    %1238 = vmatpush.bf16.msra.mxu0 0
    %1239 = vmatpush.bf16.msra.mxu0 %v253
    %1240 = vmatpush.bf16.msra.mxu0 %v245
    %1241 = vmatpush.bf16.msra.mxu0 %v237
    %1242 = vmatpush.bf16.msra.mxu0 %v229
    %1243 = vmatmul.bf16.gmra.mxu0 %v1233
    %v1244 = vpop.f32.mrf.mxu0
    %v1245 = vadd.f32 0.0, %v1244
    %v1246 = vpop.f32.mrf.mxu0
    %1247 = vdwg.mxu0
    %1248 = vmatpush.bf16.msra.mxu0 0
    %1249 = vmatpush.bf16.msra.mxu0 0
    %1250 = vmatpush.bf16.msra.mxu0 0
    %1251 = vmatpush.bf16.msra.mxu0 0
    %1252 = vmatpush.bf16.msra.mxu0 %v254
    %1253 = vmatpush.bf16.msra.mxu0 %v246
    %1254 = vmatpush.bf16.msra.mxu0 %v238
    %1255 = vmatpush.bf16.msra.mxu0 %v230
    %1256 = vmatmul.bf16.gmra.mxu0 %v1233
    %v1257 = vpop.f32.mrf.mxu0
    %v1258 = vadd.f32 0.0, %v1257
    %v1259 = vpop.f32.mrf.mxu0
    %1260 = vdwg.mxu0
    %1261 = vmatpush.bf16.msra.mxu0 0
    %1262 = vmatpush.bf16.msra.mxu0 0
    %1263 = vmatpush.bf16.msra.mxu0 0
    %1264 = vmatpush.bf16.msra.mxu0 0
    %1265 = vmatpush.bf16.msra.mxu0 %v255
    %1266 = vmatpush.bf16.msra.mxu0 %v247
    %1267 = vmatpush.bf16.msra.mxu0 %v239
    %1268 = vmatpush.bf16.msra.mxu0 %v231
    %1269 = vmatmul.bf16.gmra.mxu0 %v1233
    %v1270 = vpop.f32.mrf.mxu0
    %v1271 = vadd.f32 0.0, %v1270
    %v1272 = vpop.f32.mrf.mxu0
    %1273 = vdwg.mxu0
    %1274 = vmatpush.bf16.msra.mxu0 0
    %1275 = vmatpush.bf16.msra.mxu0 0
    %1276 = vmatpush.bf16.msra.mxu0 0
    %1277 = vmatpush.bf16.msra.mxu0 0
    %1278 = vmatpush.bf16.msra.mxu0 %v256
    %1279 = vmatpush.bf16.msra.mxu0 %v248
    %1280 = vmatpush.bf16.msra.mxu0 %v240
    %1281 = vmatpush.bf16.msra.mxu0 %v232
    %1282 = vmatmul.bf16.gmra.mxu0 %v1233
    %v1283 = vpop.f32.mrf.mxu0
    %v1284 = vadd.f32 0.0, %v1283
    %v1285 = vpop.f32.mrf.mxu0
    %1286 = vdwg.mxu0
    %1287 = vmatpush.bf16.msra.mxu0 0
    %1288 = vmatpush.bf16.msra.mxu0 0
    %1289 = vmatpush.bf16.msra.mxu0 0
    %1290 = vmatpush.bf16.msra.mxu0 0
    %1291 = vmatpush.bf16.msra.mxu0 %v257
    %1292 = vmatpush.bf16.msra.mxu0 %v249
    %1293 = vmatpush.bf16.msra.mxu0 %v241
    %1294 = vmatpush.bf16.msra.mxu0 %v233
    %1295 = vmatmul.bf16.gmra.mxu0 %v1233
    %v1296 = vpop.f32.mrf.mxu0
    %v1297 = vadd.f32 0.0, %v1296
    %v1298 = vpop.f32.mrf.mxu0
    %1299 = vdwg.mxu0
    %1300 = vmatpush.bf16.msra.mxu0 0
    %1301 = vmatpush.bf16.msra.mxu0 0
    %1302 = vmatpush.bf16.msra.mxu0 0
    %1303 = vmatpush.bf16.msra.mxu0 0
    %1304 = vmatpush.bf16.msra.mxu0 %v258
    %1305 = vmatpush.bf16.msra.mxu0 %v250
    %1306 = vmatpush.bf16.msra.mxu0 %v242
    %1307 = vmatpush.bf16.msra.mxu0 %v234
    %1308 = vmatmul.bf16.gmra.mxu0 %v1233
    %v1309 = vpop.f32.mrf.mxu0
    %v1310 = vadd.f32 0.0, %v1309
    %v1311 = vpop.f32.mrf.mxu0
    %1312 = vdwg.mxu0
    %1313 = vmatpush.bf16.msra.mxu0 0
    %1314 = vmatpush.bf16.msra.mxu0 0
    %1315 = vmatpush.bf16.msra.mxu0 0
    %1316 = vmatpush.bf16.msra.mxu0 0
    %1317 = vmatpush.bf16.msra.mxu0 %v259
    %1318 = vmatpush.bf16.msra.mxu0 %v251
    %1319 = vmatpush.bf16.msra.mxu0 %v243
    %1320 = vmatpush.bf16.msra.mxu0 %v235
    %1321 = vmatmul.bf16.gmra.mxu0 %v1233
    %v1322 = vpop.f32.mrf.mxu0
    %v1323 = vadd.f32 0.0, %v1322
    %v1324 = vpop.f32.mrf.mxu0
    %1325 = vdwg.mxu0
    %1326 = vmatpush.bf16.msra.mxu0 0
    %1327 = vmatpush.bf16.msra.mxu0 0
    %1328 = vmatpush.bf16.msra.mxu0 0
    %1329 = vmatpush.bf16.msra.mxu0 0
    %1330 = vmatpush.bf16.msra.mxu0 %v260
    %1331 = vmatpush.bf16.msra.mxu0 %v252
    %1332 = vmatpush.bf16.msra.mxu0 %v244
    %1333 = vmatpush.bf16.msra.mxu0 %v236
    %1334 = vmatmul.bf16.gmra.mxu0 %v1233
    %v1335 = vpop.f32.mrf.mxu0
    %v1336 = vadd.f32 0.0, %v1335
    %v1337 = vpop.f32.mrf.mxu0
    %1338 = vdwg.mxu0
    %v1339 = vperm.slane %v115, 7
    %v1340 = vperm.slane %v116, 7
    %v1341 = vperm.slane %v117, 7
    %v1342 = vperm.slane %v118, 7
    %v1343 = vperm.slane %v119, 7
    %v1344 = vperm.slane %v120, 7
    %v1345 = vperm.slane %v121, 7
    %v1346 = vperm.slane %v122, 7
    %v1347 = vmul.f32 %v1245, %v1339
    %v1348 = vmul.f32 %v1258, %v1340
    %v1349 = vmul.f32 %v1271, %v1341
    %v1350 = vmul.f32 %v1284, %v1342
    %v1351 = vmul.f32 %v1297, %v1343
    %v1352 = vmul.f32 %v1310, %v1344
    %v1353 = vmul.f32 %v1323, %v1345
    %v1354 = vmul.f32 %v1336, %v1346
    %v1355 = vadd.f32 %v1221, %v1347
    %v1356 = vadd.f32 %v1222, %v1348
    %v1357 = vadd.f32 %v1223, %v1349
    %v1358 = vadd.f32 %v1224, %v1350
    %v1359 = vadd.f32 %v1225, %v1351
    %v1360 = vadd.f32 %v1226, %v1352
    %v1361 = vadd.f32 %v1227, %v1353
    %v1362 = vadd.f32 %v1228, %v1354
    %s1363 = scalar_lea.vmem %s0, 64
    %v1364 = vld [vmem:[%s1363] sm:$0xff]
    %v1365 = vpack.c.bf16 %v1364, %v1364
    %v1367 = vsel %vm293, %v1365, 0
    %1369 = vmatpush.bf16.msra.mxu0 0
    %1370 = vmatpush.bf16.msra.mxu0 0
    %1371 = vmatpush.bf16.msra.mxu0 0
    %1372 = vmatpush.bf16.msra.mxu0 0
    %1373 = vmatpush.bf16.msra.mxu0 %v253
    %1374 = vmatpush.bf16.msra.mxu0 %v245
    %1375 = vmatpush.bf16.msra.mxu0 %v237
    %1376 = vmatpush.bf16.msra.mxu0 %v229
    %1377 = vmatmul.bf16.gmra.mxu0 %v1367
    %v1378 = vpop.f32.mrf.mxu0
    %v1379 = vadd.f32 0.0, %v1378
    %v1380 = vpop.f32.mrf.mxu0
    %1381 = vdwg.mxu0
    %1382 = vmatpush.bf16.msra.mxu0 0
    %1383 = vmatpush.bf16.msra.mxu0 0
    %1384 = vmatpush.bf16.msra.mxu0 0
    %1385 = vmatpush.bf16.msra.mxu0 0
    %1386 = vmatpush.bf16.msra.mxu0 %v254
    %1387 = vmatpush.bf16.msra.mxu0 %v246
    %1388 = vmatpush.bf16.msra.mxu0 %v238
    %1389 = vmatpush.bf16.msra.mxu0 %v230
    %1390 = vmatmul.bf16.gmra.mxu0 %v1367
    %v1391 = vpop.f32.mrf.mxu0
    %v1392 = vadd.f32 0.0, %v1391
    %v1393 = vpop.f32.mrf.mxu0
    %1394 = vdwg.mxu0
    %1395 = vmatpush.bf16.msra.mxu0 0
    %1396 = vmatpush.bf16.msra.mxu0 0
    %1397 = vmatpush.bf16.msra.mxu0 0
    %1398 = vmatpush.bf16.msra.mxu0 0
    %1399 = vmatpush.bf16.msra.mxu0 %v255
    %1400 = vmatpush.bf16.msra.mxu0 %v247
    %1401 = vmatpush.bf16.msra.mxu0 %v239
    %1402 = vmatpush.bf16.msra.mxu0 %v231
    %1403 = vmatmul.bf16.gmra.mxu0 %v1367
    %v1404 = vpop.f32.mrf.mxu0
    %v1405 = vadd.f32 0.0, %v1404
    %v1406 = vpop.f32.mrf.mxu0
    %1407 = vdwg.mxu0
    %1408 = vmatpush.bf16.msra.mxu0 0
    %1409 = vmatpush.bf16.msra.mxu0 0
    %1410 = vmatpush.bf16.msra.mxu0 0
    %1411 = vmatpush.bf16.msra.mxu0 0
    %1412 = vmatpush.bf16.msra.mxu0 %v256
    %1413 = vmatpush.bf16.msra.mxu0 %v248
    %1414 = vmatpush.bf16.msra.mxu0 %v240
    %1415 = vmatpush.bf16.msra.mxu0 %v232
    %1416 = vmatmul.bf16.gmra.mxu0 %v1367
    %v1417 = vpop.f32.mrf.mxu0
    %v1418 = vadd.f32 0.0, %v1417
    %v1419 = vpop.f32.mrf.mxu0
    %1420 = vdwg.mxu0
    %1421 = vmatpush.bf16.msra.mxu0 0
    %1422 = vmatpush.bf16.msra.mxu0 0
    %1423 = vmatpush.bf16.msra.mxu0 0
    %1424 = vmatpush.bf16.msra.mxu0 0
    %1425 = vmatpush.bf16.msra.mxu0 %v257
    %1426 = vmatpush.bf16.msra.mxu0 %v249
    %1427 = vmatpush.bf16.msra.mxu0 %v241
    %1428 = vmatpush.bf16.msra.mxu0 %v233
    %1429 = vmatmul.bf16.gmra.mxu0 %v1367
    %v1430 = vpop.f32.mrf.mxu0
    %v1431 = vadd.f32 0.0, %v1430
    %v1432 = vpop.f32.mrf.mxu0
    %1433 = vdwg.mxu0
    %1434 = vmatpush.bf16.msra.mxu0 0
    %1435 = vmatpush.bf16.msra.mxu0 0
    %1436 = vmatpush.bf16.msra.mxu0 0
    %1437 = vmatpush.bf16.msra.mxu0 0
    %1438 = vmatpush.bf16.msra.mxu0 %v258
    %1439 = vmatpush.bf16.msra.mxu0 %v250
    %1440 = vmatpush.bf16.msra.mxu0 %v242
    %1441 = vmatpush.bf16.msra.mxu0 %v234
    %1442 = vmatmul.bf16.gmra.mxu0 %v1367
    %v1443 = vpop.f32.mrf.mxu0
    %v1444 = vadd.f32 0.0, %v1443
    %v1445 = vpop.f32.mrf.mxu0
    %1446 = vdwg.mxu0
    %1447 = vmatpush.bf16.msra.mxu0 0
    %1448 = vmatpush.bf16.msra.mxu0 0
    %1449 = vmatpush.bf16.msra.mxu0 0
    %1450 = vmatpush.bf16.msra.mxu0 0
    %1451 = vmatpush.bf16.msra.mxu0 %v259
    %1452 = vmatpush.bf16.msra.mxu0 %v251
    %1453 = vmatpush.bf16.msra.mxu0 %v243
    %1454 = vmatpush.bf16.msra.mxu0 %v235
    %1455 = vmatmul.bf16.gmra.mxu0 %v1367
    %v1456 = vpop.f32.mrf.mxu0
    %v1457 = vadd.f32 0.0, %v1456
    %v1458 = vpop.f32.mrf.mxu0
    %1459 = vdwg.mxu0
    %1460 = vmatpush.bf16.msra.mxu0 0
    %1461 = vmatpush.bf16.msra.mxu0 0
    %1462 = vmatpush.bf16.msra.mxu0 0
    %1463 = vmatpush.bf16.msra.mxu0 0
    %1464 = vmatpush.bf16.msra.mxu0 %v260
    %1465 = vmatpush.bf16.msra.mxu0 %v252
    %1466 = vmatpush.bf16.msra.mxu0 %v244
    %1467 = vmatpush.bf16.msra.mxu0 %v236
    %1468 = vmatmul.bf16.gmra.mxu0 %v1367
    %v1469 = vpop.f32.mrf.mxu0
    %v1470 = vadd.f32 0.0, %v1469
    %v1471 = vpop.f32.mrf.mxu0
    %1472 = vdwg.mxu0
    %v1473 = vperm.slane %v123, 0
    %v1474 = vperm.slane %v124, 0
    %v1475 = vperm.slane %v125, 0
    %v1476 = vperm.slane %v126, 0
    %v1477 = vperm.slane %v127, 0
    %v1478 = vperm.slane %v128, 0
    %v1479 = vperm.slane %v129, 0
    %v1480 = vperm.slane %v130, 0
    %v1481 = vmul.f32 %v1379, %v1473
    %v1482 = vmul.f32 %v1392, %v1474
    %v1483 = vmul.f32 %v1405, %v1475
    %v1484 = vmul.f32 %v1418, %v1476
    %v1485 = vmul.f32 %v1431, %v1477
    %v1486 = vmul.f32 %v1444, %v1478
    %v1487 = vmul.f32 %v1457, %v1479
    %v1488 = vmul.f32 %v1470, %v1480
    %v1489 = vadd.f32 %v1355, %v1481
    %v1490 = vadd.f32 %v1356, %v1482
    %v1491 = vadd.f32 %v1357, %v1483
    %v1492 = vadd.f32 %v1358, %v1484
    %v1493 = vadd.f32 %v1359, %v1485
    %v1494 = vadd.f32 %v1360, %v1486
    %v1495 = vadd.f32 %v1361, %v1487
    %v1496 = vadd.f32 %v1362, %v1488
    %v1497 = vld [vmem:[%s3] sm:$0xff]
    %v1499 = vperm.slane %v1497, 0
    %v1500 = vperm.slane %v1497, 1
    %v1501 = vperm.slane %v1497, 2
    %v1502 = vperm.slane %v1497, 3
    %v1503 = vperm.slane %v1497, 4
    %v1504 = vperm.slane %v1497, 5
    %v1505 = vperm.slane %v1497, 6
    %v1506 = vperm.slane %v1497, 7
    %v1515 = vadd.f32 %v1489, %v1499
    %v1516 = vadd.f32 %v1490, %v1500
    %v1517 = vadd.f32 %v1491, %v1501
    %v1518 = vadd.f32 %v1492, %v1502
    %v1519 = vadd.f32 %v1493, %v1503
    %v1520 = vadd.f32 %v1494, %v1504
    %v1521 = vadd.f32 %v1495, %v1505
    %v1522 = vadd.f32 %v1496, %v1506
    %v1523 = vmax.f32 %v1515, 0.0
    %v1524 = vmax.f32 %v1516, 0.0
    %v1525 = vmax.f32 %v1517, 0.0
    %v1526 = vmax.f32 %v1518, 0.0
    %v1527 = vmax.f32 %v1519, 0.0
    %v1528 = vmax.f32 %v1520, 0.0
    %v1529 = vmax.f32 %v1521, 0.0
    %v1530 = vmax.f32 %v1522, 0.0
    %v1531 = vpack.c.bf16 %v1523, %v1523
    %v1532 = vpack.c.bf16 %v1524, %v1524
    %v1533 = vpack.c.bf16 %v1525, %v1525
    %v1534 = vpack.c.bf16 %v1526, %v1526
    %v1535 = vpack.c.bf16 %v1527, %v1527
    %v1536 = vpack.c.bf16 %v1528, %v1528
    %v1537 = vpack.c.bf16 %v1529, %v1529
    %v1538 = vpack.c.bf16 %v1530, %v1530
    %v1539 = vld [vmem:[%s4] sm:$0xf]
    %v1540 = vld [vmem:[%s4 + $0x4] sm:$0xf]
    %v1541 = vld [vmem:[%s4 + $0x8] sm:$0xf]
    %v1542 = vld [vmem:[%s4 + $0xc] sm:$0xf]
    %v1543 = vld [vmem:[%s4 + $0x10] sm:$0xf]
    %v1544 = vld [vmem:[%s4 + $0x14] sm:$0xf]
    %v1545 = vld [vmem:[%s4 + $0x18] sm:$0xf]
    %v1546 = vld [vmem:[%s4 + $0x1c] sm:$0xf]
    %v1547 = vld [vmem:[%s4 + $0x20] sm:$0xf]
    %v1548 = vld [vmem:[%s4 + $0x24] sm:$0xf]
    %v1549 = vld [vmem:[%s4 + $0x28] sm:$0xf]
    %v1550 = vld [vmem:[%s4 + $0x2c] sm:$0xf]
    %v1551 = vld [vmem:[%s4 + $0x30] sm:$0xf]
    %v1552 = vld [vmem:[%s4 + $0x34] sm:$0xf]
    %v1553 = vld [vmem:[%s4 + $0x38] sm:$0xf]
    %v1554 = vld [vmem:[%s4 + $0x3c] sm:$0xf]
    %v1555 = vld [vmem:[%s4 + $0x40] sm:$0xf]
    %v1556 = vld [vmem:[%s4 + $0x44] sm:$0xf]
    %v1557 = vld [vmem:[%s4 + $0x48] sm:$0xf]
    %v1558 = vld [vmem:[%s4 + $0x4c] sm:$0xf]
    %v1559 = vld [vmem:[%s4 + $0x50] sm:$0xf]
    %v1560 = vld [vmem:[%s4 + $0x54] sm:$0xf]
    %v1561 = vld [vmem:[%s4 + $0x58] sm:$0xf]
    %v1562 = vld [vmem:[%s4 + $0x5c] sm:$0xf]
    %v1563 = vld [vmem:[%s4 + $0x60] sm:$0xf]
    %v1564 = vld [vmem:[%s4 + $0x64] sm:$0xf]
    %v1565 = vld [vmem:[%s4 + $0x68] sm:$0xf]
    %v1566 = vld [vmem:[%s4 + $0x6c] sm:$0xf]
    %v1567 = vld [vmem:[%s4 + $0x70] sm:$0xf]
    %v1568 = vld [vmem:[%s4 + $0x74] sm:$0xf]
    %v1569 = vld [vmem:[%s4 + $0x78] sm:$0xf]
    %v1570 = vld [vmem:[%s4 + $0x7c] sm:$0xf]
    %v1571 = vld [vmem:[%s4 + $0x80] sm:$0xf]
    %v1572 = vld [vmem:[%s4 + $0x84] sm:$0xf]
    %v1573 = vld [vmem:[%s4 + $0x88] sm:$0xf]
    %v1574 = vld [vmem:[%s4 + $0x8c] sm:$0xf]
    %v1575 = vld [vmem:[%s4 + $0x90] sm:$0xf]
    %v1576 = vld [vmem:[%s4 + $0x94] sm:$0xf]
    %v1577 = vld [vmem:[%s4 + $0x98] sm:$0xf]
    %v1578 = vld [vmem:[%s4 + $0x9c] sm:$0xf]
    %v1579 = vld [vmem:[%s4 + $0xa0] sm:$0xf]
    %v1580 = vld [vmem:[%s4 + $0xa4] sm:$0xf]
    %v1581 = vld [vmem:[%s4 + $0xa8] sm:$0xf]
    %v1582 = vld [vmem:[%s4 + $0xac] sm:$0xf]
    %v1583 = vld [vmem:[%s4 + $0xb0] sm:$0xf]
    %v1584 = vld [vmem:[%s4 + $0xb4] sm:$0xf]
    %v1585 = vld [vmem:[%s4 + $0xb8] sm:$0xf]
    %v1586 = vld [vmem:[%s4 + $0xbc] sm:$0xf]
    %v1587 = vld [vmem:[%s4 + $0xc0] sm:$0xf]
    %v1588 = vld [vmem:[%s4 + $0xc4] sm:$0xf]
    %v1589 = vld [vmem:[%s4 + $0xc8] sm:$0xf]
    %v1590 = vld [vmem:[%s4 + $0xcc] sm:$0xf]
    %v1591 = vld [vmem:[%s4 + $0xd0] sm:$0xf]
    %v1592 = vld [vmem:[%s4 + $0xd4] sm:$0xf]
    %v1593 = vld [vmem:[%s4 + $0xd8] sm:$0xf]
    %v1594 = vld [vmem:[%s4 + $0xdc] sm:$0xf]
    %v1595 = vld [vmem:[%s4 + $0xe0] sm:$0xf]
    %v1596 = vld [vmem:[%s4 + $0xe4] sm:$0xf]
    %v1597 = vld [vmem:[%s4 + $0xe8] sm:$0xf]
    %v1598 = vld [vmem:[%s4 + $0xec] sm:$0xf]
    %v1599 = vld [vmem:[%s4 + $0xf0] sm:$0xf]
    %v1600 = vld [vmem:[%s4 + $0xf4] sm:$0xf]
    %v1601 = vld [vmem:[%s4 + $0xf8] sm:$0xf]
    %v1602 = vld [vmem:[%s4 + $0xfc] sm:$0xf]
    %v1603 = vld [vmem:[%s4 + $0x100] sm:$0xf]
    %v1604 = vld [vmem:[%s4 + $0x104] sm:$0xf]
    %v1605 = vld [vmem:[%s4 + $0x108] sm:$0xf]
    %v1606 = vld [vmem:[%s4 + $0x10c] sm:$0xf]
    %v1607 = vld [vmem:[%s4 + $0x110] sm:$0xf]
    %v1608 = vld [vmem:[%s4 + $0x114] sm:$0xf]
    %v1609 = vld [vmem:[%s4 + $0x118] sm:$0xf]
    %v1610 = vld [vmem:[%s4 + $0x11c] sm:$0xf]
    %v1611 = vld [vmem:[%s4 + $0x120] sm:$0xf]
    %v1612 = vld [vmem:[%s4 + $0x124] sm:$0xf]
    %v1613 = vld [vmem:[%s4 + $0x128] sm:$0xf]
    %v1614 = vld [vmem:[%s4 + $0x12c] sm:$0xf]
    %v1615 = vld [vmem:[%s4 + $0x130] sm:$0xf]
    %v1616 = vld [vmem:[%s4 + $0x134] sm:$0xf]
    %v1617 = vld [vmem:[%s4 + $0x138] sm:$0xf]
    %v1618 = vld [vmem:[%s4 + $0x13c] sm:$0xf]
    %v1619 = vld [vmem:[%s4 + $0x140] sm:$0xf]
    %v1620 = vld [vmem:[%s4 + $0x144] sm:$0xf]
    %v1621 = vld [vmem:[%s4 + $0x148] sm:$0xf]
    %v1622 = vld [vmem:[%s4 + $0x14c] sm:$0xf]
    %v1623 = vld [vmem:[%s4 + $0x150] sm:$0xf]
    %v1624 = vld [vmem:[%s4 + $0x154] sm:$0xf]
    %v1625 = vld [vmem:[%s4 + $0x158] sm:$0xf]
    %v1626 = vld [vmem:[%s4 + $0x15c] sm:$0xf]
    %v1627 = vld [vmem:[%s4 + $0x160] sm:$0xf]
    %v1628 = vld [vmem:[%s4 + $0x164] sm:$0xf]
    %v1629 = vld [vmem:[%s4 + $0x168] sm:$0xf]
    %v1630 = vld [vmem:[%s4 + $0x16c] sm:$0xf]
    %v1631 = vld [vmem:[%s4 + $0x170] sm:$0xf]
    %v1632 = vld [vmem:[%s4 + $0x174] sm:$0xf]
    %v1633 = vld [vmem:[%s4 + $0x178] sm:$0xf]
    %v1634 = vld [vmem:[%s4 + $0x17c] sm:$0xf]
    %v1635 = vld [vmem:[%s4 + $0x180] sm:$0xf]
    %v1636 = vld [vmem:[%s4 + $0x184] sm:$0xf]
    %v1637 = vld [vmem:[%s4 + $0x188] sm:$0xf]
    %v1638 = vld [vmem:[%s4 + $0x18c] sm:$0xf]
    %v1639 = vld [vmem:[%s4 + $0x190] sm:$0xf]
    %v1640 = vld [vmem:[%s4 + $0x194] sm:$0xf]
    %v1641 = vld [vmem:[%s4 + $0x198] sm:$0xf]
    %v1642 = vld [vmem:[%s4 + $0x19c] sm:$0xf]
    %v1643 = vld [vmem:[%s4 + $0x1a0] sm:$0xf]
    %v1644 = vld [vmem:[%s4 + $0x1a4] sm:$0xf]
    %v1645 = vld [vmem:[%s4 + $0x1a8] sm:$0xf]
    %v1646 = vld [vmem:[%s4 + $0x1ac] sm:$0xf]
    %v1647 = vld [vmem:[%s4 + $0x1b0] sm:$0xf]
    %v1648 = vld [vmem:[%s4 + $0x1b4] sm:$0xf]
    %v1649 = vld [vmem:[%s4 + $0x1b8] sm:$0xf]
    %v1650 = vld [vmem:[%s4 + $0x1bc] sm:$0xf]
    %v1651 = vld [vmem:[%s4 + $0x1c0] sm:$0xf]
    %v1652 = vld [vmem:[%s4 + $0x1c4] sm:$0xf]
    %v1653 = vld [vmem:[%s4 + $0x1c8] sm:$0xf]
    %v1654 = vld [vmem:[%s4 + $0x1cc] sm:$0xf]
    %v1655 = vld [vmem:[%s4 + $0x1d0] sm:$0xf]
    %v1656 = vld [vmem:[%s4 + $0x1d4] sm:$0xf]
    %v1657 = vld [vmem:[%s4 + $0x1d8] sm:$0xf]
    %v1658 = vld [vmem:[%s4 + $0x1dc] sm:$0xf]
    %v1659 = vld [vmem:[%s4 + $0x1e0] sm:$0xf]
    %v1660 = vld [vmem:[%s4 + $0x1e4] sm:$0xf]
    %v1661 = vld [vmem:[%s4 + $0x1e8] sm:$0xf]
    %v1662 = vld [vmem:[%s4 + $0x1ec] sm:$0xf]
    %v1663 = vld [vmem:[%s4 + $0x1f0] sm:$0xf]
    %v1664 = vld [vmem:[%s4 + $0x1f4] sm:$0xf]
    %v1665 = vld [vmem:[%s4 + $0x1f8] sm:$0xf]
    %v1666 = vld [vmem:[%s4 + $0x1fc] sm:$0xf]
    %v1667 = vld [vmem:[%s5] sm:$0x1]
    %v1669 = vperm.slane %v1667, 0
    %v1799 = vunpack.c.l.b16 %v1539
    %v1800 = vunpack.c.l.b16 %v1540
    %v1801 = vunpack.c.l.b16 %v1541
    %v1802 = vunpack.c.l.b16 %v1542
    %v1803 = vunpack.c.l.b16 %v1543
    %v1804 = vunpack.c.l.b16 %v1544
    %v1805 = vunpack.c.l.b16 %v1545
    %v1806 = vunpack.c.l.b16 %v1546
    %v1807 = vunpack.c.l.b16 %v1547
    %v1808 = vunpack.c.l.b16 %v1548
    %v1809 = vunpack.c.l.b16 %v1549
    %v1810 = vunpack.c.l.b16 %v1550
    %v1811 = vunpack.c.l.b16 %v1551
    %v1812 = vunpack.c.l.b16 %v1552
    %v1813 = vunpack.c.l.b16 %v1553
    %v1814 = vunpack.c.l.b16 %v1554
    %v1815 = vunpack.c.l.b16 %v1555
    %v1816 = vunpack.c.l.b16 %v1556
    %v1817 = vunpack.c.l.b16 %v1557
    %v1818 = vunpack.c.l.b16 %v1558
    %v1819 = vunpack.c.l.b16 %v1559
    %v1820 = vunpack.c.l.b16 %v1560
    %v1821 = vunpack.c.l.b16 %v1561
    %v1822 = vunpack.c.l.b16 %v1562
    %v1823 = vunpack.c.l.b16 %v1563
    %v1824 = vunpack.c.l.b16 %v1564
    %v1825 = vunpack.c.l.b16 %v1565
    %v1826 = vunpack.c.l.b16 %v1566
    %v1827 = vunpack.c.l.b16 %v1567
    %v1828 = vunpack.c.l.b16 %v1568
    %v1829 = vunpack.c.l.b16 %v1569
    %v1830 = vunpack.c.l.b16 %v1570
    %v1831 = vunpack.c.l.b16 %v1571
    %v1832 = vunpack.c.l.b16 %v1572
    %v1833 = vunpack.c.l.b16 %v1573
    %v1834 = vunpack.c.l.b16 %v1574
    %v1835 = vunpack.c.l.b16 %v1575
    %v1836 = vunpack.c.l.b16 %v1576
    %v1837 = vunpack.c.l.b16 %v1577
    %v1838 = vunpack.c.l.b16 %v1578
    %v1839 = vunpack.c.l.b16 %v1579
    %v1840 = vunpack.c.l.b16 %v1580
    %v1841 = vunpack.c.l.b16 %v1581
    %v1842 = vunpack.c.l.b16 %v1582
    %v1843 = vunpack.c.l.b16 %v1583
    %v1844 = vunpack.c.l.b16 %v1584
    %v1845 = vunpack.c.l.b16 %v1585
    %v1846 = vunpack.c.l.b16 %v1586
    %v1847 = vunpack.c.l.b16 %v1587
    %v1848 = vunpack.c.l.b16 %v1588
    %v1849 = vunpack.c.l.b16 %v1589
    %v1850 = vunpack.c.l.b16 %v1590
    %v1851 = vunpack.c.l.b16 %v1591
    %v1852 = vunpack.c.l.b16 %v1592
    %v1853 = vunpack.c.l.b16 %v1593
    %v1854 = vunpack.c.l.b16 %v1594
    %v1855 = vunpack.c.l.b16 %v1595
    %v1856 = vunpack.c.l.b16 %v1596
    %v1857 = vunpack.c.l.b16 %v1597
    %v1858 = vunpack.c.l.b16 %v1598
    %v1859 = vunpack.c.l.b16 %v1599
    %v1860 = vunpack.c.l.b16 %v1600
    %v1861 = vunpack.c.l.b16 %v1601
    %v1862 = vunpack.c.l.b16 %v1602
    %v1863 = vunpack.c.l.b16 %v1603
    %v1864 = vunpack.c.l.b16 %v1604
    %v1865 = vunpack.c.l.b16 %v1605
    %v1866 = vunpack.c.l.b16 %v1606
    %v1867 = vunpack.c.l.b16 %v1607
    %v1868 = vunpack.c.l.b16 %v1608
    %v1869 = vunpack.c.l.b16 %v1609
    %v1870 = vunpack.c.l.b16 %v1610
    %v1871 = vunpack.c.l.b16 %v1611
    %v1872 = vunpack.c.l.b16 %v1612
    %v1873 = vunpack.c.l.b16 %v1613
    %v1874 = vunpack.c.l.b16 %v1614
    %v1875 = vunpack.c.l.b16 %v1615
    %v1876 = vunpack.c.l.b16 %v1616
    %v1877 = vunpack.c.l.b16 %v1617
    %v1878 = vunpack.c.l.b16 %v1618
    %v1879 = vunpack.c.l.b16 %v1619
    %v1880 = vunpack.c.l.b16 %v1620
    %v1881 = vunpack.c.l.b16 %v1621
    %v1882 = vunpack.c.l.b16 %v1622
    %v1883 = vunpack.c.l.b16 %v1623
    %v1884 = vunpack.c.l.b16 %v1624
    %v1885 = vunpack.c.l.b16 %v1625
    %v1886 = vunpack.c.l.b16 %v1626
    %v1887 = vunpack.c.l.b16 %v1627
    %v1888 = vunpack.c.l.b16 %v1628
    %v1889 = vunpack.c.l.b16 %v1629
    %v1890 = vunpack.c.l.b16 %v1630
    %v1891 = vunpack.c.l.b16 %v1631
    %v1892 = vunpack.c.l.b16 %v1632
    %v1893 = vunpack.c.l.b16 %v1633
    %v1894 = vunpack.c.l.b16 %v1634
    %v1895 = vunpack.c.l.b16 %v1635
    %v1896 = vunpack.c.l.b16 %v1636
    %v1897 = vunpack.c.l.b16 %v1637
    %v1898 = vunpack.c.l.b16 %v1638
    %v1899 = vunpack.c.l.b16 %v1639
    %v1900 = vunpack.c.l.b16 %v1640
    %v1901 = vunpack.c.l.b16 %v1641
    %v1902 = vunpack.c.l.b16 %v1642
    %v1903 = vunpack.c.l.b16 %v1643
    %v1904 = vunpack.c.l.b16 %v1644
    %v1905 = vunpack.c.l.b16 %v1645
    %v1906 = vunpack.c.l.b16 %v1646
    %v1907 = vunpack.c.l.b16 %v1647
    %v1908 = vunpack.c.l.b16 %v1648
    %v1909 = vunpack.c.l.b16 %v1649
    %v1910 = vunpack.c.l.b16 %v1650
    %v1911 = vunpack.c.l.b16 %v1651
    %v1912 = vunpack.c.l.b16 %v1652
    %v1913 = vunpack.c.l.b16 %v1653
    %v1914 = vunpack.c.l.b16 %v1654
    %v1915 = vunpack.c.l.b16 %v1655
    %v1916 = vunpack.c.l.b16 %v1656
    %v1917 = vunpack.c.l.b16 %v1657
    %v1918 = vunpack.c.l.b16 %v1658
    %v1919 = vunpack.c.l.b16 %v1659
    %v1920 = vunpack.c.l.b16 %v1660
    %v1921 = vunpack.c.l.b16 %v1661
    %v1922 = vunpack.c.l.b16 %v1662
    %v1923 = vunpack.c.l.b16 %v1663
    %v1924 = vunpack.c.l.b16 %v1664
    %v1925 = vunpack.c.l.b16 %v1665
    %v1926 = vunpack.c.l.b16 %v1666
    %v1927 = vpack.c.b16 %v1800, %v1799
    %v1928 = vpack.c.b16 %v1802, %v1801
    %v1929 = vpack.c.b16 %v1804, %v1803
    %v1930 = vpack.c.b16 %v1806, %v1805
    %v1931 = vpack.c.b16 %v1808, %v1807
    %v1932 = vpack.c.b16 %v1810, %v1809
    %v1933 = vpack.c.b16 %v1812, %v1811
    %v1934 = vpack.c.b16 %v1814, %v1813
    %v1935 = vpack.c.b16 %v1816, %v1815
    %v1936 = vpack.c.b16 %v1818, %v1817
    %v1937 = vpack.c.b16 %v1820, %v1819
    %v1938 = vpack.c.b16 %v1822, %v1821
    %v1939 = vpack.c.b16 %v1824, %v1823
    %v1940 = vpack.c.b16 %v1826, %v1825
    %v1941 = vpack.c.b16 %v1828, %v1827
    %v1942 = vpack.c.b16 %v1830, %v1829
    %v1943 = vpack.c.b16 %v1832, %v1831
    %v1944 = vpack.c.b16 %v1834, %v1833
    %v1945 = vpack.c.b16 %v1836, %v1835
    %v1946 = vpack.c.b16 %v1838, %v1837
    %v1947 = vpack.c.b16 %v1840, %v1839
    %v1948 = vpack.c.b16 %v1842, %v1841
    %v1949 = vpack.c.b16 %v1844, %v1843
    %v1950 = vpack.c.b16 %v1846, %v1845
    %v1951 = vpack.c.b16 %v1848, %v1847
    %v1952 = vpack.c.b16 %v1850, %v1849
    %v1953 = vpack.c.b16 %v1852, %v1851
    %v1954 = vpack.c.b16 %v1854, %v1853
    %v1955 = vpack.c.b16 %v1856, %v1855
    %v1956 = vpack.c.b16 %v1858, %v1857
    %v1957 = vpack.c.b16 %v1860, %v1859
    %v1958 = vpack.c.b16 %v1862, %v1861
    %v1959 = vpack.c.b16 %v1864, %v1863
    %v1960 = vpack.c.b16 %v1866, %v1865
    %v1961 = vpack.c.b16 %v1868, %v1867
    %v1962 = vpack.c.b16 %v1870, %v1869
    %v1963 = vpack.c.b16 %v1872, %v1871
    %v1964 = vpack.c.b16 %v1874, %v1873
    %v1965 = vpack.c.b16 %v1876, %v1875
    %v1966 = vpack.c.b16 %v1878, %v1877
    %v1967 = vpack.c.b16 %v1880, %v1879
    %v1968 = vpack.c.b16 %v1882, %v1881
    %v1969 = vpack.c.b16 %v1884, %v1883
    %v1970 = vpack.c.b16 %v1886, %v1885
    %v1971 = vpack.c.b16 %v1888, %v1887
    %v1972 = vpack.c.b16 %v1890, %v1889
    %v1973 = vpack.c.b16 %v1892, %v1891
    %v1974 = vpack.c.b16 %v1894, %v1893
    %v1975 = vpack.c.b16 %v1896, %v1895
    %v1976 = vpack.c.b16 %v1898, %v1897
    %v1977 = vpack.c.b16 %v1900, %v1899
    %v1978 = vpack.c.b16 %v1902, %v1901
    %v1979 = vpack.c.b16 %v1904, %v1903
    %v1980 = vpack.c.b16 %v1906, %v1905
    %v1981 = vpack.c.b16 %v1908, %v1907
    %v1982 = vpack.c.b16 %v1910, %v1909
    %v1983 = vpack.c.b16 %v1912, %v1911
    %v1984 = vpack.c.b16 %v1914, %v1913
    %v1985 = vpack.c.b16 %v1916, %v1915
    %v1986 = vpack.c.b16 %v1918, %v1917
    %v1987 = vpack.c.b16 %v1920, %v1919
    %v1988 = vpack.c.b16 %v1922, %v1921
    %v1989 = vpack.c.b16 %v1924, %v1923
    %v1990 = vpack.c.b16 %v1926, %v1925
    %2055 = vmatpush.bf16.msra.mxu0 %v1934
    %2056 = vmatpush.bf16.msra.mxu0 %v1933
    %2057 = vmatpush.bf16.msra.mxu0 %v1932
    %2058 = vmatpush.bf16.msra.mxu0 %v1931
    %2059 = vmatpush.bf16.msra.mxu0 %v1930
    %2060 = vmatpush.bf16.msra.mxu0 %v1929
    %2061 = vmatpush.bf16.msra.mxu0 %v1928
    %2062 = vmatpush.bf16.msra.mxu0 %v1927
    %2063 = vmatmul.bf16.gmra.mxu0 %v1531
    %v2064 = vpop.f32.mrf.mxu0
    %v2065 = vadd.f32 %v1669, %v2064
    %v2066 = vpop.f32.mrf.mxu0
    %2067 = vdwg.mxu0
    %2068 = vmatpush.bf16.msra.mxu0 %v1942
    %2069 = vmatpush.bf16.msra.mxu0 %v1941
    %2070 = vmatpush.bf16.msra.mxu0 %v1940
    %2071 = vmatpush.bf16.msra.mxu0 %v1939
    %2072 = vmatpush.bf16.msra.mxu0 %v1938
    %2073 = vmatpush.bf16.msra.mxu0 %v1937
    %2074 = vmatpush.bf16.msra.mxu0 %v1936
    %2075 = vmatpush.bf16.msra.mxu0 %v1935
    %2076 = vmatmul.bf16.gmra.mxu0 %v1532
    %v2077 = vpop.f32.mrf.mxu0
    %v2078 = vadd.f32 %v2065, %v2077
    %v2079 = vpop.f32.mrf.mxu0
    %2080 = vdwg.mxu0
    %2081 = vmatpush.bf16.msra.mxu0 %v1950
    %2082 = vmatpush.bf16.msra.mxu0 %v1949
    %2083 = vmatpush.bf16.msra.mxu0 %v1948
    %2084 = vmatpush.bf16.msra.mxu0 %v1947
    %2085 = vmatpush.bf16.msra.mxu0 %v1946
    %2086 = vmatpush.bf16.msra.mxu0 %v1945
    %2087 = vmatpush.bf16.msra.mxu0 %v1944
    %2088 = vmatpush.bf16.msra.mxu0 %v1943
    %2089 = vmatmul.bf16.gmra.mxu0 %v1533
    %v2090 = vpop.f32.mrf.mxu0
    %v2091 = vadd.f32 %v2078, %v2090
    %v2092 = vpop.f32.mrf.mxu0
    %2093 = vdwg.mxu0
    %2094 = vmatpush.bf16.msra.mxu0 %v1958
    %2095 = vmatpush.bf16.msra.mxu0 %v1957
    %2096 = vmatpush.bf16.msra.mxu0 %v1956
    %2097 = vmatpush.bf16.msra.mxu0 %v1955
    %2098 = vmatpush.bf16.msra.mxu0 %v1954
    %2099 = vmatpush.bf16.msra.mxu0 %v1953
    %2100 = vmatpush.bf16.msra.mxu0 %v1952
    %2101 = vmatpush.bf16.msra.mxu0 %v1951
    %2102 = vmatmul.bf16.gmra.mxu0 %v1534
    %v2103 = vpop.f32.mrf.mxu0
    %v2104 = vadd.f32 %v2091, %v2103
    %v2105 = vpop.f32.mrf.mxu0
    %2106 = vdwg.mxu0
    %2107 = vmatpush.bf16.msra.mxu0 %v1966
    %2108 = vmatpush.bf16.msra.mxu0 %v1965
    %2109 = vmatpush.bf16.msra.mxu0 %v1964
    %2110 = vmatpush.bf16.msra.mxu0 %v1963
    %2111 = vmatpush.bf16.msra.mxu0 %v1962
    %2112 = vmatpush.bf16.msra.mxu0 %v1961
    %2113 = vmatpush.bf16.msra.mxu0 %v1960
    %2114 = vmatpush.bf16.msra.mxu0 %v1959
    %2115 = vmatmul.bf16.gmra.mxu0 %v1535
    %v2116 = vpop.f32.mrf.mxu0
    %v2117 = vadd.f32 %v2104, %v2116
    %v2118 = vpop.f32.mrf.mxu0
    %2119 = vdwg.mxu0
    %2120 = vmatpush.bf16.msra.mxu0 %v1974
    %2121 = vmatpush.bf16.msra.mxu0 %v1973
    %2122 = vmatpush.bf16.msra.mxu0 %v1972
    %2123 = vmatpush.bf16.msra.mxu0 %v1971
    %2124 = vmatpush.bf16.msra.mxu0 %v1970
    %2125 = vmatpush.bf16.msra.mxu0 %v1969
    %2126 = vmatpush.bf16.msra.mxu0 %v1968
    %2127 = vmatpush.bf16.msra.mxu0 %v1967
    %2128 = vmatmul.bf16.gmra.mxu0 %v1536
    %v2129 = vpop.f32.mrf.mxu0
    %v2130 = vadd.f32 %v2117, %v2129
    %v2131 = vpop.f32.mrf.mxu0
    %2132 = vdwg.mxu0
    %2133 = vmatpush.bf16.msra.mxu0 %v1982
    %2134 = vmatpush.bf16.msra.mxu0 %v1981
    %2135 = vmatpush.bf16.msra.mxu0 %v1980
    %2136 = vmatpush.bf16.msra.mxu0 %v1979
    %2137 = vmatpush.bf16.msra.mxu0 %v1978
    %2138 = vmatpush.bf16.msra.mxu0 %v1977
    %2139 = vmatpush.bf16.msra.mxu0 %v1976
    %2140 = vmatpush.bf16.msra.mxu0 %v1975
    %2141 = vmatmul.bf16.gmra.mxu0 %v1537
    %v2142 = vpop.f32.mrf.mxu0
    %v2143 = vadd.f32 %v2130, %v2142
    %v2144 = vpop.f32.mrf.mxu0
    %2145 = vdwg.mxu0
    %2146 = vmatpush.bf16.msra.mxu0 %v1990
    %2147 = vmatpush.bf16.msra.mxu0 %v1989
    %2148 = vmatpush.bf16.msra.mxu0 %v1988
    %2149 = vmatpush.bf16.msra.mxu0 %v1987
    %2150 = vmatpush.bf16.msra.mxu0 %v1986
    %2151 = vmatpush.bf16.msra.mxu0 %v1985
    %2152 = vmatpush.bf16.msra.mxu0 %v1984
    %2153 = vmatpush.bf16.msra.mxu0 %v1983
    %2154 = vmatmul.bf16.gmra.mxu0 %v1538
    %v2155 = vpop.f32.mrf.mxu0
    %v2156 = vadd.f32 %v2143, %v2155
    %v2157 = vpop.f32.mrf.mxu0
    %2158 = vdwg.mxu0
    %v2159 = vmax.f32 %v2156, 0.0
    %v2160 = vpack.c.bf16 %v2159, %v2159
    %v2161 = vld [vmem:[#allocation4] sm:$0xff]
    %v2162 = vld [vmem:[#allocation4 + $0x8] sm:$0xff]
    %v2163 = vld [vmem:[#allocation4 + $0x10] sm:$0xff]
    %v2164 = vld [vmem:[#allocation4 + $0x18] sm:$0xff]
    %v2165 = vld [vmem:[#allocation4 + $0x20] sm:$0xff]
    %v2166 = vld [vmem:[#allocation4 + $0x28] sm:$0xff]
    %v2167 = vld [vmem:[#allocation4 + $0x30] sm:$0xff]
    %v2168 = vld [vmem:[#allocation4 + $0x38] sm:$0xff]
    %v2169 = vld [vmem:[#allocation4 + $0x40] sm:$0xff]
    %v2170 = vld [vmem:[#allocation4 + $0x48] sm:$0xff]
    %v2171 = vld [vmem:[#allocation4 + $0x50] sm:$0xff]
    %v2172 = vld [vmem:[#allocation4 + $0x58] sm:$0xff]
    %v2173 = vld [vmem:[#allocation4 + $0x60] sm:$0xff]
    %v2174 = vld [vmem:[#allocation4 + $0x68] sm:$0xff]
    %v2175 = vld [vmem:[#allocation4 + $0x70] sm:$0xff]
    %v2176 = vld [vmem:[#allocation4 + $0x78] sm:$0xff]
    %v2177 = vld [vmem:[#allocation4 + $0x80] sm:$0xff]
    %v2178 = vld [vmem:[#allocation4 + $0x88] sm:$0xff]
    %v2179 = vld [vmem:[#allocation4 + $0x90] sm:$0xff]
    %v2180 = vld [vmem:[#allocation4 + $0x98] sm:$0xff]
    %v2181 = vld [vmem:[#allocation4 + $0xa0] sm:$0xff]
    %v2182 = vld [vmem:[#allocation4 + $0xa8] sm:$0xff]
    %v2183 = vld [vmem:[#allocation4 + $0xb0] sm:$0xff]
    %v2184 = vld [vmem:[#allocation4 + $0xb8] sm:$0xff]
    %v2185 = vld [vmem:[#allocation4 + $0xc0] sm:$0xff]
    %v2186 = vld [vmem:[#allocation4 + $0xc8] sm:$0xff]
    %v2187 = vld [vmem:[#allocation4 + $0xd0] sm:$0xff]
    %v2188 = vld [vmem:[#allocation4 + $0xd8] sm:$0xff]
    %v2189 = vld [vmem:[#allocation4 + $0xe0] sm:$0xff]
    %v2190 = vld [vmem:[#allocation4 + $0xe8] sm:$0xff]
    %v2191 = vld [vmem:[#allocation4 + $0xf0] sm:$0xff]
    %v2192 = vld [vmem:[#allocation4 + $0xf8] sm:$0xff]
    %v2193 = vld [vmem:[#allocation4 + $0x100] sm:$0xff]
    %v2194 = vld [vmem:[#allocation4 + $0x108] sm:$0xff]
    %v2195 = vld [vmem:[#allocation4 + $0x110] sm:$0xff]
    %v2196 = vld [vmem:[#allocation4 + $0x118] sm:$0xff]
    %v2197 = vld [vmem:[#allocation4 + $0x120] sm:$0xff]
    %v2198 = vld [vmem:[#allocation4 + $0x128] sm:$0xff]
    %v2199 = vld [vmem:[#allocation4 + $0x130] sm:$0xff]
    %v2200 = vld [vmem:[#allocation4 + $0x138] sm:$0xff]
    %v2201 = vld [vmem:[#allocation4 + $0x140] sm:$0xff]
    %v2202 = vld [vmem:[#allocation4 + $0x148] sm:$0xff]
    %v2203 = vld [vmem:[#allocation4 + $0x150] sm:$0xff]
    %v2204 = vld [vmem:[#allocation4 + $0x158] sm:$0xff]
    %v2205 = vld [vmem:[#allocation4 + $0x160] sm:$0xff]
    %v2206 = vld [vmem:[#allocation4 + $0x168] sm:$0xff]
    %v2207 = vld [vmem:[#allocation4 + $0x170] sm:$0xff]
    %v2208 = vld [vmem:[#allocation4 + $0x178] sm:$0xff]
    %v2209 = vld [vmem:[#allocation4 + $0x180] sm:$0xff]
    %v2210 = vld [vmem:[#allocation4 + $0x188] sm:$0xff]
    %v2211 = vld [vmem:[#allocation4 + $0x190] sm:$0xff]
    %v2212 = vld [vmem:[#allocation4 + $0x198] sm:$0xff]
    %v2213 = vld [vmem:[#allocation4 + $0x1a0] sm:$0xff]
    %v2214 = vld [vmem:[#allocation4 + $0x1a8] sm:$0xff]
    %v2215 = vld [vmem:[#allocation4 + $0x1b0] sm:$0xff]
    %v2216 = vld [vmem:[#allocation4 + $0x1b8] sm:$0xff]
    %v2217 = vld [vmem:[#allocation4 + $0x1c0] sm:$0xff]
    %v2218 = vld [vmem:[#allocation4 + $0x1c8] sm:$0xff]
    %v2219 = vld [vmem:[#allocation4 + $0x1d0] sm:$0xff]
    %v2220 = vld [vmem:[#allocation4 + $0x1d8] sm:$0xff]
    %v2221 = vld [vmem:[#allocation4 + $0x1e0] sm:$0xff]
    %v2222 = vld [vmem:[#allocation4 + $0x1e8] sm:$0xff]
    %v2223 = vld [vmem:[#allocation4 + $0x1f0] sm:$0xff]
    %v2224 = vld [vmem:[#allocation4 + $0x1f8] sm:$0xff]
    %v2225 = vld [vmem:[%s7] sm:$0xff]
    %v2227 = vperm.slane %v2225, 0
    %v2228 = vperm.slane %v2225, 1
    %v2229 = vperm.slane %v2225, 2
    %v2230 = vperm.slane %v2225, 3
    %v2231 = vperm.slane %v2225, 4
    %v2232 = vperm.slane %v2225, 5
    %v2233 = vperm.slane %v2225, 6
    %v2234 = vperm.slane %v2225, 7
    %v2307 = vunpack.c.l.b16 %v2161
    %v2308 = vunpack.c.h.b16 %v2161
    %v2309 = vunpack.c.l.b16 %v2162
    %v2310 = vunpack.c.h.b16 %v2162
    %v2311 = vunpack.c.l.b16 %v2163
    %v2312 = vunpack.c.h.b16 %v2163
    %v2313 = vunpack.c.l.b16 %v2164
    %v2314 = vunpack.c.h.b16 %v2164
    %v2315 = vunpack.c.l.b16 %v2165
    %v2316 = vunpack.c.h.b16 %v2165
    %v2317 = vunpack.c.l.b16 %v2166
    %v2318 = vunpack.c.h.b16 %v2166
    %v2319 = vunpack.c.l.b16 %v2167
    %v2320 = vunpack.c.h.b16 %v2167
    %v2321 = vunpack.c.l.b16 %v2168
    %v2322 = vunpack.c.h.b16 %v2168
    %v2323 = vunpack.c.l.b16 %v2169
    %v2324 = vunpack.c.h.b16 %v2169
    %v2325 = vunpack.c.l.b16 %v2170
    %v2326 = vunpack.c.h.b16 %v2170
    %v2327 = vunpack.c.l.b16 %v2171
    %v2328 = vunpack.c.h.b16 %v2171
    %v2329 = vunpack.c.l.b16 %v2172
    %v2330 = vunpack.c.h.b16 %v2172
    %v2331 = vunpack.c.l.b16 %v2173
    %v2332 = vunpack.c.h.b16 %v2173
    %v2333 = vunpack.c.l.b16 %v2174
    %v2334 = vunpack.c.h.b16 %v2174
    %v2335 = vunpack.c.l.b16 %v2175
    %v2336 = vunpack.c.h.b16 %v2175
    %v2337 = vunpack.c.l.b16 %v2176
    %v2338 = vunpack.c.h.b16 %v2176
    %v2339 = vunpack.c.l.b16 %v2177
    %v2340 = vunpack.c.h.b16 %v2177
    %v2341 = vunpack.c.l.b16 %v2178
    %v2342 = vunpack.c.h.b16 %v2178
    %v2343 = vunpack.c.l.b16 %v2179
    %v2344 = vunpack.c.h.b16 %v2179
    %v2345 = vunpack.c.l.b16 %v2180
    %v2346 = vunpack.c.h.b16 %v2180
    %v2347 = vunpack.c.l.b16 %v2181
    %v2348 = vunpack.c.h.b16 %v2181
    %v2349 = vunpack.c.l.b16 %v2182
    %v2350 = vunpack.c.h.b16 %v2182
    %v2351 = vunpack.c.l.b16 %v2183
    %v2352 = vunpack.c.h.b16 %v2183
    %v2353 = vunpack.c.l.b16 %v2184
    %v2354 = vunpack.c.h.b16 %v2184
    %v2355 = vunpack.c.l.b16 %v2185
    %v2356 = vunpack.c.h.b16 %v2185
    %v2357 = vunpack.c.l.b16 %v2186
    %v2358 = vunpack.c.h.b16 %v2186
    %v2359 = vunpack.c.l.b16 %v2187
    %v2360 = vunpack.c.h.b16 %v2187
    %v2361 = vunpack.c.l.b16 %v2188
    %v2362 = vunpack.c.h.b16 %v2188
    %v2363 = vunpack.c.l.b16 %v2189
    %v2364 = vunpack.c.h.b16 %v2189
    %v2365 = vunpack.c.l.b16 %v2190
    %v2366 = vunpack.c.h.b16 %v2190
    %v2367 = vunpack.c.l.b16 %v2191
    %v2368 = vunpack.c.h.b16 %v2191
    %v2369 = vunpack.c.l.b16 %v2192
    %v2370 = vunpack.c.h.b16 %v2192
    %v2371 = vunpack.c.l.b16 %v2193
    %v2372 = vunpack.c.h.b16 %v2193
    %v2373 = vunpack.c.l.b16 %v2194
    %v2374 = vunpack.c.h.b16 %v2194
    %v2375 = vunpack.c.l.b16 %v2195
    %v2376 = vunpack.c.h.b16 %v2195
    %v2377 = vunpack.c.l.b16 %v2196
    %v2378 = vunpack.c.h.b16 %v2196
    %v2379 = vunpack.c.l.b16 %v2197
    %v2380 = vunpack.c.h.b16 %v2197
    %v2381 = vunpack.c.l.b16 %v2198
    %v2382 = vunpack.c.h.b16 %v2198
    %v2383 = vunpack.c.l.b16 %v2199
    %v2384 = vunpack.c.h.b16 %v2199
    %v2385 = vunpack.c.l.b16 %v2200
    %v2386 = vunpack.c.h.b16 %v2200
    %v2387 = vunpack.c.l.b16 %v2201
    %v2388 = vunpack.c.h.b16 %v2201
    %v2389 = vunpack.c.l.b16 %v2202
    %v2390 = vunpack.c.h.b16 %v2202
    %v2391 = vunpack.c.l.b16 %v2203
    %v2392 = vunpack.c.h.b16 %v2203
    %v2393 = vunpack.c.l.b16 %v2204
    %v2394 = vunpack.c.h.b16 %v2204
    %v2395 = vunpack.c.l.b16 %v2205
    %v2396 = vunpack.c.h.b16 %v2205
    %v2397 = vunpack.c.l.b16 %v2206
    %v2398 = vunpack.c.h.b16 %v2206
    %v2399 = vunpack.c.l.b16 %v2207
    %v2400 = vunpack.c.h.b16 %v2207
    %v2401 = vunpack.c.l.b16 %v2208
    %v2402 = vunpack.c.h.b16 %v2208
    %v2403 = vunpack.c.l.b16 %v2209
    %v2404 = vunpack.c.h.b16 %v2209
    %v2405 = vunpack.c.l.b16 %v2210
    %v2406 = vunpack.c.h.b16 %v2210
    %v2407 = vunpack.c.l.b16 %v2211
    %v2408 = vunpack.c.h.b16 %v2211
    %v2409 = vunpack.c.l.b16 %v2212
    %v2410 = vunpack.c.h.b16 %v2212
    %v2411 = vunpack.c.l.b16 %v2213
    %v2412 = vunpack.c.h.b16 %v2213
    %v2413 = vunpack.c.l.b16 %v2214
    %v2414 = vunpack.c.h.b16 %v2214
    %v2415 = vunpack.c.l.b16 %v2215
    %v2416 = vunpack.c.h.b16 %v2215
    %v2417 = vunpack.c.l.b16 %v2216
    %v2418 = vunpack.c.h.b16 %v2216
    %v2419 = vunpack.c.l.b16 %v2217
    %v2420 = vunpack.c.h.b16 %v2217
    %v2421 = vunpack.c.l.b16 %v2218
    %v2422 = vunpack.c.h.b16 %v2218
    %v2423 = vunpack.c.l.b16 %v2219
    %v2424 = vunpack.c.h.b16 %v2219
    %v2425 = vunpack.c.l.b16 %v2220
    %v2426 = vunpack.c.h.b16 %v2220
    %v2427 = vunpack.c.l.b16 %v2221
    %v2428 = vunpack.c.h.b16 %v2221
    %v2429 = vunpack.c.l.b16 %v2222
    %v2430 = vunpack.c.h.b16 %v2222
    %v2431 = vunpack.c.l.b16 %v2223
    %v2432 = vunpack.c.h.b16 %v2223
    %v2433 = vunpack.c.l.b16 %v2224
    %v2434 = vunpack.c.h.b16 %v2224
    %v2435 = vpack.c.b16 %v2315, %v2307
    %v2436 = vpack.c.b16 %v2316, %v2308
    %v2437 = vpack.c.b16 %v2317, %v2309
    %v2438 = vpack.c.b16 %v2318, %v2310
    %v2439 = vpack.c.b16 %v2319, %v2311
    %v2440 = vpack.c.b16 %v2320, %v2312
    %v2441 = vpack.c.b16 %v2321, %v2313
    %v2442 = vpack.c.b16 %v2322, %v2314
    %v2443 = vpack.c.b16 %v2331, %v2323
    %v2444 = vpack.c.b16 %v2332, %v2324
    %v2445 = vpack.c.b16 %v2333, %v2325
    %v2446 = vpack.c.b16 %v2334, %v2326
    %v2447 = vpack.c.b16 %v2335, %v2327
    %v2448 = vpack.c.b16 %v2336, %v2328
    %v2449 = vpack.c.b16 %v2337, %v2329
    %v2450 = vpack.c.b16 %v2338, %v2330
    %v2451 = vpack.c.b16 %v2347, %v2339
    %v2452 = vpack.c.b16 %v2348, %v2340
    %v2453 = vpack.c.b16 %v2349, %v2341
    %v2454 = vpack.c.b16 %v2350, %v2342
    %v2455 = vpack.c.b16 %v2351, %v2343
    %v2456 = vpack.c.b16 %v2352, %v2344
    %v2457 = vpack.c.b16 %v2353, %v2345
    %v2458 = vpack.c.b16 %v2354, %v2346
    %v2459 = vpack.c.b16 %v2363, %v2355
    %v2460 = vpack.c.b16 %v2364, %v2356
    %v2461 = vpack.c.b16 %v2365, %v2357
    %v2462 = vpack.c.b16 %v2366, %v2358
    %v2463 = vpack.c.b16 %v2367, %v2359
    %v2464 = vpack.c.b16 %v2368, %v2360
    %v2465 = vpack.c.b16 %v2369, %v2361
    %v2466 = vpack.c.b16 %v2370, %v2362
    %v2467 = vpack.c.b16 %v2379, %v2371
    %v2468 = vpack.c.b16 %v2380, %v2372
    %v2469 = vpack.c.b16 %v2381, %v2373
    %v2470 = vpack.c.b16 %v2382, %v2374
    %v2471 = vpack.c.b16 %v2383, %v2375
    %v2472 = vpack.c.b16 %v2384, %v2376
    %v2473 = vpack.c.b16 %v2385, %v2377
    %v2474 = vpack.c.b16 %v2386, %v2378
    %v2475 = vpack.c.b16 %v2395, %v2387
    %v2476 = vpack.c.b16 %v2396, %v2388
    %v2477 = vpack.c.b16 %v2397, %v2389
    %v2478 = vpack.c.b16 %v2398, %v2390
    %v2479 = vpack.c.b16 %v2399, %v2391
    %v2480 = vpack.c.b16 %v2400, %v2392
    %v2481 = vpack.c.b16 %v2401, %v2393
    %v2482 = vpack.c.b16 %v2402, %v2394
    %v2483 = vpack.c.b16 %v2411, %v2403
    %v2484 = vpack.c.b16 %v2412, %v2404
    %v2485 = vpack.c.b16 %v2413, %v2405
    %v2486 = vpack.c.b16 %v2414, %v2406
    %v2487 = vpack.c.b16 %v2415, %v2407
    %v2488 = vpack.c.b16 %v2416, %v2408
    %v2489 = vpack.c.b16 %v2417, %v2409
    %v2490 = vpack.c.b16 %v2418, %v2410
    %v2491 = vpack.c.b16 %v2427, %v2419
    %v2492 = vpack.c.b16 %v2428, %v2420
    %v2493 = vpack.c.b16 %v2429, %v2421
    %v2494 = vpack.c.b16 %v2430, %v2422
    %v2495 = vpack.c.b16 %v2431, %v2423
    %v2496 = vpack.c.b16 %v2432, %v2424
    %v2497 = vpack.c.b16 %v2433, %v2425
    %v2498 = vpack.c.b16 %v2434, %v2426
    %2563 = vmatpush.bf16.msra.mxu0 %v2491
    %2564 = vmatpush.bf16.msra.mxu0 %v2483
    %2565 = vmatpush.bf16.msra.mxu0 %v2475
    %2566 = vmatpush.bf16.msra.mxu0 %v2467
    %2567 = vmatpush.bf16.msra.mxu0 %v2459
    %2568 = vmatpush.bf16.msra.mxu0 %v2451
    %2569 = vmatpush.bf16.msra.mxu0 %v2443
    %2570 = vmatpush.bf16.msra.mxu0 %v2435
    %2571 = vmatmul.bf16.gmra.mxu0 %v2160
    %v2572 = vpop.f32.mrf.mxu0
    %v2573 = vadd.f32 %v2227, %v2572
    %v2574 = vpop.f32.mrf.mxu0
    %2575 = vdwg.mxu0
    %2576 = vmatpush.bf16.msra.mxu0 %v2492
    %2577 = vmatpush.bf16.msra.mxu0 %v2484
    %2578 = vmatpush.bf16.msra.mxu0 %v2476
    %2579 = vmatpush.bf16.msra.mxu0 %v2468
    %2580 = vmatpush.bf16.msra.mxu0 %v2460
    %2581 = vmatpush.bf16.msra.mxu0 %v2452
    %2582 = vmatpush.bf16.msra.mxu0 %v2444
    %2583 = vmatpush.bf16.msra.mxu0 %v2436
    %2584 = vmatmul.bf16.gmra.mxu0 %v2160
    %v2585 = vpop.f32.mrf.mxu0
    %v2586 = vadd.f32 %v2228, %v2585
    %v2587 = vpop.f32.mrf.mxu0
    %2588 = vdwg.mxu0
    %2589 = vmatpush.bf16.msra.mxu0 %v2493
    %2590 = vmatpush.bf16.msra.mxu0 %v2485
    %2591 = vmatpush.bf16.msra.mxu0 %v2477
    %2592 = vmatpush.bf16.msra.mxu0 %v2469
    %2593 = vmatpush.bf16.msra.mxu0 %v2461
    %2594 = vmatpush.bf16.msra.mxu0 %v2453
    %2595 = vmatpush.bf16.msra.mxu0 %v2445
    %2596 = vmatpush.bf16.msra.mxu0 %v2437
    %2597 = vmatmul.bf16.gmra.mxu0 %v2160
    %v2598 = vpop.f32.mrf.mxu0
    %v2599 = vadd.f32 %v2229, %v2598
    %v2600 = vpop.f32.mrf.mxu0
    %2601 = vdwg.mxu0
    %2602 = vmatpush.bf16.msra.mxu0 %v2494
    %2603 = vmatpush.bf16.msra.mxu0 %v2486
    %2604 = vmatpush.bf16.msra.mxu0 %v2478
    %2605 = vmatpush.bf16.msra.mxu0 %v2470
    %2606 = vmatpush.bf16.msra.mxu0 %v2462
    %2607 = vmatpush.bf16.msra.mxu0 %v2454
    %2608 = vmatpush.bf16.msra.mxu0 %v2446
    %2609 = vmatpush.bf16.msra.mxu0 %v2438
    %2610 = vmatmul.bf16.gmra.mxu0 %v2160
    %v2611 = vpop.f32.mrf.mxu0
    %v2612 = vadd.f32 %v2230, %v2611
    %v2613 = vpop.f32.mrf.mxu0
    %2614 = vdwg.mxu0
    %2615 = vmatpush.bf16.msra.mxu0 %v2495
    %2616 = vmatpush.bf16.msra.mxu0 %v2487
    %2617 = vmatpush.bf16.msra.mxu0 %v2479
    %2618 = vmatpush.bf16.msra.mxu0 %v2471
    %2619 = vmatpush.bf16.msra.mxu0 %v2463
    %2620 = vmatpush.bf16.msra.mxu0 %v2455
    %2621 = vmatpush.bf16.msra.mxu0 %v2447
    %2622 = vmatpush.bf16.msra.mxu0 %v2439
    %2623 = vmatmul.bf16.gmra.mxu0 %v2160
    %v2624 = vpop.f32.mrf.mxu0
    %v2625 = vadd.f32 %v2231, %v2624
    %v2626 = vpop.f32.mrf.mxu0
    %2627 = vdwg.mxu0
    %2628 = vmatpush.bf16.msra.mxu0 %v2496
    %2629 = vmatpush.bf16.msra.mxu0 %v2488
    %2630 = vmatpush.bf16.msra.mxu0 %v2480
    %2631 = vmatpush.bf16.msra.mxu0 %v2472
    %2632 = vmatpush.bf16.msra.mxu0 %v2464
    %2633 = vmatpush.bf16.msra.mxu0 %v2456
    %2634 = vmatpush.bf16.msra.mxu0 %v2448
    %2635 = vmatpush.bf16.msra.mxu0 %v2440
    %2636 = vmatmul.bf16.gmra.mxu0 %v2160
    %v2637 = vpop.f32.mrf.mxu0
    %v2638 = vadd.f32 %v2232, %v2637
    %v2639 = vpop.f32.mrf.mxu0
    %2640 = vdwg.mxu0
    %2641 = vmatpush.bf16.msra.mxu0 %v2497
    %2642 = vmatpush.bf16.msra.mxu0 %v2489
    %2643 = vmatpush.bf16.msra.mxu0 %v2481
    %2644 = vmatpush.bf16.msra.mxu0 %v2473
    %2645 = vmatpush.bf16.msra.mxu0 %v2465
    %2646 = vmatpush.bf16.msra.mxu0 %v2457
    %2647 = vmatpush.bf16.msra.mxu0 %v2449
    %2648 = vmatpush.bf16.msra.mxu0 %v2441
    %2649 = vmatmul.bf16.gmra.mxu0 %v2160
    %v2650 = vpop.f32.mrf.mxu0
    %v2651 = vadd.f32 %v2233, %v2650
    %v2652 = vpop.f32.mrf.mxu0
    %2653 = vdwg.mxu0
    %2654 = vmatpush.bf16.msra.mxu0 %v2498
    %2655 = vmatpush.bf16.msra.mxu0 %v2490
    %2656 = vmatpush.bf16.msra.mxu0 %v2482
    %2657 = vmatpush.bf16.msra.mxu0 %v2474
    %2658 = vmatpush.bf16.msra.mxu0 %v2466
    %2659 = vmatpush.bf16.msra.mxu0 %v2458
    %2660 = vmatpush.bf16.msra.mxu0 %v2450
    %2661 = vmatpush.bf16.msra.mxu0 %v2442
    %2662 = vmatmul.bf16.gmra.mxu0 %v2160
    %v2663 = vpop.f32.mrf.mxu0
    %v2664 = vadd.f32 %v2234, %v2663
    %v2665 = vpop.f32.mrf.mxu0
    %2666 = vdwg.mxu0
    %v2667 = vmax.f32 %v2573, 0.0
    %v2668 = vmax.f32 %v2586, 0.0
    %v2669 = vmax.f32 %v2599, 0.0
    %v2670 = vmax.f32 %v2612, 0.0
    %v2671 = vmax.f32 %v2625, 0.0
    %v2672 = vmax.f32 %v2638, 0.0
    %v2673 = vmax.f32 %v2651, 0.0
    %v2674 = vmax.f32 %v2664, 0.0
    %v2675 = vpack.c.bf16 %v2667, %v2667
    %v2676 = vpack.c.bf16 %v2668, %v2668
    %v2677 = vpack.c.bf16 %v2669, %v2669
    %v2678 = vpack.c.bf16 %v2670, %v2670
    %v2679 = vpack.c.bf16 %v2671, %v2671
    %v2680 = vpack.c.bf16 %v2672, %v2672
    %v2681 = vpack.c.bf16 %v2673, %v2673
    %v2682 = vpack.c.bf16 %v2674, %v2674
    %v2683 = vld [vmem:[#allocation6] sm:$0xff]
    %v2684 = vld [vmem:[#allocation6 + $0x8] sm:$0xff]
    %v2685 = vld [vmem:[#allocation6 + $0x10] sm:$0xff]
    %v2686 = vld [vmem:[#allocation6 + $0x18] sm:$0xff]
    %v2687 = vld [vmem:[#allocation6 + $0x20] sm:$0xff]
    %v2688 = vld [vmem:[#allocation6 + $0x28] sm:$0xff]
    %v2689 = vld [vmem:[#allocation6 + $0x30] sm:$0xff]
    %v2690 = vld [vmem:[#allocation6 + $0x38] sm:$0xff]
    %v2691 = vld [vmem:[#allocation6 + $0x40] sm:$0xff]
    %v2692 = vld [vmem:[#allocation6 + $0x48] sm:$0xff]
    %v2693 = vld [vmem:[#allocation6 + $0x50] sm:$0xff]
    %v2694 = vld [vmem:[#allocation6 + $0x58] sm:$0xff]
    %v2695 = vld [vmem:[#allocation6 + $0x60] sm:$0xff]
    %v2696 = vld [vmem:[#allocation6 + $0x68] sm:$0xff]
    %v2697 = vld [vmem:[#allocation6 + $0x70] sm:$0xff]
    %v2698 = vld [vmem:[#allocation6 + $0x78] sm:$0xff]
    %v2699 = vld [vmem:[#allocation6 + $0x80] sm:$0xff]
    %v2700 = vld [vmem:[#allocation6 + $0x88] sm:$0xff]
    %v2701 = vld [vmem:[#allocation6 + $0x90] sm:$0xff]
    %v2702 = vld [vmem:[#allocation6 + $0x98] sm:$0xff]
    %v2703 = vld [vmem:[#allocation6 + $0xa0] sm:$0xff]
    %v2704 = vld [vmem:[#allocation6 + $0xa8] sm:$0xff]
    %v2705 = vld [vmem:[#allocation6 + $0xb0] sm:$0xff]
    %v2706 = vld [vmem:[#allocation6 + $0xb8] sm:$0xff]
    %v2707 = vld [vmem:[#allocation6 + $0xc0] sm:$0xff]
    %v2708 = vld [vmem:[#allocation6 + $0xc8] sm:$0xff]
    %v2709 = vld [vmem:[#allocation6 + $0xd0] sm:$0xff]
    %v2710 = vld [vmem:[#allocation6 + $0xd8] sm:$0xff]
    %v2711 = vld [vmem:[#allocation6 + $0xe0] sm:$0xff]
    %v2712 = vld [vmem:[#allocation6 + $0xe8] sm:$0xff]
    %v2713 = vld [vmem:[#allocation6 + $0xf0] sm:$0xff]
    %v2714 = vld [vmem:[#allocation6 + $0xf8] sm:$0xff]
    %v2715 = vld [vmem:[#allocation6 + $0x100] sm:$0xff]
    %v2716 = vld [vmem:[#allocation6 + $0x108] sm:$0xff]
    %v2717 = vld [vmem:[#allocation6 + $0x110] sm:$0xff]
    %v2718 = vld [vmem:[#allocation6 + $0x118] sm:$0xff]
    %v2719 = vld [vmem:[#allocation6 + $0x120] sm:$0xff]
    %v2720 = vld [vmem:[#allocation6 + $0x128] sm:$0xff]
    %v2721 = vld [vmem:[#allocation6 + $0x130] sm:$0xff]
    %v2722 = vld [vmem:[#allocation6 + $0x138] sm:$0xff]
    %v2723 = vld [vmem:[#allocation6 + $0x140] sm:$0xff]
    %v2724 = vld [vmem:[#allocation6 + $0x148] sm:$0xff]
    %v2725 = vld [vmem:[#allocation6 + $0x150] sm:$0xff]
    %v2726 = vld [vmem:[#allocation6 + $0x158] sm:$0xff]
    %v2727 = vld [vmem:[#allocation6 + $0x160] sm:$0xff]
    %v2728 = vld [vmem:[#allocation6 + $0x168] sm:$0xff]
    %v2729 = vld [vmem:[#allocation6 + $0x170] sm:$0xff]
    %v2730 = vld [vmem:[#allocation6 + $0x178] sm:$0xff]
    %v2731 = vld [vmem:[#allocation6 + $0x180] sm:$0xff]
    %v2732 = vld [vmem:[#allocation6 + $0x188] sm:$0xff]
    %v2733 = vld [vmem:[#allocation6 + $0x190] sm:$0xff]
    %v2734 = vld [vmem:[#allocation6 + $0x198] sm:$0xff]
    %v2735 = vld [vmem:[#allocation6 + $0x1a0] sm:$0xff]
    %v2736 = vld [vmem:[#allocation6 + $0x1a8] sm:$0xff]
    %v2737 = vld [vmem:[#allocation6 + $0x1b0] sm:$0xff]
    %v2738 = vld [vmem:[#allocation6 + $0x1b8] sm:$0xff]
    %v2739 = vld [vmem:[#allocation6 + $0x1c0] sm:$0xff]
    %v2740 = vld [vmem:[#allocation6 + $0x1c8] sm:$0xff]
    %v2741 = vld [vmem:[#allocation6 + $0x1d0] sm:$0xff]
    %v2742 = vld [vmem:[#allocation6 + $0x1d8] sm:$0xff]
    %v2743 = vld [vmem:[#allocation6 + $0x1e0] sm:$0xff]
    %v2744 = vld [vmem:[#allocation6 + $0x1e8] sm:$0xff]
    %v2745 = vld [vmem:[#allocation6 + $0x1f0] sm:$0xff]
    %v2746 = vld [vmem:[#allocation6 + $0x1f8] sm:$0xff]
    %v2747 = vld [vmem:[#allocation6 + $0x200] sm:$0xff]
    %v2748 = vld [vmem:[#allocation6 + $0x208] sm:$0xff]
    %v2749 = vld [vmem:[#allocation6 + $0x210] sm:$0xff]
    %v2750 = vld [vmem:[#allocation6 + $0x218] sm:$0xff]
    %v2751 = vld [vmem:[#allocation6 + $0x220] sm:$0xff]
    %v2752 = vld [vmem:[#allocation6 + $0x228] sm:$0xff]
    %v2753 = vld [vmem:[#allocation6 + $0x230] sm:$0xff]
    %v2754 = vld [vmem:[#allocation6 + $0x238] sm:$0xff]
    %v2755 = vld [vmem:[#allocation6 + $0x240] sm:$0xff]
    %v2756 = vld [vmem:[#allocation6 + $0x248] sm:$0xff]
    %v2757 = vld [vmem:[#allocation6 + $0x250] sm:$0xff]
    %v2758 = vld [vmem:[#allocation6 + $0x258] sm:$0xff]
    %v2759 = vld [vmem:[#allocation6 + $0x260] sm:$0xff]
    %v2760 = vld [vmem:[#allocation6 + $0x268] sm:$0xff]
    %v2761 = vld [vmem:[#allocation6 + $0x270] sm:$0xff]
    %v2762 = vld [vmem:[#allocation6 + $0x278] sm:$0xff]
    %v2763 = vld [vmem:[#allocation6 + $0x280] sm:$0xff]
    %v2764 = vld [vmem:[#allocation6 + $0x288] sm:$0xff]
    %v2765 = vld [vmem:[#allocation6 + $0x290] sm:$0xff]
    %v2766 = vld [vmem:[#allocation6 + $0x298] sm:$0xff]
    %v2767 = vld [vmem:[#allocation6 + $0x2a0] sm:$0xff]
    %v2768 = vld [vmem:[#allocation6 + $0x2a8] sm:$0xff]
    %v2769 = vld [vmem:[#allocation6 + $0x2b0] sm:$0xff]
    %v2770 = vld [vmem:[#allocation6 + $0x2b8] sm:$0xff]
    %v2771 = vld [vmem:[#allocation6 + $0x2c0] sm:$0xff]
    %v2772 = vld [vmem:[#allocation6 + $0x2c8] sm:$0xff]
    %v2773 = vld [vmem:[#allocation6 + $0x2d0] sm:$0xff]
    %v2774 = vld [vmem:[#allocation6 + $0x2d8] sm:$0xff]
    %v2775 = vld [vmem:[#allocation6 + $0x2e0] sm:$0xff]
    %v2776 = vld [vmem:[#allocation6 + $0x2e8] sm:$0xff]
    %v2777 = vld [vmem:[#allocation6 + $0x2f0] sm:$0xff]
    %v2778 = vld [vmem:[#allocation6 + $0x2f8] sm:$0xff]
    %v2779 = vld [vmem:[#allocation6 + $0x300] sm:$0xff]
    %v2780 = vld [vmem:[#allocation6 + $0x308] sm:$0xff]
    %v2781 = vld [vmem:[#allocation6 + $0x310] sm:$0xff]
    %v2782 = vld [vmem:[#allocation6 + $0x318] sm:$0xff]
    %v2783 = vld [vmem:[#allocation6 + $0x320] sm:$0xff]
    %v2784 = vld [vmem:[#allocation6 + $0x328] sm:$0xff]
    %v2785 = vld [vmem:[#allocation6 + $0x330] sm:$0xff]
    %v2786 = vld [vmem:[#allocation6 + $0x338] sm:$0xff]
    %v2787 = vld [vmem:[#allocation6 + $0x340] sm:$0xff]
    %v2788 = vld [vmem:[#allocation6 + $0x348] sm:$0xff]
    %v2789 = vld [vmem:[#allocation6 + $0x350] sm:$0xff]
    %v2790 = vld [vmem:[#allocation6 + $0x358] sm:$0xff]
    %v2791 = vld [vmem:[#allocation6 + $0x360] sm:$0xff]
    %v2792 = vld [vmem:[#allocation6 + $0x368] sm:$0xff]
    %v2793 = vld [vmem:[#allocation6 + $0x370] sm:$0xff]
    %v2794 = vld [vmem:[#allocation6 + $0x378] sm:$0xff]
    %v2795 = vld [vmem:[#allocation6 + $0x380] sm:$0xff]
    %v2796 = vld [vmem:[#allocation6 + $0x388] sm:$0xff]
    %v2797 = vld [vmem:[#allocation6 + $0x390] sm:$0xff]
    %v2798 = vld [vmem:[#allocation6 + $0x398] sm:$0xff]
    %v2799 = vld [vmem:[#allocation6 + $0x3a0] sm:$0xff]
    %v2800 = vld [vmem:[#allocation6 + $0x3a8] sm:$0xff]
    %v2801 = vld [vmem:[#allocation6 + $0x3b0] sm:$0xff]
    %v2802 = vld [vmem:[#allocation6 + $0x3b8] sm:$0xff]
    %v2803 = vld [vmem:[#allocation6 + $0x3c0] sm:$0xff]
    %v2804 = vld [vmem:[#allocation6 + $0x3c8] sm:$0xff]
    %v2805 = vld [vmem:[#allocation6 + $0x3d0] sm:$0xff]
    %v2806 = vld [vmem:[#allocation6 + $0x3d8] sm:$0xff]
    %v2807 = vld [vmem:[#allocation6 + $0x3e0] sm:$0xff]
    %v2808 = vld [vmem:[#allocation6 + $0x3e8] sm:$0xff]
    %v2809 = vld [vmem:[#allocation6 + $0x3f0] sm:$0xff]
    %v2810 = vld [vmem:[#allocation6 + $0x3f8] sm:$0xff]
    %v2811 = vld [vmem:[%s9] sm:$0x3]
    %v2813 = vperm.slane %v2811, 0
    %v2814 = vperm.slane %v2811, 1
    %v2945 = vunpack.c.l.b16 %v2683
    %v2946 = vunpack.c.h.b16 %v2683
    %v2947 = vunpack.c.l.b16 %v2684
    %v2948 = vunpack.c.h.b16 %v2684
    %v2949 = vunpack.c.l.b16 %v2685
    %v2950 = vunpack.c.h.b16 %v2685
    %v2951 = vunpack.c.l.b16 %v2686
    %v2952 = vunpack.c.h.b16 %v2686
    %v2953 = vunpack.c.l.b16 %v2687
    %v2954 = vunpack.c.h.b16 %v2687
    %v2955 = vunpack.c.l.b16 %v2688
    %v2956 = vunpack.c.h.b16 %v2688
    %v2957 = vunpack.c.l.b16 %v2689
    %v2958 = vunpack.c.h.b16 %v2689
    %v2959 = vunpack.c.l.b16 %v2690
    %v2960 = vunpack.c.h.b16 %v2690
    %v2961 = vunpack.c.l.b16 %v2691
    %v2962 = vunpack.c.h.b16 %v2691
    %v2963 = vunpack.c.l.b16 %v2692
    %v2964 = vunpack.c.h.b16 %v2692
    %v2965 = vunpack.c.l.b16 %v2693
    %v2966 = vunpack.c.h.b16 %v2693
    %v2967 = vunpack.c.l.b16 %v2694
    %v2968 = vunpack.c.h.b16 %v2694
    %v2969 = vunpack.c.l.b16 %v2695
    %v2970 = vunpack.c.h.b16 %v2695
    %v2971 = vunpack.c.l.b16 %v2696
    %v2972 = vunpack.c.h.b16 %v2696
    %v2973 = vunpack.c.l.b16 %v2697
    %v2974 = vunpack.c.h.b16 %v2697
    %v2975 = vunpack.c.l.b16 %v2698
    %v2976 = vunpack.c.h.b16 %v2698
    %v2977 = vunpack.c.l.b16 %v2699
    %v2978 = vunpack.c.h.b16 %v2699
    %v2979 = vunpack.c.l.b16 %v2700
    %v2980 = vunpack.c.h.b16 %v2700
    %v2981 = vunpack.c.l.b16 %v2701
    %v2982 = vunpack.c.h.b16 %v2701
    %v2983 = vunpack.c.l.b16 %v2702
    %v2984 = vunpack.c.h.b16 %v2702
    %v2985 = vunpack.c.l.b16 %v2703
    %v2986 = vunpack.c.h.b16 %v2703
    %v2987 = vunpack.c.l.b16 %v2704
    %v2988 = vunpack.c.h.b16 %v2704
    %v2989 = vunpack.c.l.b16 %v2705
    %v2990 = vunpack.c.h.b16 %v2705
    %v2991 = vunpack.c.l.b16 %v2706
    %v2992 = vunpack.c.h.b16 %v2706
    %v2993 = vunpack.c.l.b16 %v2707
    %v2994 = vunpack.c.h.b16 %v2707
    %v2995 = vunpack.c.l.b16 %v2708
    %v2996 = vunpack.c.h.b16 %v2708
    %v2997 = vunpack.c.l.b16 %v2709
    %v2998 = vunpack.c.h.b16 %v2709
    %v2999 = vunpack.c.l.b16 %v2710
    %v3000 = vunpack.c.h.b16 %v2710
    %v3001 = vunpack.c.l.b16 %v2711
    %v3002 = vunpack.c.h.b16 %v2711
    %v3003 = vunpack.c.l.b16 %v2712
    %v3004 = vunpack.c.h.b16 %v2712
    %v3005 = vunpack.c.l.b16 %v2713
    %v3006 = vunpack.c.h.b16 %v2713
    %v3007 = vunpack.c.l.b16 %v2714
    %v3008 = vunpack.c.h.b16 %v2714
    %v3009 = vunpack.c.l.b16 %v2715
    %v3010 = vunpack.c.h.b16 %v2715
    %v3011 = vunpack.c.l.b16 %v2716
    %v3012 = vunpack.c.h.b16 %v2716
    %v3013 = vunpack.c.l.b16 %v2717
    %v3014 = vunpack.c.h.b16 %v2717
    %v3015 = vunpack.c.l.b16 %v2718
    %v3016 = vunpack.c.h.b16 %v2718
    %v3017 = vunpack.c.l.b16 %v2719
    %v3018 = vunpack.c.h.b16 %v2719
    %v3019 = vunpack.c.l.b16 %v2720
    %v3020 = vunpack.c.h.b16 %v2720
    %v3021 = vunpack.c.l.b16 %v2721
    %v3022 = vunpack.c.h.b16 %v2721
    %v3023 = vunpack.c.l.b16 %v2722
    %v3024 = vunpack.c.h.b16 %v2722
    %v3025 = vunpack.c.l.b16 %v2723
    %v3026 = vunpack.c.h.b16 %v2723
    %v3027 = vunpack.c.l.b16 %v2724
    %v3028 = vunpack.c.h.b16 %v2724
    %v3029 = vunpack.c.l.b16 %v2725
    %v3030 = vunpack.c.h.b16 %v2725
    %v3031 = vunpack.c.l.b16 %v2726
    %v3032 = vunpack.c.h.b16 %v2726
    %v3033 = vunpack.c.l.b16 %v2727
    %v3034 = vunpack.c.h.b16 %v2727
    %v3035 = vunpack.c.l.b16 %v2728
    %v3036 = vunpack.c.h.b16 %v2728
    %v3037 = vunpack.c.l.b16 %v2729
    %v3038 = vunpack.c.h.b16 %v2729
    %v3039 = vunpack.c.l.b16 %v2730
    %v3040 = vunpack.c.h.b16 %v2730
    %v3041 = vunpack.c.l.b16 %v2731
    %v3042 = vunpack.c.h.b16 %v2731
    %v3043 = vunpack.c.l.b16 %v2732
    %v3044 = vunpack.c.h.b16 %v2732
    %v3045 = vunpack.c.l.b16 %v2733
    %v3046 = vunpack.c.h.b16 %v2733
    %v3047 = vunpack.c.l.b16 %v2734
    %v3048 = vunpack.c.h.b16 %v2734
    %v3049 = vunpack.c.l.b16 %v2735
    %v3050 = vunpack.c.h.b16 %v2735
    %v3051 = vunpack.c.l.b16 %v2736
    %v3052 = vunpack.c.h.b16 %v2736
    %v3053 = vunpack.c.l.b16 %v2737
    %v3054 = vunpack.c.h.b16 %v2737
    %v3055 = vunpack.c.l.b16 %v2738
    %v3056 = vunpack.c.h.b16 %v2738
    %v3057 = vunpack.c.l.b16 %v2739
    %v3058 = vunpack.c.h.b16 %v2739
    %v3059 = vunpack.c.l.b16 %v2740
    %v3060 = vunpack.c.h.b16 %v2740
    %v3061 = vunpack.c.l.b16 %v2741
    %v3062 = vunpack.c.h.b16 %v2741
    %v3063 = vunpack.c.l.b16 %v2742
    %v3064 = vunpack.c.h.b16 %v2742
    %v3065 = vunpack.c.l.b16 %v2743
    %v3066 = vunpack.c.h.b16 %v2743
    %v3067 = vunpack.c.l.b16 %v2744
    %v3068 = vunpack.c.h.b16 %v2744
    %v3069 = vunpack.c.l.b16 %v2745
    %v3070 = vunpack.c.h.b16 %v2745
    %v3071 = vunpack.c.l.b16 %v2746
    %v3072 = vunpack.c.h.b16 %v2746
    %v3073 = vunpack.c.l.b16 %v2747
    %v3074 = vunpack.c.h.b16 %v2747
    %v3075 = vunpack.c.l.b16 %v2748
    %v3076 = vunpack.c.h.b16 %v2748
    %v3077 = vunpack.c.l.b16 %v2749
    %v3078 = vunpack.c.h.b16 %v2749
    %v3079 = vunpack.c.l.b16 %v2750
    %v3080 = vunpack.c.h.b16 %v2750
    %v3081 = vunpack.c.l.b16 %v2751
    %v3082 = vunpack.c.h.b16 %v2751
    %v3083 = vunpack.c.l.b16 %v2752
    %v3084 = vunpack.c.h.b16 %v2752
    %v3085 = vunpack.c.l.b16 %v2753
    %v3086 = vunpack.c.h.b16 %v2753
    %v3087 = vunpack.c.l.b16 %v2754
    %v3088 = vunpack.c.h.b16 %v2754
    %v3089 = vunpack.c.l.b16 %v2755
    %v3090 = vunpack.c.h.b16 %v2755
    %v3091 = vunpack.c.l.b16 %v2756
    %v3092 = vunpack.c.h.b16 %v2756
    %v3093 = vunpack.c.l.b16 %v2757
    %v3094 = vunpack.c.h.b16 %v2757
    %v3095 = vunpack.c.l.b16 %v2758
    %v3096 = vunpack.c.h.b16 %v2758
    %v3097 = vunpack.c.l.b16 %v2759
    %v3098 = vunpack.c.h.b16 %v2759
    %v3099 = vunpack.c.l.b16 %v2760
    %v3100 = vunpack.c.h.b16 %v2760
    %v3101 = vunpack.c.l.b16 %v2761
    %v3102 = vunpack.c.h.b16 %v2761
    %v3103 = vunpack.c.l.b16 %v2762
    %v3104 = vunpack.c.h.b16 %v2762
    %v3105 = vunpack.c.l.b16 %v2763
    %v3106 = vunpack.c.h.b16 %v2763
    %v3107 = vunpack.c.l.b16 %v2764
    %v3108 = vunpack.c.h.b16 %v2764
    %v3109 = vunpack.c.l.b16 %v2765
    %v3110 = vunpack.c.h.b16 %v2765
    %v3111 = vunpack.c.l.b16 %v2766
    %v3112 = vunpack.c.h.b16 %v2766
    %v3113 = vunpack.c.l.b16 %v2767
    %v3114 = vunpack.c.h.b16 %v2767
    %v3115 = vunpack.c.l.b16 %v2768
    %v3116 = vunpack.c.h.b16 %v2768
    %v3117 = vunpack.c.l.b16 %v2769
    %v3118 = vunpack.c.h.b16 %v2769
    %v3119 = vunpack.c.l.b16 %v2770
    %v3120 = vunpack.c.h.b16 %v2770
    %v3121 = vunpack.c.l.b16 %v2771
    %v3122 = vunpack.c.h.b16 %v2771
    %v3123 = vunpack.c.l.b16 %v2772
    %v3124 = vunpack.c.h.b16 %v2772
    %v3125 = vunpack.c.l.b16 %v2773
    %v3126 = vunpack.c.h.b16 %v2773
    %v3127 = vunpack.c.l.b16 %v2774
    %v3128 = vunpack.c.h.b16 %v2774
    %v3129 = vunpack.c.l.b16 %v2775
    %v3130 = vunpack.c.h.b16 %v2775
    %v3131 = vunpack.c.l.b16 %v2776
    %v3132 = vunpack.c.h.b16 %v2776
    %v3133 = vunpack.c.l.b16 %v2777
    %v3134 = vunpack.c.h.b16 %v2777
    %v3135 = vunpack.c.l.b16 %v2778
    %v3136 = vunpack.c.h.b16 %v2778
    %v3137 = vunpack.c.l.b16 %v2779
    %v3138 = vunpack.c.h.b16 %v2779
    %v3139 = vunpack.c.l.b16 %v2780
    %v3140 = vunpack.c.h.b16 %v2780
    %v3141 = vunpack.c.l.b16 %v2781
    %v3142 = vunpack.c.h.b16 %v2781
    %v3143 = vunpack.c.l.b16 %v2782
    %v3144 = vunpack.c.h.b16 %v2782
    %v3145 = vunpack.c.l.b16 %v2783
    %v3146 = vunpack.c.h.b16 %v2783
    %v3147 = vunpack.c.l.b16 %v2784
    %v3148 = vunpack.c.h.b16 %v2784
    %v3149 = vunpack.c.l.b16 %v2785
    %v3150 = vunpack.c.h.b16 %v2785
    %v3151 = vunpack.c.l.b16 %v2786
    %v3152 = vunpack.c.h.b16 %v2786
    %v3153 = vunpack.c.l.b16 %v2787
    %v3154 = vunpack.c.h.b16 %v2787
    %v3155 = vunpack.c.l.b16 %v2788
    %v3156 = vunpack.c.h.b16 %v2788
    %v3157 = vunpack.c.l.b16 %v2789
    %v3158 = vunpack.c.h.b16 %v2789
    %v3159 = vunpack.c.l.b16 %v2790
    %v3160 = vunpack.c.h.b16 %v2790
    %v3161 = vunpack.c.l.b16 %v2791
    %v3162 = vunpack.c.h.b16 %v2791
    %v3163 = vunpack.c.l.b16 %v2792
    %v3164 = vunpack.c.h.b16 %v2792
    %v3165 = vunpack.c.l.b16 %v2793
    %v3166 = vunpack.c.h.b16 %v2793
    %v3167 = vunpack.c.l.b16 %v2794
    %v3168 = vunpack.c.h.b16 %v2794
    %v3169 = vunpack.c.l.b16 %v2795
    %v3170 = vunpack.c.h.b16 %v2795
    %v3171 = vunpack.c.l.b16 %v2796
    %v3172 = vunpack.c.h.b16 %v2796
    %v3173 = vunpack.c.l.b16 %v2797
    %v3174 = vunpack.c.h.b16 %v2797
    %v3175 = vunpack.c.l.b16 %v2798
    %v3176 = vunpack.c.h.b16 %v2798
    %v3177 = vunpack.c.l.b16 %v2799
    %v3178 = vunpack.c.h.b16 %v2799
    %v3179 = vunpack.c.l.b16 %v2800
    %v3180 = vunpack.c.h.b16 %v2800
    %v3181 = vunpack.c.l.b16 %v2801
    %v3182 = vunpack.c.h.b16 %v2801
    %v3183 = vunpack.c.l.b16 %v2802
    %v3184 = vunpack.c.h.b16 %v2802
    %v3185 = vunpack.c.l.b16 %v2803
    %v3186 = vunpack.c.h.b16 %v2803
    %v3187 = vunpack.c.l.b16 %v2804
    %v3188 = vunpack.c.h.b16 %v2804
    %v3189 = vunpack.c.l.b16 %v2805
    %v3190 = vunpack.c.h.b16 %v2805
    %v3191 = vunpack.c.l.b16 %v2806
    %v3192 = vunpack.c.h.b16 %v2806
    %v3193 = vunpack.c.l.b16 %v2807
    %v3194 = vunpack.c.h.b16 %v2807
    %v3195 = vunpack.c.l.b16 %v2808
    %v3196 = vunpack.c.h.b16 %v2808
    %v3197 = vunpack.c.l.b16 %v2809
    %v3198 = vunpack.c.h.b16 %v2809
    %v3199 = vunpack.c.l.b16 %v2810
    %v3200 = vunpack.c.h.b16 %v2810
    %v3201 = vpack.c.b16 %v2947, %v2945
    %v3202 = vpack.c.b16 %v2948, %v2946
    %v3203 = vpack.c.b16 %v2951, %v2949
    %v3204 = vpack.c.b16 %v2952, %v2950
    %v3205 = vpack.c.b16 %v2955, %v2953
    %v3206 = vpack.c.b16 %v2956, %v2954
    %v3207 = vpack.c.b16 %v2959, %v2957
    %v3208 = vpack.c.b16 %v2960, %v2958
    %v3209 = vpack.c.b16 %v2963, %v2961
    %v3210 = vpack.c.b16 %v2964, %v2962
    %v3211 = vpack.c.b16 %v2967, %v2965
    %v3212 = vpack.c.b16 %v2968, %v2966
    %v3213 = vpack.c.b16 %v2971, %v2969
    %v3214 = vpack.c.b16 %v2972, %v2970
    %v3215 = vpack.c.b16 %v2975, %v2973
    %v3216 = vpack.c.b16 %v2976, %v2974
    %v3217 = vpack.c.b16 %v2979, %v2977
    %v3218 = vpack.c.b16 %v2980, %v2978
    %v3219 = vpack.c.b16 %v2983, %v2981
    %v3220 = vpack.c.b16 %v2984, %v2982
    %v3221 = vpack.c.b16 %v2987, %v2985
    %v3222 = vpack.c.b16 %v2988, %v2986
    %v3223 = vpack.c.b16 %v2991, %v2989
    %v3224 = vpack.c.b16 %v2992, %v2990
    %v3225 = vpack.c.b16 %v2995, %v2993
    %v3226 = vpack.c.b16 %v2996, %v2994
    %v3227 = vpack.c.b16 %v2999, %v2997
    %v3228 = vpack.c.b16 %v3000, %v2998
    %v3229 = vpack.c.b16 %v3003, %v3001
    %v3230 = vpack.c.b16 %v3004, %v3002
    %v3231 = vpack.c.b16 %v3007, %v3005
    %v3232 = vpack.c.b16 %v3008, %v3006
    %v3233 = vpack.c.b16 %v3011, %v3009
    %v3234 = vpack.c.b16 %v3012, %v3010
    %v3235 = vpack.c.b16 %v3015, %v3013
    %v3236 = vpack.c.b16 %v3016, %v3014
    %v3237 = vpack.c.b16 %v3019, %v3017
    %v3238 = vpack.c.b16 %v3020, %v3018
    %v3239 = vpack.c.b16 %v3023, %v3021
    %v3240 = vpack.c.b16 %v3024, %v3022
    %v3241 = vpack.c.b16 %v3027, %v3025
    %v3242 = vpack.c.b16 %v3028, %v3026
    %v3243 = vpack.c.b16 %v3031, %v3029
    %v3244 = vpack.c.b16 %v3032, %v3030
    %v3245 = vpack.c.b16 %v3035, %v3033
    %v3246 = vpack.c.b16 %v3036, %v3034
    %v3247 = vpack.c.b16 %v3039, %v3037
    %v3248 = vpack.c.b16 %v3040, %v3038
    %v3249 = vpack.c.b16 %v3043, %v3041
    %v3250 = vpack.c.b16 %v3044, %v3042
    %v3251 = vpack.c.b16 %v3047, %v3045
    %v3252 = vpack.c.b16 %v3048, %v3046
    %v3253 = vpack.c.b16 %v3051, %v3049
    %v3254 = vpack.c.b16 %v3052, %v3050
    %v3255 = vpack.c.b16 %v3055, %v3053
    %v3256 = vpack.c.b16 %v3056, %v3054
    %v3257 = vpack.c.b16 %v3059, %v3057
    %v3258 = vpack.c.b16 %v3060, %v3058
    %v3259 = vpack.c.b16 %v3063, %v3061
    %v3260 = vpack.c.b16 %v3064, %v3062
    %v3261 = vpack.c.b16 %v3067, %v3065
    %v3262 = vpack.c.b16 %v3068, %v3066
    %v3263 = vpack.c.b16 %v3071, %v3069
    %v3264 = vpack.c.b16 %v3072, %v3070
    %v3265 = vpack.c.b16 %v3075, %v3073
    %v3266 = vpack.c.b16 %v3076, %v3074
    %v3267 = vpack.c.b16 %v3079, %v3077
    %v3268 = vpack.c.b16 %v3080, %v3078
    %v3269 = vpack.c.b16 %v3083, %v3081
    %v3270 = vpack.c.b16 %v3084, %v3082
    %v3271 = vpack.c.b16 %v3087, %v3085
    %v3272 = vpack.c.b16 %v3088, %v3086
    %v3273 = vpack.c.b16 %v3091, %v3089
    %v3274 = vpack.c.b16 %v3092, %v3090
    %v3275 = vpack.c.b16 %v3095, %v3093
    %v3276 = vpack.c.b16 %v3096, %v3094
    %v3277 = vpack.c.b16 %v3099, %v3097
    %v3278 = vpack.c.b16 %v3100, %v3098
    %v3279 = vpack.c.b16 %v3103, %v3101
    %v3280 = vpack.c.b16 %v3104, %v3102
    %v3281 = vpack.c.b16 %v3107, %v3105
    %v3282 = vpack.c.b16 %v3108, %v3106
    %v3283 = vpack.c.b16 %v3111, %v3109
    %v3284 = vpack.c.b16 %v3112, %v3110
    %v3285 = vpack.c.b16 %v3115, %v3113
    %v3286 = vpack.c.b16 %v3116, %v3114
    %v3287 = vpack.c.b16 %v3119, %v3117
    %v3288 = vpack.c.b16 %v3120, %v3118
    %v3289 = vpack.c.b16 %v3123, %v3121
    %v3290 = vpack.c.b16 %v3124, %v3122
    %v3291 = vpack.c.b16 %v3127, %v3125
    %v3292 = vpack.c.b16 %v3128, %v3126
    %v3293 = vpack.c.b16 %v3131, %v3129
    %v3294 = vpack.c.b16 %v3132, %v3130
    %v3295 = vpack.c.b16 %v3135, %v3133
    %v3296 = vpack.c.b16 %v3136, %v3134
    %v3297 = vpack.c.b16 %v3139, %v3137
    %v3298 = vpack.c.b16 %v3140, %v3138
    %v3299 = vpack.c.b16 %v3143, %v3141
    %v3300 = vpack.c.b16 %v3144, %v3142
    %v3301 = vpack.c.b16 %v3147, %v3145
    %v3302 = vpack.c.b16 %v3148, %v3146
    %v3303 = vpack.c.b16 %v3151, %v3149
    %v3304 = vpack.c.b16 %v3152, %v3150
    %v3305 = vpack.c.b16 %v3155, %v3153
    %v3306 = vpack.c.b16 %v3156, %v3154
    %v3307 = vpack.c.b16 %v3159, %v3157
    %v3308 = vpack.c.b16 %v3160, %v3158
    %v3309 = vpack.c.b16 %v3163, %v3161
    %v3310 = vpack.c.b16 %v3164, %v3162
    %v3311 = vpack.c.b16 %v3167, %v3165
    %v3312 = vpack.c.b16 %v3168, %v3166
    %v3313 = vpack.c.b16 %v3171, %v3169
    %v3314 = vpack.c.b16 %v3172, %v3170
    %v3315 = vpack.c.b16 %v3175, %v3173
    %v3316 = vpack.c.b16 %v3176, %v3174
    %v3317 = vpack.c.b16 %v3179, %v3177
    %v3318 = vpack.c.b16 %v3180, %v3178
    %v3319 = vpack.c.b16 %v3183, %v3181
    %v3320 = vpack.c.b16 %v3184, %v3182
    %v3321 = vpack.c.b16 %v3187, %v3185
    %v3322 = vpack.c.b16 %v3188, %v3186
    %v3323 = vpack.c.b16 %v3191, %v3189
    %v3324 = vpack.c.b16 %v3192, %v3190
    %v3325 = vpack.c.b16 %v3195, %v3193
    %v3326 = vpack.c.b16 %v3196, %v3194
    %v3327 = vpack.c.b16 %v3199, %v3197
    %v3328 = vpack.c.b16 %v3200, %v3198
    %3457 = vmatpush.bf16.msra.mxu0 %v3215
    %3458 = vmatpush.bf16.msra.mxu0 %v3213
    %3459 = vmatpush.bf16.msra.mxu0 %v3211
    %3460 = vmatpush.bf16.msra.mxu0 %v3209
    %3461 = vmatpush.bf16.msra.mxu0 %v3207
    %3462 = vmatpush.bf16.msra.mxu0 %v3205
    %3463 = vmatpush.bf16.msra.mxu0 %v3203
    %3464 = vmatpush.bf16.msra.mxu0 %v3201
    %3465 = vmatmul.bf16.gmra.mxu0 %v2675
    %v3466 = vpop.f32.mrf.mxu0
    %v3467 = vadd.f32 %v2813, %v3466
    %v3468 = vpop.f32.mrf.mxu0
    %3469 = vdwg.mxu0
    %3470 = vmatpush.bf16.msra.mxu0 %v3231
    %3471 = vmatpush.bf16.msra.mxu0 %v3229
    %3472 = vmatpush.bf16.msra.mxu0 %v3227
    %3473 = vmatpush.bf16.msra.mxu0 %v3225
    %3474 = vmatpush.bf16.msra.mxu0 %v3223
    %3475 = vmatpush.bf16.msra.mxu0 %v3221
    %3476 = vmatpush.bf16.msra.mxu0 %v3219
    %3477 = vmatpush.bf16.msra.mxu0 %v3217
    %3478 = vmatmul.bf16.gmra.mxu0 %v2676
    %v3479 = vpop.f32.mrf.mxu0
    %v3480 = vadd.f32 %v3467, %v3479
    %v3481 = vpop.f32.mrf.mxu0
    %3482 = vdwg.mxu0
    %3483 = vmatpush.bf16.msra.mxu0 %v3247
    %3484 = vmatpush.bf16.msra.mxu0 %v3245
    %3485 = vmatpush.bf16.msra.mxu0 %v3243
    %3486 = vmatpush.bf16.msra.mxu0 %v3241
    %3487 = vmatpush.bf16.msra.mxu0 %v3239
    %3488 = vmatpush.bf16.msra.mxu0 %v3237
    %3489 = vmatpush.bf16.msra.mxu0 %v3235
    %3490 = vmatpush.bf16.msra.mxu0 %v3233
    %3491 = vmatmul.bf16.gmra.mxu0 %v2677
    %v3492 = vpop.f32.mrf.mxu0
    %v3493 = vadd.f32 %v3480, %v3492
    %v3494 = vpop.f32.mrf.mxu0
    %3495 = vdwg.mxu0
    %3496 = vmatpush.bf16.msra.mxu0 %v3263
    %3497 = vmatpush.bf16.msra.mxu0 %v3261
    %3498 = vmatpush.bf16.msra.mxu0 %v3259
    %3499 = vmatpush.bf16.msra.mxu0 %v3257
    %3500 = vmatpush.bf16.msra.mxu0 %v3255
    %3501 = vmatpush.bf16.msra.mxu0 %v3253
    %3502 = vmatpush.bf16.msra.mxu0 %v3251
    %3503 = vmatpush.bf16.msra.mxu0 %v3249
    %3504 = vmatmul.bf16.gmra.mxu0 %v2678
    %v3505 = vpop.f32.mrf.mxu0
    %v3506 = vadd.f32 %v3493, %v3505
    %v3507 = vpop.f32.mrf.mxu0
    %3508 = vdwg.mxu0
    %3509 = vmatpush.bf16.msra.mxu0 %v3279
    %3510 = vmatpush.bf16.msra.mxu0 %v3277
    %3511 = vmatpush.bf16.msra.mxu0 %v3275
    %3512 = vmatpush.bf16.msra.mxu0 %v3273
    %3513 = vmatpush.bf16.msra.mxu0 %v3271
    %3514 = vmatpush.bf16.msra.mxu0 %v3269
    %3515 = vmatpush.bf16.msra.mxu0 %v3267
    %3516 = vmatpush.bf16.msra.mxu0 %v3265
    %3517 = vmatmul.bf16.gmra.mxu0 %v2679
    %v3518 = vpop.f32.mrf.mxu0
    %v3519 = vadd.f32 %v3506, %v3518
    %v3520 = vpop.f32.mrf.mxu0
    %3521 = vdwg.mxu0
    %3522 = vmatpush.bf16.msra.mxu0 %v3295
    %3523 = vmatpush.bf16.msra.mxu0 %v3293
    %3524 = vmatpush.bf16.msra.mxu0 %v3291
    %3525 = vmatpush.bf16.msra.mxu0 %v3289
    %3526 = vmatpush.bf16.msra.mxu0 %v3287
    %3527 = vmatpush.bf16.msra.mxu0 %v3285
    %3528 = vmatpush.bf16.msra.mxu0 %v3283
    %3529 = vmatpush.bf16.msra.mxu0 %v3281
    %3530 = vmatmul.bf16.gmra.mxu0 %v2680
    %v3531 = vpop.f32.mrf.mxu0
    %v3532 = vadd.f32 %v3519, %v3531
    %v3533 = vpop.f32.mrf.mxu0
    %3534 = vdwg.mxu0
    %3535 = vmatpush.bf16.msra.mxu0 %v3311
    %3536 = vmatpush.bf16.msra.mxu0 %v3309
    %3537 = vmatpush.bf16.msra.mxu0 %v3307
    %3538 = vmatpush.bf16.msra.mxu0 %v3305
    %3539 = vmatpush.bf16.msra.mxu0 %v3303
    %3540 = vmatpush.bf16.msra.mxu0 %v3301
    %3541 = vmatpush.bf16.msra.mxu0 %v3299
    %3542 = vmatpush.bf16.msra.mxu0 %v3297
    %3543 = vmatmul.bf16.gmra.mxu0 %v2681
    %v3544 = vpop.f32.mrf.mxu0
    %v3545 = vadd.f32 %v3532, %v3544
    %v3546 = vpop.f32.mrf.mxu0
    %3547 = vdwg.mxu0
    %3548 = vmatpush.bf16.msra.mxu0 %v3327
    %3549 = vmatpush.bf16.msra.mxu0 %v3325
    %3550 = vmatpush.bf16.msra.mxu0 %v3323
    %3551 = vmatpush.bf16.msra.mxu0 %v3321
    %3552 = vmatpush.bf16.msra.mxu0 %v3319
    %3553 = vmatpush.bf16.msra.mxu0 %v3317
    %3554 = vmatpush.bf16.msra.mxu0 %v3315
    %3555 = vmatpush.bf16.msra.mxu0 %v3313
    %3556 = vmatmul.bf16.gmra.mxu0 %v2682
    %v3557 = vpop.f32.mrf.mxu0
    %v3558 = vadd.f32 %v3545, %v3557
    %v3559 = vpop.f32.mrf.mxu0
    %3560 = vdwg.mxu0
    %3561 = vmatpush.bf16.msra.mxu0 %v3216
    %3562 = vmatpush.bf16.msra.mxu0 %v3214
    %3563 = vmatpush.bf16.msra.mxu0 %v3212
    %3564 = vmatpush.bf16.msra.mxu0 %v3210
    %3565 = vmatpush.bf16.msra.mxu0 %v3208
    %3566 = vmatpush.bf16.msra.mxu0 %v3206
    %3567 = vmatpush.bf16.msra.mxu0 %v3204
    %3568 = vmatpush.bf16.msra.mxu0 %v3202
    %3569 = vmatmul.bf16.gmra.mxu0 %v2675
    %v3570 = vpop.f32.mrf.mxu0
    %v3571 = vadd.f32 %v2814, %v3570
    %v3572 = vpop.f32.mrf.mxu0
    %3573 = vdwg.mxu0
    %3574 = vmatpush.bf16.msra.mxu0 %v3232
    %3575 = vmatpush.bf16.msra.mxu0 %v3230
    %3576 = vmatpush.bf16.msra.mxu0 %v3228
    %3577 = vmatpush.bf16.msra.mxu0 %v3226
    %3578 = vmatpush.bf16.msra.mxu0 %v3224
    %3579 = vmatpush.bf16.msra.mxu0 %v3222
    %3580 = vmatpush.bf16.msra.mxu0 %v3220
    %3581 = vmatpush.bf16.msra.mxu0 %v3218
    %3582 = vmatmul.bf16.gmra.mxu0 %v2676
    %v3583 = vpop.f32.mrf.mxu0
    %v3584 = vadd.f32 %v3571, %v3583
    %v3585 = vpop.f32.mrf.mxu0
    %3586 = vdwg.mxu0
    %3587 = vmatpush.bf16.msra.mxu0 %v3248
    %3588 = vmatpush.bf16.msra.mxu0 %v3246
    %3589 = vmatpush.bf16.msra.mxu0 %v3244
    %3590 = vmatpush.bf16.msra.mxu0 %v3242
    %3591 = vmatpush.bf16.msra.mxu0 %v3240
    %3592 = vmatpush.bf16.msra.mxu0 %v3238
    %3593 = vmatpush.bf16.msra.mxu0 %v3236
    %3594 = vmatpush.bf16.msra.mxu0 %v3234
    %3595 = vmatmul.bf16.gmra.mxu0 %v2677
    %v3596 = vpop.f32.mrf.mxu0
    %v3597 = vadd.f32 %v3584, %v3596
    %v3598 = vpop.f32.mrf.mxu0
    %3599 = vdwg.mxu0
    %3600 = vmatpush.bf16.msra.mxu0 %v3264
    %3601 = vmatpush.bf16.msra.mxu0 %v3262
    %3602 = vmatpush.bf16.msra.mxu0 %v3260
    %3603 = vmatpush.bf16.msra.mxu0 %v3258
    %3604 = vmatpush.bf16.msra.mxu0 %v3256
    %3605 = vmatpush.bf16.msra.mxu0 %v3254
    %3606 = vmatpush.bf16.msra.mxu0 %v3252
    %3607 = vmatpush.bf16.msra.mxu0 %v3250
    %3608 = vmatmul.bf16.gmra.mxu0 %v2678
    %v3609 = vpop.f32.mrf.mxu0
    %v3610 = vadd.f32 %v3597, %v3609
    %v3611 = vpop.f32.mrf.mxu0
    %3612 = vdwg.mxu0
    %3613 = vmatpush.bf16.msra.mxu0 %v3280
    %3614 = vmatpush.bf16.msra.mxu0 %v3278
    %3615 = vmatpush.bf16.msra.mxu0 %v3276
    %3616 = vmatpush.bf16.msra.mxu0 %v3274
    %3617 = vmatpush.bf16.msra.mxu0 %v3272
    %3618 = vmatpush.bf16.msra.mxu0 %v3270
    %3619 = vmatpush.bf16.msra.mxu0 %v3268
    %3620 = vmatpush.bf16.msra.mxu0 %v3266
    %3621 = vmatmul.bf16.gmra.mxu0 %v2679
    %v3622 = vpop.f32.mrf.mxu0
    %v3623 = vadd.f32 %v3610, %v3622
    %v3624 = vpop.f32.mrf.mxu0
    %3625 = vdwg.mxu0
    %3626 = vmatpush.bf16.msra.mxu0 %v3296
    %3627 = vmatpush.bf16.msra.mxu0 %v3294
    %3628 = vmatpush.bf16.msra.mxu0 %v3292
    %3629 = vmatpush.bf16.msra.mxu0 %v3290
    %3630 = vmatpush.bf16.msra.mxu0 %v3288
    %3631 = vmatpush.bf16.msra.mxu0 %v3286
    %3632 = vmatpush.bf16.msra.mxu0 %v3284
    %3633 = vmatpush.bf16.msra.mxu0 %v3282
    %3634 = vmatmul.bf16.gmra.mxu0 %v2680
    %v3635 = vpop.f32.mrf.mxu0
    %v3636 = vadd.f32 %v3623, %v3635
    %v3637 = vpop.f32.mrf.mxu0
    %3638 = vdwg.mxu0
    %3639 = vmatpush.bf16.msra.mxu0 %v3312
    %3640 = vmatpush.bf16.msra.mxu0 %v3310
    %3641 = vmatpush.bf16.msra.mxu0 %v3308
    %3642 = vmatpush.bf16.msra.mxu0 %v3306
    %3643 = vmatpush.bf16.msra.mxu0 %v3304
    %3644 = vmatpush.bf16.msra.mxu0 %v3302
    %3645 = vmatpush.bf16.msra.mxu0 %v3300
    %3646 = vmatpush.bf16.msra.mxu0 %v3298
    %3647 = vmatmul.bf16.gmra.mxu0 %v2681
    %v3648 = vpop.f32.mrf.mxu0
    %v3649 = vadd.f32 %v3636, %v3648
    %v3650 = vpop.f32.mrf.mxu0
    %3651 = vdwg.mxu0
    %3652 = vmatpush.bf16.msra.mxu0 %v3328
    %3653 = vmatpush.bf16.msra.mxu0 %v3326
    %3654 = vmatpush.bf16.msra.mxu0 %v3324
    %3655 = vmatpush.bf16.msra.mxu0 %v3322
    %3656 = vmatpush.bf16.msra.mxu0 %v3320
    %3657 = vmatpush.bf16.msra.mxu0 %v3318
    %3658 = vmatpush.bf16.msra.mxu0 %v3316
    %3659 = vmatpush.bf16.msra.mxu0 %v3314
    %3660 = vmatmul.bf16.gmra.mxu0 %v2682
    %v3661 = vpop.f32.mrf.mxu0
    %v3662 = vadd.f32 %v3649, %v3661
    %v3663 = vpop.f32.mrf.mxu0
    %3664 = vdwg.mxu0
    %v3665 = vsub.f32 0.0, %v3558
    %v3666 = vsub.f32 0.0, %v3662
    %v3667 = vmul.f32 %v3665, 1.442695
    %v3668 = vpow.pop %v3667
    %v3669 = vmul.f32 %v3666, 1.442695
    %v3670 = vpow.pop %v3669
    %v3671 = vadd.f32 %v3668, 1.0
    %v3672 = vadd.f32 %v3670, 1.0
    %v3673 = vrcp.pop %v3671
    %v3674 = vmul.f32 %v3671, %v3673
    %v3675 = vsub.f32 1.0, %v3674
    %v3676 = vmul.f32 %v3673, %v3675
    %v3677 = vadd.f32 %v3673, %v3676
    %vm3678 = vweird.f32 %v3671
    %vm3679 = vweird.f32 %v3673
    %vm3680 = vmor %vm3678, %vm3679
    %v3681 = vsel %vm3680, %v3673, %v3677
    %v3682 = vand.u32 2147483647, %v3671
    %vm3683 = vcmp.eq.f32.partialorder %v3682, 8.507059e+37
    %v3684 = vand.u32 %v3671, 2147483648
    %v3685 = vor.u32 1.1754944e-38, %v3684
    %v3686 = vsel %vm3683, %v3685, %v3681
    %v3687 = vmul.f32 1.0, %v3686
    %v3688 = vrcp.pop %v3672
    %v3689 = vmul.f32 %v3672, %v3688
    %v3690 = vsub.f32 1.0, %v3689
    %v3691 = vmul.f32 %v3688, %v3690
    %v3692 = vadd.f32 %v3688, %v3691
    %vm3693 = vweird.f32 %v3672
    %vm3694 = vweird.f32 %v3688
    %vm3695 = vmor %vm3693, %vm3694
    %v3696 = vsel %vm3695, %v3688, %v3692
    %v3697 = vand.u32 2147483647, %v3672
    %vm3698 = vcmp.eq.f32.partialorder %v3697, 8.507059e+37
    %v3699 = vand.u32 %v3672, 2147483648
    %v3700 = vor.u32 1.1754944e-38, %v3699
    %v3701 = vsel %vm3698, %v3700, %v3696
    %v3702 = vmul.f32 1.0, %v3701
    %3703 = vst [vmem:[%s10] sm:$0xff] %v3687
    %3704 = vst [vmem:[%s10 + $0x8] sm:$0xff] %v3702
    // Predicated region
    $region54: #{autoencoder_forward.1} parent=1 // pred_check
      _
    $region55: #{autoencoder_forward.1} parent=1 // pred_check_branch
      %3706 = sbr.rel (0) target = $region57
    $region56: #{autoencoder_forward.1} parent=1 // pred_region
      _
    $region57: #{autoencoder_forward.1} parent=1 // pred_fallthru
      _
    // Predicated region
    $region58: #{autoencoder_forward.1} parent=1 // pred_check
      _
    $region59: #{autoencoder_forward.1} parent=1 // pred_check_branch
      %3708 = sbr.rel (0) target = $region61
    $region60: #{autoencoder_forward.1} parent=1 // pred_region
      _
    $region61: #{autoencoder_forward.1} parent=1 // pred_fallthru
      _
    %3709 = vsyncpa [#allocation3], 1
    %3710 = vsyncpa [#allocation5], 1

</llo_original>
